<compile_context>
chip_gen: v5e
topology: v5e:2x2
jax: 0.10.0
libtpu: 0.0.40
codegen_flags: <defaults>
</compile_context>

<pallas_src>
import functools
import math

import jax
import jax.numpy as jnp
from jax.experimental import pallas as pl
from jax.experimental.pallas import tpu as pltpu


# ------------------------------ Pallas kernels ------------------------------

def _resample_kernel(taps_ref, w_ref, o_ref, *, inv_cch):
    """Fused channel-mean downmix + windowed-sinc polyphase resample.

    taps_ref : (Cch, NF, Wlen) f32  -- per input frame, the sinc-filter tap window
    w_ref    : (Wlen, U) f32        -- polyphase filter bank (U output phases/frame)
    o_ref    : (NF, U) f32
    """
    cch = taps_ref.shape[0]
    mono = taps_ref[0]
    for c in range(1, cch):                                # static unroll over channels
        mono = mono + taps_ref[c]
    mono = mono * inv_cch                                  # torch.mean over channels
    o_ref[...] = jnp.dot(mono, w_ref[...], preferred_element_type=jnp.float32)


def _pointwise_conv_bn_kernel(x_ref, w_ref, b_ref, g_ref, bb_ref, o_ref, *,
                              do_bn, relu_before_bn, relu_after_bn, eps):
    """Fused 1x1 Conv1d (+ReLU) (+training-mode BatchNorm1d) (+ReLU).

    x_ref : (N, Cin) f32, N = B*L (batch folded into the MXU M dimension)
    w_ref : (Cin, Cout) bf16     b_ref/g_ref/bb_ref : (1, Cout) f32
    o_ref : (N, Cout) f32
    """
    n = x_ref.shape[0]
    acc = jnp.dot(x_ref[...].astype(jnp.bfloat16), w_ref[...],
                  preferred_element_type=jnp.float32) + b_ref[...]
    if relu_before_bn:
        acc = jnp.maximum(acc, 0.0)
    if do_bn:
        mean = jnp.sum(acc, axis=0, keepdims=True) / n
        xc = acc - mean
        var = jnp.sum(xc * xc, axis=0, keepdims=True) / n
        acc = xc * jax.lax.rsqrt(var + eps) * g_ref[...] + bb_ref[...]
    if relu_after_bn:
        acc = jnp.maximum(acc, 0.0)
    o_ref[...] = acc


def _convk_bn_kernel(x_ref, w_ref, b_ref, g_ref, bb_ref, o_ref, *,
                     L, K, do_bn, relu_before_bn, relu_after_bn, eps):
    """Fused 'same' Conv1d (odd K) (+ReLU) (+training-mode BatchNorm1d) (+ReLU).

    The time halo is handled in-kernel with pltpu.roll (XLU) + per-row boundary masks
    (so no Kx tap-stacked copy of the activations ever touches HBM and no cross-batch
    contamination occurs with the batch folded into the row axis).
    x_ref : (N, Cin) f32, N = B*L    w_ref : (K, Cin, Cout) bf16
    b_ref/g_ref/bb_ref : (1, Cout) f32    o_ref : (N, Cout) f32
    """
    N = x_ref.shape[0]
    Cout = w_ref.shape[2]
    half = (K - 1) // 2                                    # matches padding=(K-1)//2
    xb = x_ref[...].astype(jnp.bfloat16)
    rows = jax.lax.broadcasted_iota(jnp.int32, (N, Cout), 0)
    t = rows % L                                           # position within each segment
    acc = jnp.dot(xb, w_ref[half], preferred_element_type=jnp.float32)
    for k in range(K):                                     # static unroll over taps
        d = k - half
        if d == 0:
            continue
        c = jnp.dot(xb, w_ref[k], preferred_element_type=jnp.float32)
        if d < 0:
            valid = t >= -d
        else:
            valid = t <= (L - 1 - d)
        acc = acc + jnp.where(valid, pltpu.roll(c, (-d) % N, 0), 0.0)
    acc = acc + b_ref[...]
    if relu_before_bn:
        acc = jnp.maximum(acc, 0.0)
    if do_bn:
        mean = jnp.sum(acc, axis=0, keepdims=True) / N
        xc = acc - mean
        var = jnp.sum(xc * xc, axis=0, keepdims=True) / N
        acc = xc * jax.lax.rsqrt(var + eps) * g_ref[...] + bb_ref[...]
    if relu_after_bn:
        acc = jnp.maximum(acc, 0.0)
    o_ref[...] = acc


def _res2_cascade_kernel(x_ref, w_ref, b_ref, g_ref, bb_ref, o_ref, *,
                         L, scale, width, eps):
    """Fused Res2 branch cascade: (scale-1) x [conv(k=3) + BN + ReLU] + concat.

    x_ref : (N, C) f32  (bn1 output, N = B*L)
    w_ref : ((scale-1)*3, width, width) bf16  (tap-major per branch)
    b_ref/g_ref/bb_ref : (scale-1, 1, width) f32
    o_ref : (N, C) f32
    Time halos of the k=3 convs are handled with pltpu.roll (XLU) + per-row masks so
    nothing touches HBM between branches and no cross-batch contamination occurs.
    """
    N = x_ref.shape[0]
    rows = jax.lax.broadcasted_iota(jnp.int32, (N, width), 0)
    t = rows % L
    has_left = t != 0
    has_right = t != (L - 1)
    prev = None
    for i in range(scale - 1):                             # static unroll over branches
        spx = x_ref[:, i * width:(i + 1) * width]
        sp = spx if prev is None else spx + prev
        spb = sp.astype(jnp.bfloat16)
        c0 = jnp.dot(spb, w_ref[3 * i + 0], preferred_element_type=jnp.float32)
        c1 = jnp.dot(spb, w_ref[3 * i + 1], preferred_element_type=jnp.float32)
        c2 = jnp.dot(spb, w_ref[3 * i + 2], preferred_element_type=jnp.float32)
        acc = (c1
               + jnp.where(has_left, pltpu.roll(c0, 1, 0), 0.0)
               + jnp.where(has_right, pltpu.roll(c2, N - 1, 0), 0.0))
        acc = acc + b_ref[i]
        # training-mode BatchNorm1d over all B*L rows
        mean = jnp.sum(acc, axis=0, keepdims=True) / N
        xc = acc - mean
        var = jnp.sum(xc * xc, axis=0, keepdims=True) / N
        y = xc * jax.lax.rsqrt(var + eps) * g_ref[i] + bb_ref[i]
        y = jnp.maximum(y, 0.0)
        o_ref[:, i * width:(i + 1) * width] = y
        prev = y
    # last channel slab passes through untouched
    o_ref[:, (scale - 1) * width:] = x_ref[:, (scale - 1) * width:]


def _se_kernel(x_ref, res_ref, w1_ref, w2_ref, o_ref):
    """SE block + residual add + ReLU (tail of SERes2Block), one batch element."""
    x = x_ref[0]                                           # (L, C) f32
    s = jnp.mean(x, axis=0, keepdims=True)                 # AdaptiveAvgPool1d(1)
    h = jnp.maximum(
        jnp.dot(s.astype(jnp.bfloat16), w1_ref[...],
                preferred_element_type=jnp.float32), 0.0)
    g = jax.nn.sigmoid(
        jnp.dot(h.astype(jnp.bfloat16), w2_ref[...],
                preferred_element_type=jnp.float32))
    o_ref[0] = jnp.maximum(x * g + res_ref[0], 0.0)


def _attention_logits_kernel(x_ref, w1_ref, b1_ref, g_ref, bb_ref, w2_ref, b2_ref,
                             o_ref, *, eps):
    """Fused attention head: conv1x1 + ReLU + training-mode BN + conv1x1 (logits).

    The (N, ATTN) intermediate never leaves VMEM/vregs.
    """
    n = x_ref.shape[0]
    h = jnp.dot(x_ref[...].astype(jnp.bfloat16), w1_ref[...],
                preferred_element_type=jnp.float32) + b1_ref[...]
    h = jnp.maximum(h, 0.0)
    mean = jnp.sum(h, axis=0, keepdims=True) / n
    hc = h - mean
    var = jnp.sum(hc * hc, axis=0, keepdims=True) / n
    h = hc * jax.lax.rsqrt(var + eps) * g_ref[...] + bb_ref[...]
    o_ref[...] = jnp.dot(h.astype(jnp.bfloat16), w2_ref[...],
                         preferred_element_type=jnp.float32) + b2_ref[...]


def _asp_pool_kernel(x_ref, lg_ref, o_ref, *, eps):
    """Attentive statistics pooling: softmax over time, weighted mean/std."""
    x = x_ref[0]                                           # (L, C)
    lg = lg_ref[0]                                         # (L, C) attention logits
    m = jnp.max(lg, axis=0, keepdims=True)
    e = jnp.exp(lg - m)
    attn = e * pl.reciprocal(jnp.sum(e, axis=0, keepdims=True), approx=True)
    wx = x * attn
    mean = jnp.sum(wx, axis=0, keepdims=True)              # (1, C)
    var = jnp.sum(x * wx, axis=0, keepdims=True) - mean * mean   # E[x^2]_attn - mean^2
    std = jnp.sqrt(jnp.maximum(var, eps))
    o_ref[0] = jnp.concatenate([mean, std], axis=1)        # (1, 2C)


def _tail_kernel(x_ref, w_ref, b_ref, g_ref, bb_ref, o_ref, *, eps_bn, eps_l2):
    """Fused fc (Linear) + training-mode BatchNorm1d + L2 normalization."""
    e = jnp.dot(x_ref[...].astype(jnp.bfloat16), w_ref[...],
                preferred_element_type=jnp.float32) + b_ref[...]
    n = e.shape[0]
    mean = jnp.sum(e, axis=0, keepdims=True) / n
    xc = e - mean
    var = jnp.sum(xc * xc, axis=0, keepdims=True) / n
    y = xc * jax.lax.rsqrt(var + eps_bn) * g_ref[...] + bb_ref[...]
    nrm = jnp.sqrt(jnp.sum(y * y, axis=1, keepdims=True))
    o_ref[...] = y / jnp.maximum(nrm, eps_l2)


# --------------------- VAD.forward: downmix + sinc resample ------------------

def _sinc_resample_weights(orig, new, lowpass_filter_width=6, rolloff=0.99):
    """torchaudio-style windowed-sinc polyphase filter bank, shape (Wlen, new)."""
    base = min(orig, new) * rolloff
    width = int(math.ceil(lowpass_filter_width * orig / base))
    idx = jnp.arange(-width, width + orig, dtype=jnp.float32) / orig       # (Wlen,)
    phase = -jnp.arange(new, dtype=jnp.float32) / new                       # (new,)
    t = (phase[:, None] + idx[None, :]) * base
    t = jnp.clip(t, -lowpass_filter_width, lowpass_filter_width)
    window = jnp.cos(t * (math.pi / (2.0 * lowpass_filter_width))) ** 2
    tp = t * math.pi
    safe = jnp.where(tp == 0.0, 1.0, tp)
    sinc = jnp.where(tp == 0.0, 1.0, jnp.sin(safe) / safe)
    w = sinc * window * (base / orig)                                       # (new, Wlen)
    return w.T, width


def _polyphase_frames(x, orig, width, wlen):
    """frames[c, n, j] = x_zero_padded[c, n*orig + j]  -> (Cch, n_frames, Wlen)."""
    cch, T = x.shape
    n_frames = -(-T // orig)
    pad_total = n_frames * orig + 2 * width
    x_pad = jnp.pad(x, ((0, 0), (width, pad_total - width - T)))
    cols = [x_pad[:, j: j + (n_frames - 1) * orig + 1: orig] for j in range(wlen)]
    return jnp.stack(cols, axis=-1), n_frames


@functools.partial(jax.jit, static_argnames=("sr_in", "sr_out"))
def vad_downmix_resample(audio, sr_in, sr_out=16000):
    """The tensor math VAD.forward owns: channel-mean downmix + resample to 16 kHz."""
    cch, T = audio.shape
    if sr_in == sr_out:
        return jnp.mean(audio, axis=0)
    g = math.gcd(sr_in, sr_out)
    orig, new = sr_in // g, sr_out // g
    w, width = _sinc_resample_weights(orig, new)
    wlen = 2 * width + orig
    taps, n_frames = _polyphase_frames(audio, orig, width, wlen)
    out = pl.pallas_call(
        functools.partial(_resample_kernel, inv_cch=1.0 / cch),
        out_shape=jax.ShapeDtypeStruct((n_frames, new), jnp.float32),
    )(taps, w)
    target_len = -(-T * new // orig)
    return out.reshape(-1)[:target_len]


# ------------------------------ kernel wrappers ------------------------------
# All wrappers are called at trace time inside ONE outer jax.jit; the small jnp glue
# (reshape / dtype casts) is fused by XLA around the pallas_calls.

def conv_bn(x, w, b, gamma=None, beta=None, *, B, L, K,
            relu_before_bn=False, do_bn=False, relu_after_bn=False, eps=1e-5):
    """'same' Conv1d on (B*L, Cin) activations, fused with optional ReLU/BN/ReLU."""
    Cin = x.shape[-1]
    Cout = w.shape[-1]
    N = B * L
    if gamma is None:
        gamma = jnp.ones((Cout,), jnp.float32)
    if beta is None:
        beta = jnp.zeros((Cout,), jnp.float32)
    if K == 1:
        kern = functools.partial(_pointwise_conv_bn_kernel, do_bn=do_bn, eps=eps,
                                 relu_before_bn=relu_before_bn,
                                 relu_after_bn=relu_after_bn)
        wk = w.reshape(Cin, Cout).astype(jnp.bfloat16)
    else:
        kern = functools.partial(_convk_bn_kernel, L=L, K=K, do_bn=do_bn, eps=eps,
                                 relu_before_bn=relu_before_bn,
                                 relu_after_bn=relu_after_bn)
        wk = w.astype(jnp.bfloat16)
    return pl.pallas_call(
        kern, out_shape=jax.ShapeDtypeStruct((N, Cout), jnp.float32),
    )(x, wk, b.reshape(1, Cout), gamma.reshape(1, Cout), beta.reshape(1, Cout))


def res2_cascade(x, p, *, scale, width, L, eps=1e-5):
    N, C = x.shape
    w = jnp.stack(p["convs_w"], 0).astype(jnp.bfloat16).reshape(
        (scale - 1) * 3, width, width)
    b = jnp.stack(p["convs_b"], 0).reshape(scale - 1, 1, width)
    g = jnp.stack(p["bns_g"], 0).reshape(scale - 1, 1, width)
    bb = jnp.stack(p["bns_b"], 0).reshape(scale - 1, 1, width)
    kern = functools.partial(_res2_cascade_kernel, L=L, scale=scale,
                             width=width, eps=eps)
    return pl.pallas_call(
        kern, out_shape=jax.ShapeDtypeStruct((N, C), jnp.float32),
    )(x, w, b, g, bb)


def se_residual_relu(x, residual, w1, w2, *, B, L):
    C = x.shape[-1]
    Cr = w1.shape[1]
    x3 = x.reshape(B, L, C)
    r3 = residual.reshape(B, L, C)
    out = pl.pallas_call(
        _se_kernel,
        out_shape=jax.ShapeDtypeStruct((B, L, C), jnp.float32),
        grid=(B,),
        in_specs=[
            pl.BlockSpec((1, L, C), lambda i: (i, 0, 0)),
            pl.BlockSpec((1, L, C), lambda i: (i, 0, 0)),
            pl.BlockSpec((C, Cr), lambda i: (0, 0)),
            pl.BlockSpec((Cr, C), lambda i: (0, 0)),
        ],
        out_specs=pl.BlockSpec((1, L, C), lambda i: (i, 0, 0)),
        compiler_params=pltpu.CompilerParams(dimension_semantics=("parallel",)),
    )(x3, r3, w1.astype(jnp.bfloat16), w2.astype(jnp.bfloat16))
    return out.reshape(B * L, C)


def attention_logits(x, p, *, eps=1e-5):
    """attention = Conv1(BN(ReLU(Conv1(x)))) as one fused kernel -> (N, C) logits."""
    N, C = x.shape
    A = p["att_c1_w"].shape[-1]
    kern = functools.partial(_attention_logits_kernel, eps=eps)
    return pl.pallas_call(
        kern, out_shape=jax.ShapeDtypeStruct((N, C), jnp.float32),
    )(x,
      p["att_c1_w"].reshape(C, A).astype(jnp.bfloat16),
      p["att_c1_b"].reshape(1, A),
      p["att_bn_g"].reshape(1, A), p["att_bn_b"].reshape(1, A),
      p["att_c2_w"].reshape(A, C).astype(jnp.bfloat16),
      p["att_c2_b"].reshape(1, C))


def asp_pool(x, logits, *, B, L, eps=1e-5):
    C = x.shape[-1]
    x3 = x.reshape(B, L, C)
    lg3 = logits.reshape(B, L, C)
    kern = functools.partial(_asp_pool_kernel, eps=eps)
    out = pl.pallas_call(
        kern,
        out_shape=jax.ShapeDtypeStruct((B, 1, 2 * C), jnp.float32),
        grid=(B,),
        in_specs=[pl.BlockSpec((1, L, C), lambda i: (i, 0, 0)),
                  pl.BlockSpec((1, L, C), lambda i: (i, 0, 0))],
        out_specs=pl.BlockSpec((1, 1, 2 * C), lambda i: (i, 0, 0)),
        compiler_params=pltpu.CompilerParams(dimension_semantics=("parallel",)),
    )(x3, lg3)
    return out.reshape(B, 2 * C)


def tail(pooled, w, b, gamma, beta, *, eps_bn=1e-5, eps_l2=1e-8):
    M = pooled.shape[0]
    N = w.shape[1]
    kern = functools.partial(_tail_kernel, eps_bn=eps_bn, eps_l2=eps_l2)
    return pl.pallas_call(
        kern, out_shape=jax.ShapeDtypeStruct((M, N), jnp.float32),
    )(pooled, w.astype(jnp.bfloat16), b.reshape(1, N),
      gamma.reshape(1, N), beta.reshape(1, N))


# --------------------------- ECAPA_TDNN composition --------------------------

def se_res2_block(x, p, *, B, L, scale):
    """SERes2Block (in_channels == out_channels -> identity shortcut).  x: (B*L, C)."""
    C = x.shape[-1]
    width = C // scale
    residual = x
    out = conv_bn(x, p["conv1_w"], p["conv1_b"], p["bn1_g"], p["bn1_b"],
                  B=B, L=L, K=1, do_bn=True, relu_after_bn=True)        # conv1+bn1+ReLU
    out = res2_cascade(out, p, scale=scale, width=width, L=L)           # Res2 cascade
    out = conv_bn(out, p["conv3_w"], p["conv3_b"], p["bn3_g"], p["bn3_b"],
                  B=B, L=L, K=1, do_bn=True)                            # conv3+bn3
    out = se_residual_relu(out, residual, p["se_w1"], p["se_w2"], B=B, L=L)
    return out


@functools.partial(jax.jit, static_argnames=("scale",))
def ecapa_forward(x, p, scale=8):
    """ECAPA_TDNN forward.  x: (B, T, F) float32 -> (B, emb_dim) unit-norm."""
    B, T, F = x.shape
    h = conv_bn(x.reshape(B * T, F), p["conv1_w"], p["conv1_b"],
                p["bn1_g"], p["bn1_b"], B=B, L=T, K=5,
                relu_before_bn=True, do_bn=True)              # conv1(k=5)+ReLU+bn1
    h = se_res2_block(h, p["res1"], B=B, L=T, scale=scale)
    h = se_res2_block(h, p["res2"], B=B, L=T, scale=scale)
    h = se_res2_block(h, p["res3"], B=B, L=T, scale=scale)
    logits = attention_logits(h, p)                           # fused attention head
    pooled = asp_pool(h, logits, B=B, L=T)                    # (B, 2C)
    return tail(pooled, p["fc_w"], p["fc_b"], p["bn2_g"], p["bn2_b"])


# ------------------------------ parameter init -------------------------------

def init_params(key, F, C, emb, attn_ch, scale, se_ratio):
    width = C // scale
    cr = C // se_ratio
    keys = iter(jax.random.split(key, 256))

    def w(shape, s=0.1):
        return jax.random.normal(next(keys), shape, jnp.float32) * s

    ones = lambda n: jnp.ones((n,), jnp.float32)
    zeros = lambda n: jnp.zeros((n,), jnp.float32)

    def res_block():
        return dict(
            conv1_w=w((1, C, C)), conv1_b=zeros(C),
            bn1_g=ones(C), bn1_b=zeros(C),
            convs_w=[w((3, width, width)) for _ in range(scale - 1)],
            convs_b=[zeros(width) for _ in range(scale - 1)],
            bns_g=[ones(width) for _ in range(scale - 1)],
            bns_b=[zeros(width) for _ in range(scale - 1)],
            conv3_w=w((1, C, C)), conv3_b=zeros(C),
            bn3_g=ones(C), bn3_b=zeros(C),
            se_w1=w((C, cr)), se_w2=w((cr, C)),
        )

    return dict(
        conv1_w=w((5, F, C)), conv1_b=zeros(C),
        bn1_g=ones(C), bn1_b=zeros(C),
        res1=res_block(), res2=res_block(), res3=res_block(),
        att_c1_w=w((1, C, attn_ch)), att_c1_b=zeros(attn_ch),
        att_bn_g=ones(attn_ch), att_bn_b=zeros(attn_ch),
        att_c2_w=w((1, attn_ch, C)), att_c2_b=zeros(C),
        fc_w=w((2 * C, emb)), fc_b=zeros(emb),
        bn2_g=ones(emb), bn2_b=zeros(emb),
    )


# ----------------------------------- main ------------------------------------

if __name__ == "__main__":
    key = jax.random.PRNGKey(0)
    ka, kx, kp = jax.random.split(key, 3)

    # --- 1) VAD.forward's owned tensor compute: stereo -> mono + resample to 16 kHz ---
    SR_IN, T_AUDIO = 8000, 4096
    audio = 0.1 * jax.random.normal(ka, (2, T_AUDIO), jnp.float32)   # 2-channel, 8 kHz
    mono16k = jax.block_until_ready(vad_downmix_resample(audio, sr_in=SR_IN))
    assert mono16k.shape == (2 * T_AUDIO,), mono16k.shape
    assert bool(jnp.all(jnp.isfinite(mono16k)))

    # --- 2) Pipeline's dense forward: ECAPA speaker embedding on segment features ---
    # Small synthetic config consistent with ECAPA_TDNN(input_size, channels, emb_dim).
    # C = 128 so activation tiles are lane-dense (multiple of 128 lanes).
    B, T, F = 2, 16, 64           # batch of VAD segments, mel frames, mel features
    C, EMB = 128, 32              # channels, embedding dim
    ATTN, SCALE, SE_RATIO = 128, 8, 4

    x = jax.random.normal(kx, (B, T, F), jnp.float32)
    params = init_params(kp, F, C, EMB, ATTN, SCALE, SE_RATIO)

    emb = jax.block_until_ready(ecapa_forward(x, params, scale=SCALE))
    assert emb.shape == (B, EMB), emb.shape
    assert bool(jnp.all(jnp.isfinite(emb)))
    # embeddings are L2-normalized
    norms = jnp.sqrt(jnp.sum(emb * emb, axis=1))
    assert bool(jnp.all(jnp.abs(norms - 1.0) < 1e-3))
    print("KERNEL_OK")
</pallas_src>

<mosaic_0001>
module attributes {stable_mosaic.version = 11 : i64} {
  func.func @_resample_kernel(%arg0: memref<2x4096x15xf32, #tpu.memory_space<vmem>>, %arg1: memref<15x2xf32, #tpu.memory_space<vmem>>, %arg2: memref<4096x2xf32, #tpu.memory_space<vmem>>) attributes {dimension_semantics = [], scalar_prefetch = 0 : i64, scratch_operands = 0 : i64, tpu.core_type = #tpu.core_type<tc>} {
    %c0 = arith.constant 0 : index
    %c0_0 = arith.constant 0 : index
    %c0_1 = arith.constant 0 : index
    %0 = vector.load %arg0[%c0, %c0_0, %c0_1] : memref<2x4096x15xf32, #tpu.memory_space<vmem>>, vector<1x4096x15xf32>
    %1 = vector.shape_cast %0 : vector<1x4096x15xf32> to vector<4096x15xf32>
    %c1 = arith.constant 1 : index
    %c0_2 = arith.constant 0 : index
    %c0_3 = arith.constant 0 : index
    %2 = vector.load %arg0[%c1, %c0_2, %c0_3] : memref<2x4096x15xf32, #tpu.memory_space<vmem>>, vector<1x4096x15xf32>
    %3 = vector.shape_cast %2 : vector<1x4096x15xf32> to vector<4096x15xf32>
    %4 = arith.addf %1, %3 : vector<4096x15xf32>
    %cst = arith.constant 5.000000e-01 : f32
    %5 = vector.broadcast %cst : f32 to vector<4096x15xf32>
    %6 = arith.mulf %4, %5 : vector<4096x15xf32>
    %c0_4 = arith.constant 0 : index
    %c0_5 = arith.constant 0 : index
    %7 = vector.load %arg1[%c0_4, %c0_5] : memref<15x2xf32, #tpu.memory_space<vmem>>, vector<15x2xf32>
    %cst_6 = arith.constant dense<0.000000e+00> : vector<4096x2xf32>
    %8 = tpu.matmul %6, %7, %cst_6 {dimension_numbers = #tpu.dot_dimension_numbers<[1], [0], [0], [1], [0, 0, 1, 1], [], []>} : vector<4096x15xf32>, vector<15x2xf32>, vector<4096x2xf32> -> vector<4096x2xf32>
    %c0_7 = arith.constant 0 : index
    %c0_8 = arith.constant 0 : index
    %9 = vector.load %arg2[%c0_7, %c0_8] : memref<4096x2xf32, #tpu.memory_space<vmem>>, vector<4096x2xf32>
    tpu.vector_store %arg2[%c0_7, %c0_8], %8 {strides = array<i32>} : memref<4096x2xf32, #tpu.memory_space<vmem>>, vector<4096x2xf32>,
    return
  }
}

</mosaic_0001>

<llo_original>
// kernel: vad_downmix_resample.1
$region0: #{vad_downmix_resample.1}
  #allocation0 [shape = 'u32[]', space=smem, size = 0x4, offset = 0x4, fixed_abs, tag = 'smem constant byte address 0x4 - core index']
  #allocation1 [shape = 'u32[72,128]{1,0:T(1,128)}', space=vmem, size = 0x9000, scoped, tag = 'internal scratch']
  %s0 = inlined_call_operand.vmem [shape: f32[2,4096,15], index: 0, kind: input, shape index: {}]
  %s1 = inlined_call_operand.vmem [shape: f32[15,2], index: 1, kind: input, shape index: {}]
  %s2 = inlined_call_operand.vmem [shape: f32[4096,2], index: 2, kind: output, shape index: {}]
  %s3 = sld [smem:[#allocation0]]
  $region18: #{vad_downmix_resample.1} parent=0
    _
  %s5 = ssub.s32 1, %s3
  %s6 = scalar_select 0, %s5, %s3
  // Predicated region
  $region2: #{vad_downmix_resample.1} parent=0 // pred_check
    _
  $region3: #{vad_downmix_resample.1} parent=0 // pred_check_branch
    %8 = sbr.rel (0) target = $region5
  $region4: #{vad_downmix_resample.1} parent=0 // pred_region
    _
  $region5: #{vad_downmix_resample.1} parent=0 // pred_fallthru
    _
  // Predicated region
  $region6: #{vad_downmix_resample.1} parent=0 // pred_check
    _
  $region7: #{vad_downmix_resample.1} parent=0 // pred_check_branch
    %10 = sbr.rel (0) target = $region9
  $region8: #{vad_downmix_resample.1} parent=0 // pred_region
    _
  $region9: #{vad_downmix_resample.1} parent=0 // pred_fallthru
    _
  %v11 = vld [vmem:[%s0] sm:$0xff]
  %v12 = vld [vmem:[%s0 + $0x8] sm:$0xff]
  %v13 = vld [vmem:[%s0 + $0x10] sm:$0xff]
  %v14 = vld [vmem:[%s0 + $0x18] sm:$0xff]
  %v15 = vld [vmem:[%s0 + $0x20] sm:$0xff]
  %v16 = vld [vmem:[%s0 + $0x28] sm:$0xff]
  %v17 = vld [vmem:[%s0 + $0x30] sm:$0xff]
  %v18 = vld [vmem:[%s0 + $0x38] sm:$0xff]
  %v19 = vld [vmem:[%s0 + $0x40] sm:$0xff]
  %v20 = vld [vmem:[%s0 + $0x48] sm:$0xff]
  %v21 = vld [vmem:[%s0 + $0x50] sm:$0xff]
  %v22 = vld [vmem:[%s0 + $0x58] sm:$0xff]
  %v23 = vld [vmem:[%s0 + $0x60] sm:$0xff]
  %v24 = vld [vmem:[%s0 + $0x68] sm:$0xff]
  %v25 = vld [vmem:[%s0 + $0x70] sm:$0xff]
  %v26 = vld [vmem:[%s0 + $0x78] sm:$0xff]
  %v27 = vld [vmem:[%s0 + $0x80] sm:$0xff]
  %v28 = vld [vmem:[%s0 + $0x88] sm:$0xff]
  %v29 = vld [vmem:[%s0 + $0x90] sm:$0xff]
  %v30 = vld [vmem:[%s0 + $0x98] sm:$0xff]
  %v31 = vld [vmem:[%s0 + $0xa0] sm:$0xff]
  %v32 = vld [vmem:[%s0 + $0xa8] sm:$0xff]
  %v33 = vld [vmem:[%s0 + $0xb0] sm:$0xff]
  %v34 = vld [vmem:[%s0 + $0xb8] sm:$0xff]
  %v35 = vld [vmem:[%s0 + $0xc0] sm:$0xff]
  %v36 = vld [vmem:[%s0 + $0xc8] sm:$0xff]
  %v37 = vld [vmem:[%s0 + $0xd0] sm:$0xff]
  %v38 = vld [vmem:[%s0 + $0xd8] sm:$0xff]
  %v39 = vld [vmem:[%s0 + $0xe0] sm:$0xff]
  %v40 = vld [vmem:[%s0 + $0xe8] sm:$0xff]
  %v41 = vld [vmem:[%s0 + $0xf0] sm:$0xff]
  %v42 = vld [vmem:[%s0 + $0xf8] sm:$0xff]
  %v43 = vld [vmem:[%s0 + $0x100] sm:$0xff]
  %v44 = vld [vmem:[%s0 + $0x108] sm:$0xff]
  %v45 = vld [vmem:[%s0 + $0x110] sm:$0xff]
  %v46 = vld [vmem:[%s0 + $0x118] sm:$0xff]
  %v47 = vld [vmem:[%s0 + $0x120] sm:$0xff]
  %v48 = vld [vmem:[%s0 + $0x128] sm:$0xff]
  %v49 = vld [vmem:[%s0 + $0x130] sm:$0xff]
  %v50 = vld [vmem:[%s0 + $0x138] sm:$0xff]
  %v51 = vld [vmem:[%s0 + $0x140] sm:$0xff]
  %v52 = vld [vmem:[%s0 + $0x148] sm:$0xff]
  %v53 = vld [vmem:[%s0 + $0x150] sm:$0xff]
  %v54 = vld [vmem:[%s0 + $0x158] sm:$0xff]
  %v55 = vld [vmem:[%s0 + $0x160] sm:$0xff]
  %v56 = vld [vmem:[%s0 + $0x168] sm:$0xff]
  %v57 = vld [vmem:[%s0 + $0x170] sm:$0xff]
  %v58 = vld [vmem:[%s0 + $0x178] sm:$0xff]
  %v59 = vld [vmem:[%s0 + $0x180] sm:$0xff]
  %v60 = vld [vmem:[%s0 + $0x188] sm:$0xff]
  %v61 = vld [vmem:[%s0 + $0x190] sm:$0xff]
  %v62 = vld [vmem:[%s0 + $0x198] sm:$0xff]
  %v63 = vld [vmem:[%s0 + $0x1a0] sm:$0xff]
  %v64 = vld [vmem:[%s0 + $0x1a8] sm:$0xff]
  %v65 = vld [vmem:[%s0 + $0x1b0] sm:$0xff]
  %v66 = vld [vmem:[%s0 + $0x1b8] sm:$0xff]
  %v67 = vld [vmem:[%s0 + $0x1c0] sm:$0xff]
  %v68 = vld [vmem:[%s0 + $0x1c8] sm:$0xff]
  %v69 = vld [vmem:[%s0 + $0x1d0] sm:$0xff]
  %v70 = vld [vmem:[%s0 + $0x1d8] sm:$0xff]
  %v71 = vld [vmem:[%s0 + $0x1e0] sm:$0xff]
  %v72 = vld [vmem:[%s0 + $0x1e8] sm:$0xff]
  %v73 = vld [vmem:[%s0 + $0x1f0] sm:$0xff]
  %v74 = vld [vmem:[%s0 + $0x1f8] sm:$0xff]
  %v75 = vld [vmem:[%s0 + $0x200] sm:$0xff]
  %v76 = vld [vmem:[%s0 + $0x208] sm:$0xff]
  %v77 = vld [vmem:[%s0 + $0x210] sm:$0xff]
  %v78 = vld [vmem:[%s0 + $0x218] sm:$0xff]
  %v79 = vld [vmem:[%s0 + $0x220] sm:$0xff]
  %v80 = vld [vmem:[%s0 + $0x228] sm:$0xff]
  %v81 = vld [vmem:[%s0 + $0x230] sm:$0xff]
  %v82 = vld [vmem:[%s0 + $0x238] sm:$0xff]
  %v83 = vld [vmem:[%s0 + $0x240] sm:$0xff]
  %v84 = vld [vmem:[%s0 + $0x248] sm:$0xff]
  %v85 = vld [vmem:[%s0 + $0x250] sm:$0xff]
  %v86 = vld [vmem:[%s0 + $0x258] sm:$0xff]
  %v87 = vld [vmem:[%s0 + $0x260] sm:$0xff]
  %v88 = vld [vmem:[%s0 + $0x268] sm:$0xff]
  %v89 = vld [vmem:[%s0 + $0x270] sm:$0xff]
  %v90 = vld [vmem:[%s0 + $0x278] sm:$0xff]
  %v91 = vld [vmem:[%s0 + $0x280] sm:$0xff]
  %v92 = vld [vmem:[%s0 + $0x288] sm:$0xff]
  %v93 = vld [vmem:[%s0 + $0x290] sm:$0xff]
  %v94 = vld [vmem:[%s0 + $0x298] sm:$0xff]
  %v95 = vld [vmem:[%s0 + $0x2a0] sm:$0xff]
  %v96 = vld [vmem:[%s0 + $0x2a8] sm:$0xff]
  %v97 = vld [vmem:[%s0 + $0x2b0] sm:$0xff]
  %v98 = vld [vmem:[%s0 + $0x2b8] sm:$0xff]
  %v99 = vld [vmem:[%s0 + $0x2c0] sm:$0xff]
  %v100 = vld [vmem:[%s0 + $0x2c8] sm:$0xff]
  %v101 = vld [vmem:[%s0 + $0x2d0] sm:$0xff]
  %v102 = vld [vmem:[%s0 + $0x2d8] sm:$0xff]
  %v103 = vld [vmem:[%s0 + $0x2e0] sm:$0xff]
  %v104 = vld [vmem:[%s0 + $0x2e8] sm:$0xff]
  %v105 = vld [vmem:[%s0 + $0x2f0] sm:$0xff]
  %v106 = vld [vmem:[%s0 + $0x2f8] sm:$0xff]
  %v107 = vld [vmem:[%s0 + $0x300] sm:$0xff]
  %v108 = vld [vmem:[%s0 + $0x308] sm:$0xff]
  %v109 = vld [vmem:[%s0 + $0x310] sm:$0xff]
  %v110 = vld [vmem:[%s0 + $0x318] sm:$0xff]
  %v111 = vld [vmem:[%s0 + $0x320] sm:$0xff]
  %v112 = vld [vmem:[%s0 + $0x328] sm:$0xff]
  %v113 = vld [vmem:[%s0 + $0x330] sm:$0xff]
  %v114 = vld [vmem:[%s0 + $0x338] sm:$0xff]
  %v115 = vld [vmem:[%s0 + $0x340] sm:$0xff]
  %v116 = vld [vmem:[%s0 + $0x348] sm:$0xff]
  %v117 = vld [vmem:[%s0 + $0x350] sm:$0xff]
  %v118 = vld [vmem:[%s0 + $0x358] sm:$0xff]
  %v119 = vld [vmem:[%s0 + $0x360] sm:$0xff]
  %v120 = vld [vmem:[%s0 + $0x368] sm:$0xff]
  %v121 = vld [vmem:[%s0 + $0x370] sm:$0xff]
  %v122 = vld [vmem:[%s0 + $0x378] sm:$0xff]
  %v123 = vld [vmem:[%s0 + $0x380] sm:$0xff]
  %v124 = vld [vmem:[%s0 + $0x388] sm:$0xff]
  %v125 = vld [vmem:[%s0 + $0x390] sm:$0xff]
  %v126 = vld [vmem:[%s0 + $0x398] sm:$0xff]
  %v127 = vld [vmem:[%s0 + $0x3a0] sm:$0xff]
  %v128 = vld [vmem:[%s0 + $0x3a8] sm:$0xff]
  %v129 = vld [vmem:[%s0 + $0x3b0] sm:$0xff]
  %v130 = vld [vmem:[%s0 + $0x3b8] sm:$0xff]
  %v131 = vld [vmem:[%s0 + $0x3c0] sm:$0xff]
  %v132 = vld [vmem:[%s0 + $0x3c8] sm:$0xff]
  %v133 = vld [vmem:[%s0 + $0x3d0] sm:$0xff]
  %v134 = vld [vmem:[%s0 + $0x3d8] sm:$0xff]
  %v135 = vld [vmem:[%s0 + $0x3e0] sm:$0xff]
  %v136 = vld [vmem:[%s0 + $0x3e8] sm:$0xff]
  %v137 = vld [vmem:[%s0 + $0x3f0] sm:$0xff]
  %v138 = vld [vmem:[%s0 + $0x3f8] sm:$0xff]
  %v139 = vld [vmem:[%s0 + $0x400] sm:$0xff]
  %v140 = vld [vmem:[%s0 + $0x408] sm:$0xff]
  %v141 = vld [vmem:[%s0 + $0x410] sm:$0xff]
  %v142 = vld [vmem:[%s0 + $0x418] sm:$0xff]
  %v143 = vld [vmem:[%s0 + $0x420] sm:$0xff]
  %v144 = vld [vmem:[%s0 + $0x428] sm:$0xff]
  %v145 = vld [vmem:[%s0 + $0x430] sm:$0xff]
  %v146 = vld [vmem:[%s0 + $0x438] sm:$0xff]
  %v147 = vld [vmem:[%s0 + $0x440] sm:$0xff]
  %v148 = vld [vmem:[%s0 + $0x448] sm:$0xff]
  %v149 = vld [vmem:[%s0 + $0x450] sm:$0xff]
  %v150 = vld [vmem:[%s0 + $0x458] sm:$0xff]
  %v151 = vld [vmem:[%s0 + $0x460] sm:$0xff]
  %v152 = vld [vmem:[%s0 + $0x468] sm:$0xff]
  %v153 = vld [vmem:[%s0 + $0x470] sm:$0xff]
  %v154 = vld [vmem:[%s0 + $0x478] sm:$0xff]
  %v155 = vld [vmem:[%s0 + $0x480] sm:$0xff]
  %v156 = vld [vmem:[%s0 + $0x488] sm:$0xff]
  %v157 = vld [vmem:[%s0 + $0x490] sm:$0xff]
  %v158 = vld [vmem:[%s0 + $0x498] sm:$0xff]
  %v159 = vld [vmem:[%s0 + $0x4a0] sm:$0xff]
  %v160 = vld [vmem:[%s0 + $0x4a8] sm:$0xff]
  %v161 = vld [vmem:[%s0 + $0x4b0] sm:$0xff]
  %v162 = vld [vmem:[%s0 + $0x4b8] sm:$0xff]
  %v163 = vld [vmem:[%s0 + $0x4c0] sm:$0xff]
  %v164 = vld [vmem:[%s0 + $0x4c8] sm:$0xff]
  %v165 = vld [vmem:[%s0 + $0x4d0] sm:$0xff]
  %v166 = vld [vmem:[%s0 + $0x4d8] sm:$0xff]
  %v167 = vld [vmem:[%s0 + $0x4e0] sm:$0xff]
  %v168 = vld [vmem:[%s0 + $0x4e8] sm:$0xff]
  %v169 = vld [vmem:[%s0 + $0x4f0] sm:$0xff]
  %v170 = vld [vmem:[%s0 + $0x4f8] sm:$0xff]
  %v171 = vld [vmem:[%s0 + $0x500] sm:$0xff]
  %v172 = vld [vmem:[%s0 + $0x508] sm:$0xff]
  %v173 = vld [vmem:[%s0 + $0x510] sm:$0xff]
  %v174 = vld [vmem:[%s0 + $0x518] sm:$0xff]
  %v175 = vld [vmem:[%s0 + $0x520] sm:$0xff]
  %v176 = vld [vmem:[%s0 + $0x528] sm:$0xff]
  %v177 = vld [vmem:[%s0 + $0x530] sm:$0xff]
  %v178 = vld [vmem:[%s0 + $0x538] sm:$0xff]
  %v179 = vld [vmem:[%s0 + $0x540] sm:$0xff]
  %v180 = vld [vmem:[%s0 + $0x548] sm:$0xff]
  %v181 = vld [vmem:[%s0 + $0x550] sm:$0xff]
  %v182 = vld [vmem:[%s0 + $0x558] sm:$0xff]
  %v183 = vld [vmem:[%s0 + $0x560] sm:$0xff]
  %v184 = vld [vmem:[%s0 + $0x568] sm:$0xff]
  %v185 = vld [vmem:[%s0 + $0x570] sm:$0xff]
  %v186 = vld [vmem:[%s0 + $0x578] sm:$0xff]
  %v187 = vld [vmem:[%s0 + $0x580] sm:$0xff]
  %v188 = vld [vmem:[%s0 + $0x588] sm:$0xff]
  %v189 = vld [vmem:[%s0 + $0x590] sm:$0xff]
  %v190 = vld [vmem:[%s0 + $0x598] sm:$0xff]
  %v191 = vld [vmem:[%s0 + $0x5a0] sm:$0xff]
  %v192 = vld [vmem:[%s0 + $0x5a8] sm:$0xff]
  %v193 = vld [vmem:[%s0 + $0x5b0] sm:$0xff]
  %v194 = vld [vmem:[%s0 + $0x5b8] sm:$0xff]
  %v195 = vld [vmem:[%s0 + $0x5c0] sm:$0xff]
  %v196 = vld [vmem:[%s0 + $0x5c8] sm:$0xff]
  %v197 = vld [vmem:[%s0 + $0x5d0] sm:$0xff]
  %v198 = vld [vmem:[%s0 + $0x5d8] sm:$0xff]
  %v199 = vld [vmem:[%s0 + $0x5e0] sm:$0xff]
  %v200 = vld [vmem:[%s0 + $0x5e8] sm:$0xff]
  %v201 = vld [vmem:[%s0 + $0x5f0] sm:$0xff]
  %v202 = vld [vmem:[%s0 + $0x5f8] sm:$0xff]
  %v203 = vld [vmem:[%s0 + $0x600] sm:$0xff]
  %v204 = vld [vmem:[%s0 + $0x608] sm:$0xff]
  %v205 = vld [vmem:[%s0 + $0x610] sm:$0xff]
  %v206 = vld [vmem:[%s0 + $0x618] sm:$0xff]
  %v207 = vld [vmem:[%s0 + $0x620] sm:$0xff]
  %v208 = vld [vmem:[%s0 + $0x628] sm:$0xff]
  %v209 = vld [vmem:[%s0 + $0x630] sm:$0xff]
  %v210 = vld [vmem:[%s0 + $0x638] sm:$0xff]
  %v211 = vld [vmem:[%s0 + $0x640] sm:$0xff]
  %v212 = vld [vmem:[%s0 + $0x648] sm:$0xff]
  %v213 = vld [vmem:[%s0 + $0x650] sm:$0xff]
  %v214 = vld [vmem:[%s0 + $0x658] sm:$0xff]
  %v215 = vld [vmem:[%s0 + $0x660] sm:$0xff]
  %v216 = vld [vmem:[%s0 + $0x668] sm:$0xff]
  %v217 = vld [vmem:[%s0 + $0x670] sm:$0xff]
  %v218 = vld [vmem:[%s0 + $0x678] sm:$0xff]
  %v219 = vld [vmem:[%s0 + $0x680] sm:$0xff]
  %v220 = vld [vmem:[%s0 + $0x688] sm:$0xff]
  %v221 = vld [vmem:[%s0 + $0x690] sm:$0xff]
  %v222 = vld [vmem:[%s0 + $0x698] sm:$0xff]
  %v223 = vld [vmem:[%s0 + $0x6a0] sm:$0xff]
  %v224 = vld [vmem:[%s0 + $0x6a8] sm:$0xff]
  %v225 = vld [vmem:[%s0 + $0x6b0] sm:$0xff]
  %v226 = vld [vmem:[%s0 + $0x6b8] sm:$0xff]
  %v227 = vld [vmem:[%s0 + $0x6c0] sm:$0xff]
  %v228 = vld [vmem:[%s0 + $0x6c8] sm:$0xff]
  %v229 = vld [vmem:[%s0 + $0x6d0] sm:$0xff]
  %v230 = vld [vmem:[%s0 + $0x6d8] sm:$0xff]
  %v231 = vld [vmem:[%s0 + $0x6e0] sm:$0xff]
  %v232 = vld [vmem:[%s0 + $0x6e8] sm:$0xff]
  %v233 = vld [vmem:[%s0 + $0x6f0] sm:$0xff]
  %v234 = vld [vmem:[%s0 + $0x6f8] sm:$0xff]
  %v235 = vld [vmem:[%s0 + $0x700] sm:$0xff]
  %v236 = vld [vmem:[%s0 + $0x708] sm:$0xff]
  %v237 = vld [vmem:[%s0 + $0x710] sm:$0xff]
  %v238 = vld [vmem:[%s0 + $0x718] sm:$0xff]
  %v239 = vld [vmem:[%s0 + $0x720] sm:$0xff]
  %v240 = vld [vmem:[%s0 + $0x728] sm:$0xff]
  %v241 = vld [vmem:[%s0 + $0x730] sm:$0xff]
  %v242 = vld [vmem:[%s0 + $0x738] sm:$0xff]
  %v243 = vld [vmem:[%s0 + $0x740] sm:$0xff]
  %v244 = vld [vmem:[%s0 + $0x748] sm:$0xff]
  %v245 = vld [vmem:[%s0 + $0x750] sm:$0xff]
  %v246 = vld [vmem:[%s0 + $0x758] sm:$0xff]
  %v247 = vld [vmem:[%s0 + $0x760] sm:$0xff]
  %v248 = vld [vmem:[%s0 + $0x768] sm:$0xff]
  %v249 = vld [vmem:[%s0 + $0x770] sm:$0xff]
  %v250 = vld [vmem:[%s0 + $0x778] sm:$0xff]
  %v251 = vld [vmem:[%s0 + $0x780] sm:$0xff]
  %v252 = vld [vmem:[%s0 + $0x788] sm:$0xff]
  %v253 = vld [vmem:[%s0 + $0x790] sm:$0xff]
  %v254 = vld [vmem:[%s0 + $0x798] sm:$0xff]
  %v255 = vld [vmem:[%s0 + $0x7a0] sm:$0xff]
  %v256 = vld [vmem:[%s0 + $0x7a8] sm:$0xff]
  %v257 = vld [vmem:[%s0 + $0x7b0] sm:$0xff]
  %v258 = vld [vmem:[%s0 + $0x7b8] sm:$0xff]
  %v259 = vld [vmem:[%s0 + $0x7c0] sm:$0xff]
  %v260 = vld [vmem:[%s0 + $0x7c8] sm:$0xff]
  %v261 = vld [vmem:[%s0 + $0x7d0] sm:$0xff]
  %v262 = vld [vmem:[%s0 + $0x7d8] sm:$0xff]
  %v263 = vld [vmem:[%s0 + $0x7e0] sm:$0xff]
  %v264 = vld [vmem:[%s0 + $0x7e8] sm:$0xff]
  %v265 = vld [vmem:[%s0 + $0x7f0] sm:$0xff]
  %v266 = vld [vmem:[%s0 + $0x7f8] sm:$0xff]
  %v267 = vld [vmem:[%s0 + $0x800] sm:$0xff]
  %v268 = vld [vmem:[%s0 + $0x808] sm:$0xff]
  %v269 = vld [vmem:[%s0 + $0x810] sm:$0xff]
  %v270 = vld [vmem:[%s0 + $0x818] sm:$0xff]
  %v271 = vld [vmem:[%s0 + $0x820] sm:$0xff]
  %v272 = vld [vmem:[%s0 + $0x828] sm:$0xff]
  %v273 = vld [vmem:[%s0 + $0x830] sm:$0xff]
  %v274 = vld [vmem:[%s0 + $0x838] sm:$0xff]
  %v275 = vld [vmem:[%s0 + $0x840] sm:$0xff]
  %v276 = vld [vmem:[%s0 + $0x848] sm:$0xff]
  %v277 = vld [vmem:[%s0 + $0x850] sm:$0xff]
  %v278 = vld [vmem:[%s0 + $0x858] sm:$0xff]
  %v279 = vld [vmem:[%s0 + $0x860] sm:$0xff]
  %v280 = vld [vmem:[%s0 + $0x868] sm:$0xff]
  %v281 = vld [vmem:[%s0 + $0x870] sm:$0xff]
  %v282 = vld [vmem:[%s0 + $0x878] sm:$0xff]
  %v283 = vld [vmem:[%s0 + $0x880] sm:$0xff]
  %v284 = vld [vmem:[%s0 + $0x888] sm:$0xff]
  %v285 = vld [vmem:[%s0 + $0x890] sm:$0xff]
  %v286 = vld [vmem:[%s0 + $0x898] sm:$0xff]
  %v287 = vld [vmem:[%s0 + $0x8a0] sm:$0xff]
  %v288 = vld [vmem:[%s0 + $0x8a8] sm:$0xff]
  %v289 = vld [vmem:[%s0 + $0x8b0] sm:$0xff]
  %v290 = vld [vmem:[%s0 + $0x8b8] sm:$0xff]
  %v291 = vld [vmem:[%s0 + $0x8c0] sm:$0xff]
  %v292 = vld [vmem:[%s0 + $0x8c8] sm:$0xff]
  %v293 = vld [vmem:[%s0 + $0x8d0] sm:$0xff]
  %v294 = vld [vmem:[%s0 + $0x8d8] sm:$0xff]
  %v295 = vld [vmem:[%s0 + $0x8e0] sm:$0xff]
  %v296 = vld [vmem:[%s0 + $0x8e8] sm:$0xff]
  %v297 = vld [vmem:[%s0 + $0x8f0] sm:$0xff]
  %v298 = vld [vmem:[%s0 + $0x8f8] sm:$0xff]
  %v299 = vld [vmem:[%s0 + $0x900] sm:$0xff]
  %v300 = vld [vmem:[%s0 + $0x908] sm:$0xff]
  %v301 = vld [vmem:[%s0 + $0x910] sm:$0xff]
  %v302 = vld [vmem:[%s0 + $0x918] sm:$0xff]
  %v303 = vld [vmem:[%s0 + $0x920] sm:$0xff]
  %v304 = vld [vmem:[%s0 + $0x928] sm:$0xff]
  %v305 = vld [vmem:[%s0 + $0x930] sm:$0xff]
  %v306 = vld [vmem:[%s0 + $0x938] sm:$0xff]
  %v307 = vld [vmem:[%s0 + $0x940] sm:$0xff]
  %v308 = vld [vmem:[%s0 + $0x948] sm:$0xff]
  %v309 = vld [vmem:[%s0 + $0x950] sm:$0xff]
  %v310 = vld [vmem:[%s0 + $0x958] sm:$0xff]
  %v311 = vld [vmem:[%s0 + $0x960] sm:$0xff]
  %v312 = vld [vmem:[%s0 + $0x968] sm:$0xff]
  %v313 = vld [vmem:[%s0 + $0x970] sm:$0xff]
  %v314 = vld [vmem:[%s0 + $0x978] sm:$0xff]
  %v315 = vld [vmem:[%s0 + $0x980] sm:$0xff]
  %v316 = vld [vmem:[%s0 + $0x988] sm:$0xff]
  %v317 = vld [vmem:[%s0 + $0x990] sm:$0xff]
  %v318 = vld [vmem:[%s0 + $0x998] sm:$0xff]
  %v319 = vld [vmem:[%s0 + $0x9a0] sm:$0xff]
  %v320 = vld [vmem:[%s0 + $0x9a8] sm:$0xff]
  %v321 = vld [vmem:[%s0 + $0x9b0] sm:$0xff]
  %v322 = vld [vmem:[%s0 + $0x9b8] sm:$0xff]
  %v323 = vld [vmem:[%s0 + $0x9c0] sm:$0xff]
  %v324 = vld [vmem:[%s0 + $0x9c8] sm:$0xff]
  %v325 = vld [vmem:[%s0 + $0x9d0] sm:$0xff]
  %v326 = vld [vmem:[%s0 + $0x9d8] sm:$0xff]
  %v327 = vld [vmem:[%s0 + $0x9e0] sm:$0xff]
  %v328 = vld [vmem:[%s0 + $0x9e8] sm:$0xff]
  %v329 = vld [vmem:[%s0 + $0x9f0] sm:$0xff]
  %v330 = vld [vmem:[%s0 + $0x9f8] sm:$0xff]
  %v331 = vld [vmem:[%s0 + $0xa00] sm:$0xff]
  %v332 = vld [vmem:[%s0 + $0xa08] sm:$0xff]
  %v333 = vld [vmem:[%s0 + $0xa10] sm:$0xff]
  %v334 = vld [vmem:[%s0 + $0xa18] sm:$0xff]
  %v335 = vld [vmem:[%s0 + $0xa20] sm:$0xff]
  %v336 = vld [vmem:[%s0 + $0xa28] sm:$0xff]
  %v337 = vld [vmem:[%s0 + $0xa30] sm:$0xff]
  %v338 = vld [vmem:[%s0 + $0xa38] sm:$0xff]
  %v339 = vld [vmem:[%s0 + $0xa40] sm:$0xff]
  %v340 = vld [vmem:[%s0 + $0xa48] sm:$0xff]
  %v341 = vld [vmem:[%s0 + $0xa50] sm:$0xff]
  %v342 = vld [vmem:[%s0 + $0xa58] sm:$0xff]
  %v343 = vld [vmem:[%s0 + $0xa60] sm:$0xff]
  %v344 = vld [vmem:[%s0 + $0xa68] sm:$0xff]
  %v345 = vld [vmem:[%s0 + $0xa70] sm:$0xff]
  %v346 = vld [vmem:[%s0 + $0xa78] sm:$0xff]
  %v347 = vld [vmem:[%s0 + $0xa80] sm:$0xff]
  %v348 = vld [vmem:[%s0 + $0xa88] sm:$0xff]
  %v349 = vld [vmem:[%s0 + $0xa90] sm:$0xff]
  %v350 = vld [vmem:[%s0 + $0xa98] sm:$0xff]
  %v351 = vld [vmem:[%s0 + $0xaa0] sm:$0xff]
  %v352 = vld [vmem:[%s0 + $0xaa8] sm:$0xff]
  %v353 = vld [vmem:[%s0 + $0xab0] sm:$0xff]
  %v354 = vld [vmem:[%s0 + $0xab8] sm:$0xff]
  %v355 = vld [vmem:[%s0 + $0xac0] sm:$0xff]
  %v356 = vld [vmem:[%s0 + $0xac8] sm:$0xff]
  %v357 = vld [vmem:[%s0 + $0xad0] sm:$0xff]
  %v358 = vld [vmem:[%s0 + $0xad8] sm:$0xff]
  %v359 = vld [vmem:[%s0 + $0xae0] sm:$0xff]
  %v360 = vld [vmem:[%s0 + $0xae8] sm:$0xff]
  %v361 = vld [vmem:[%s0 + $0xaf0] sm:$0xff]
  %v362 = vld [vmem:[%s0 + $0xaf8] sm:$0xff]
  %v363 = vld [vmem:[%s0 + $0xb00] sm:$0xff]
  %v364 = vld [vmem:[%s0 + $0xb08] sm:$0xff]
  %v365 = vld [vmem:[%s0 + $0xb10] sm:$0xff]
  %v366 = vld [vmem:[%s0 + $0xb18] sm:$0xff]
  %v367 = vld [vmem:[%s0 + $0xb20] sm:$0xff]
  %v368 = vld [vmem:[%s0 + $0xb28] sm:$0xff]
  %v369 = vld [vmem:[%s0 + $0xb30] sm:$0xff]
  %v370 = vld [vmem:[%s0 + $0xb38] sm:$0xff]
  %v371 = vld [vmem:[%s0 + $0xb40] sm:$0xff]
  %v372 = vld [vmem:[%s0 + $0xb48] sm:$0xff]
  %v373 = vld [vmem:[%s0 + $0xb50] sm:$0xff]
  %v374 = vld [vmem:[%s0 + $0xb58] sm:$0xff]
  %v375 = vld [vmem:[%s0 + $0xb60] sm:$0xff]
  %v376 = vld [vmem:[%s0 + $0xb68] sm:$0xff]
  %v377 = vld [vmem:[%s0 + $0xb70] sm:$0xff]
  %v378 = vld [vmem:[%s0 + $0xb78] sm:$0xff]
  %v379 = vld [vmem:[%s0 + $0xb80] sm:$0xff]
  %v380 = vld [vmem:[%s0 + $0xb88] sm:$0xff]
  %v381 = vld [vmem:[%s0 + $0xb90] sm:$0xff]
  %v382 = vld [vmem:[%s0 + $0xb98] sm:$0xff]
  %v383 = vld [vmem:[%s0 + $0xba0] sm:$0xff]
  %v384 = vld [vmem:[%s0 + $0xba8] sm:$0xff]
  %v385 = vld [vmem:[%s0 + $0xbb0] sm:$0xff]
  %v386 = vld [vmem:[%s0 + $0xbb8] sm:$0xff]
  %v387 = vld [vmem:[%s0 + $0xbc0] sm:$0xff]
  %v388 = vld [vmem:[%s0 + $0xbc8] sm:$0xff]
  %v389 = vld [vmem:[%s0 + $0xbd0] sm:$0xff]
  %v390 = vld [vmem:[%s0 + $0xbd8] sm:$0xff]
  %v391 = vld [vmem:[%s0 + $0xbe0] sm:$0xff]
  %v392 = vld [vmem:[%s0 + $0xbe8] sm:$0xff]
  %v393 = vld [vmem:[%s0 + $0xbf0] sm:$0xff]
  %v394 = vld [vmem:[%s0 + $0xbf8] sm:$0xff]
  %v395 = vld [vmem:[%s0 + $0xc00] sm:$0xff]
  %v396 = vld [vmem:[%s0 + $0xc08] sm:$0xff]
  %v397 = vld [vmem:[%s0 + $0xc10] sm:$0xff]
  %v398 = vld [vmem:[%s0 + $0xc18] sm:$0xff]
  %v399 = vld [vmem:[%s0 + $0xc20] sm:$0xff]
  %v400 = vld [vmem:[%s0 + $0xc28] sm:$0xff]
  %v401 = vld [vmem:[%s0 + $0xc30] sm:$0xff]
  %v402 = vld [vmem:[%s0 + $0xc38] sm:$0xff]
  %v403 = vld [vmem:[%s0 + $0xc40] sm:$0xff]
  %v404 = vld [vmem:[%s0 + $0xc48] sm:$0xff]
  %v405 = vld [vmem:[%s0 + $0xc50] sm:$0xff]
  %v406 = vld [vmem:[%s0 + $0xc58] sm:$0xff]
  %v407 = vld [vmem:[%s0 + $0xc60] sm:$0xff]
  %v408 = vld [vmem:[%s0 + $0xc68] sm:$0xff]
  %v409 = vld [vmem:[%s0 + $0xc70] sm:$0xff]
  %v410 = vld [vmem:[%s0 + $0xc78] sm:$0xff]
  %v411 = vld [vmem:[%s0 + $0xc80] sm:$0xff]
  %v412 = vld [vmem:[%s0 + $0xc88] sm:$0xff]
  %v413 = vld [vmem:[%s0 + $0xc90] sm:$0xff]
  %v414 = vld [vmem:[%s0 + $0xc98] sm:$0xff]
  %v415 = vld [vmem:[%s0 + $0xca0] sm:$0xff]
  %v416 = vld [vmem:[%s0 + $0xca8] sm:$0xff]
  %v417 = vld [vmem:[%s0 + $0xcb0] sm:$0xff]
  %v418 = vld [vmem:[%s0 + $0xcb8] sm:$0xff]
  %v419 = vld [vmem:[%s0 + $0xcc0] sm:$0xff]
  %v420 = vld [vmem:[%s0 + $0xcc8] sm:$0xff]
  %v421 = vld [vmem:[%s0 + $0xcd0] sm:$0xff]
  %v422 = vld [vmem:[%s0 + $0xcd8] sm:$0xff]
  %v423 = vld [vmem:[%s0 + $0xce0] sm:$0xff]
  %v424 = vld [vmem:[%s0 + $0xce8] sm:$0xff]
  %v425 = vld [vmem:[%s0 + $0xcf0] sm:$0xff]
  %v426 = vld [vmem:[%s0 + $0xcf8] sm:$0xff]
  %v427 = vld [vmem:[%s0 + $0xd00] sm:$0xff]
  %v428 = vld [vmem:[%s0 + $0xd08] sm:$0xff]
  %v429 = vld [vmem:[%s0 + $0xd10] sm:$0xff]
  %v430 = vld [vmem:[%s0 + $0xd18] sm:$0xff]
  %v431 = vld [vmem:[%s0 + $0xd20] sm:$0xff]
  %v432 = vld [vmem:[%s0 + $0xd28] sm:$0xff]
  %v433 = vld [vmem:[%s0 + $0xd30] sm:$0xff]
  %v434 = vld [vmem:[%s0 + $0xd38] sm:$0xff]
  %v435 = vld [vmem:[%s0 + $0xd40] sm:$0xff]
  %v436 = vld [vmem:[%s0 + $0xd48] sm:$0xff]
  %v437 = vld [vmem:[%s0 + $0xd50] sm:$0xff]
  %v438 = vld [vmem:[%s0 + $0xd58] sm:$0xff]
  %v439 = vld [vmem:[%s0 + $0xd60] sm:$0xff]
  %v440 = vld [vmem:[%s0 + $0xd68] sm:$0xff]
  %v441 = vld [vmem:[%s0 + $0xd70] sm:$0xff]
  %v442 = vld [vmem:[%s0 + $0xd78] sm:$0xff]
  %v443 = vld [vmem:[%s0 + $0xd80] sm:$0xff]
  %v444 = vld [vmem:[%s0 + $0xd88] sm:$0xff]
  %v445 = vld [vmem:[%s0 + $0xd90] sm:$0xff]
  %v446 = vld [vmem:[%s0 + $0xd98] sm:$0xff]
  %v447 = vld [vmem:[%s0 + $0xda0] sm:$0xff]
  %v448 = vld [vmem:[%s0 + $0xda8] sm:$0xff]
  %v449 = vld [vmem:[%s0 + $0xdb0] sm:$0xff]
  %v450 = vld [vmem:[%s0 + $0xdb8] sm:$0xff]
  %v451 = vld [vmem:[%s0 + $0xdc0] sm:$0xff]
  %v452 = vld [vmem:[%s0 + $0xdc8] sm:$0xff]
  %v453 = vld [vmem:[%s0 + $0xdd0] sm:$0xff]
  %v454 = vld [vmem:[%s0 + $0xdd8] sm:$0xff]
  %v455 = vld [vmem:[%s0 + $0xde0] sm:$0xff]
  %v456 = vld [vmem:[%s0 + $0xde8] sm:$0xff]
  %v457 = vld [vmem:[%s0 + $0xdf0] sm:$0xff]
  %v458 = vld [vmem:[%s0 + $0xdf8] sm:$0xff]
  %v459 = vld [vmem:[%s0 + $0xe00] sm:$0xff]
  %v460 = vld [vmem:[%s0 + $0xe08] sm:$0xff]
  %v461 = vld [vmem:[%s0 + $0xe10] sm:$0xff]
  %v462 = vld [vmem:[%s0 + $0xe18] sm:$0xff]
  %v463 = vld [vmem:[%s0 + $0xe20] sm:$0xff]
  %v464 = vld [vmem:[%s0 + $0xe28] sm:$0xff]
  %v465 = vld [vmem:[%s0 + $0xe30] sm:$0xff]
  %v466 = vld [vmem:[%s0 + $0xe38] sm:$0xff]
  %v467 = vld [vmem:[%s0 + $0xe40] sm:$0xff]
  %v468 = vld [vmem:[%s0 + $0xe48] sm:$0xff]
  %v469 = vld [vmem:[%s0 + $0xe50] sm:$0xff]
  %v470 = vld [vmem:[%s0 + $0xe58] sm:$0xff]
  %v471 = vld [vmem:[%s0 + $0xe60] sm:$0xff]
  %v472 = vld [vmem:[%s0 + $0xe68] sm:$0xff]
  %v473 = vld [vmem:[%s0 + $0xe70] sm:$0xff]
  %v474 = vld [vmem:[%s0 + $0xe78] sm:$0xff]
  %v475 = vld [vmem:[%s0 + $0xe80] sm:$0xff]
  %v476 = vld [vmem:[%s0 + $0xe88] sm:$0xff]
  %v477 = vld [vmem:[%s0 + $0xe90] sm:$0xff]
  %v478 = vld [vmem:[%s0 + $0xe98] sm:$0xff]
  %v479 = vld [vmem:[%s0 + $0xea0] sm:$0xff]
  %v480 = vld [vmem:[%s0 + $0xea8] sm:$0xff]
  %v481 = vld [vmem:[%s0 + $0xeb0] sm:$0xff]
  %v482 = vld [vmem:[%s0 + $0xeb8] sm:$0xff]
  %v483 = vld [vmem:[%s0 + $0xec0] sm:$0xff]
  %v484 = vld [vmem:[%s0 + $0xec8] sm:$0xff]
  %v485 = vld [vmem:[%s0 + $0xed0] sm:$0xff]
  %v486 = vld [vmem:[%s0 + $0xed8] sm:$0xff]
  %v487 = vld [vmem:[%s0 + $0xee0] sm:$0xff]
  %v488 = vld [vmem:[%s0 + $0xee8] sm:$0xff]
  %v489 = vld [vmem:[%s0 + $0xef0] sm:$0xff]
  %v490 = vld [vmem:[%s0 + $0xef8] sm:$0xff]
  %v491 = vld [vmem:[%s0 + $0xf00] sm:$0xff]
  %v492 = vld [vmem:[%s0 + $0xf08] sm:$0xff]
  %v493 = vld [vmem:[%s0 + $0xf10] sm:$0xff]
  %v494 = vld [vmem:[%s0 + $0xf18] sm:$0xff]
  %v495 = vld [vmem:[%s0 + $0xf20] sm:$0xff]
  %v496 = vld [vmem:[%s0 + $0xf28] sm:$0xff]
  %v497 = vld [vmem:[%s0 + $0xf30] sm:$0xff]
  %v498 = vld [vmem:[%s0 + $0xf38] sm:$0xff]
  %v499 = vld [vmem:[%s0 + $0xf40] sm:$0xff]
  %v500 = vld [vmem:[%s0 + $0xf48] sm:$0xff]
  %v501 = vld [vmem:[%s0 + $0xf50] sm:$0xff]
  %v502 = vld [vmem:[%s0 + $0xf58] sm:$0xff]
  %v503 = vld [vmem:[%s0 + $0xf60] sm:$0xff]
  %v504 = vld [vmem:[%s0 + $0xf68] sm:$0xff]
  %v505 = vld [vmem:[%s0 + $0xf70] sm:$0xff]
  %v506 = vld [vmem:[%s0 + $0xf78] sm:$0xff]
  %v507 = vld [vmem:[%s0 + $0xf80] sm:$0xff]
  %v508 = vld [vmem:[%s0 + $0xf88] sm:$0xff]
  %v509 = vld [vmem:[%s0 + $0xf90] sm:$0xff]
  %v510 = vld [vmem:[%s0 + $0xf98] sm:$0xff]
  %v511 = vld [vmem:[%s0 + $0xfa0] sm:$0xff]
  %v512 = vld [vmem:[%s0 + $0xfa8] sm:$0xff]
  %v513 = vld [vmem:[%s0 + $0xfb0] sm:$0xff]
  %v514 = vld [vmem:[%s0 + $0xfb8] sm:$0xff]
  %v515 = vld [vmem:[%s0 + $0xfc0] sm:$0xff]
  %v516 = vld [vmem:[%s0 + $0xfc8] sm:$0xff]
  %v517 = vld [vmem:[%s0 + $0xfd0] sm:$0xff]
  %v518 = vld [vmem:[%s0 + $0xfd8] sm:$0xff]
  %v519 = vld [vmem:[%s0 + $0xfe0] sm:$0xff]
  %v520 = vld [vmem:[%s0 + $0xfe8] sm:$0xff]
  %v521 = vld [vmem:[%s0 + $0xff0] sm:$0xff]
  %v522 = vld [vmem:[%s0 + $0xff8] sm:$0xff]
  %s523 = scalar_lea.vmem %s0, 4096
  %v524 = vld [vmem:[%s523] sm:$0xff]
  %v525 = vld [vmem:[%s523 + $0x8] sm:$0xff]
  %v526 = vld [vmem:[%s523 + $0x10] sm:$0xff]
  %v527 = vld [vmem:[%s523 + $0x18] sm:$0xff]
  %v528 = vld [vmem:[%s523 + $0x20] sm:$0xff]
  %v529 = vld [vmem:[%s523 + $0x28] sm:$0xff]
  %v530 = vld [vmem:[%s523 + $0x30] sm:$0xff]
  %v531 = vld [vmem:[%s523 + $0x38] sm:$0xff]
  %v532 = vld [vmem:[%s523 + $0x40] sm:$0xff]
  %v533 = vld [vmem:[%s523 + $0x48] sm:$0xff]
  %v534 = vld [vmem:[%s523 + $0x50] sm:$0xff]
  %v535 = vld [vmem:[%s523 + $0x58] sm:$0xff]
  %v536 = vld [vmem:[%s523 + $0x60] sm:$0xff]
  %v537 = vld [vmem:[%s523 + $0x68] sm:$0xff]
  %v538 = vld [vmem:[%s523 + $0x70] sm:$0xff]
  %v539 = vld [vmem:[%s523 + $0x78] sm:$0xff]
  %v540 = vld [vmem:[%s523 + $0x80] sm:$0xff]
  %v541 = vld [vmem:[%s523 + $0x88] sm:$0xff]
  %v542 = vld [vmem:[%s523 + $0x90] sm:$0xff]
  %v543 = vld [vmem:[%s523 + $0x98] sm:$0xff]
  %v544 = vld [vmem:[%s523 + $0xa0] sm:$0xff]
  %v545 = vld [vmem:[%s523 + $0xa8] sm:$0xff]
  %v546 = vld [vmem:[%s523 + $0xb0] sm:$0xff]
  %v547 = vld [vmem:[%s523 + $0xb8] sm:$0xff]
  %v548 = vld [vmem:[%s523 + $0xc0] sm:$0xff]
  %v549 = vld [vmem:[%s523 + $0xc8] sm:$0xff]
  %v550 = vld [vmem:[%s523 + $0xd0] sm:$0xff]
  %v551 = vld [vmem:[%s523 + $0xd8] sm:$0xff]
  %v552 = vld [vmem:[%s523 + $0xe0] sm:$0xff]
  %v553 = vld [vmem:[%s523 + $0xe8] sm:$0xff]
  %v554 = vld [vmem:[%s523 + $0xf0] sm:$0xff]
  %v555 = vld [vmem:[%s523 + $0xf8] sm:$0xff]
  %v556 = vld [vmem:[%s523 + $0x100] sm:$0xff]
  %v557 = vld [vmem:[%s523 + $0x108] sm:$0xff]
  %v558 = vld [vmem:[%s523 + $0x110] sm:$0xff]
  %v559 = vld [vmem:[%s523 + $0x118] sm:$0xff]
  %v560 = vld [vmem:[%s523 + $0x120] sm:$0xff]
  %v561 = vld [vmem:[%s523 + $0x128] sm:$0xff]
  %v562 = vld [vmem:[%s523 + $0x130] sm:$0xff]
  %v563 = vld [vmem:[%s523 + $0x138] sm:$0xff]
  %v564 = vld [vmem:[%s523 + $0x140] sm:$0xff]
  %v565 = vld [vmem:[%s523 + $0x148] sm:$0xff]
  %v566 = vld [vmem:[%s523 + $0x150] sm:$0xff]
  %v567 = vld [vmem:[%s523 + $0x158] sm:$0xff]
  %v568 = vld [vmem:[%s523 + $0x160] sm:$0xff]
  %v569 = vld [vmem:[%s523 + $0x168] sm:$0xff]
  %v570 = vld [vmem:[%s523 + $0x170] sm:$0xff]
  %v571 = vld [vmem:[%s523 + $0x178] sm:$0xff]
  %v572 = vld [vmem:[%s523 + $0x180] sm:$0xff]
  %v573 = vld [vmem:[%s523 + $0x188] sm:$0xff]
  %v574 = vld [vmem:[%s523 + $0x190] sm:$0xff]
  %v575 = vld [vmem:[%s523 + $0x198] sm:$0xff]
  %v576 = vld [vmem:[%s523 + $0x1a0] sm:$0xff]
  %v577 = vld [vmem:[%s523 + $0x1a8] sm:$0xff]
  %v578 = vld [vmem:[%s523 + $0x1b0] sm:$0xff]
  %v579 = vld [vmem:[%s523 + $0x1b8] sm:$0xff]
  %v580 = vld [vmem:[%s523 + $0x1c0] sm:$0xff]
  %v581 = vld [vmem:[%s523 + $0x1c8] sm:$0xff]
  %v582 = vld [vmem:[%s523 + $0x1d0] sm:$0xff]
  %v583 = vld [vmem:[%s523 + $0x1d8] sm:$0xff]
  %v584 = vld [vmem:[%s523 + $0x1e0] sm:$0xff]
  %v585 = vld [vmem:[%s523 + $0x1e8] sm:$0xff]
  %v586 = vld [vmem:[%s523 + $0x1f0] sm:$0xff]
  %v587 = vld [vmem:[%s523 + $0x1f8] sm:$0xff]
  %v588 = vld [vmem:[%s523 + $0x200] sm:$0xff]
  %v589 = vld [vmem:[%s523 + $0x208] sm:$0xff]
  %v590 = vld [vmem:[%s523 + $0x210] sm:$0xff]
  %v591 = vld [vmem:[%s523 + $0x218] sm:$0xff]
  %v592 = vld [vmem:[%s523 + $0x220] sm:$0xff]
  %v593 = vld [vmem:[%s523 + $0x228] sm:$0xff]
  %v594 = vld [vmem:[%s523 + $0x230] sm:$0xff]
  %v595 = vld [vmem:[%s523 + $0x238] sm:$0xff]
  %v596 = vld [vmem:[%s523 + $0x240] sm:$0xff]
  %v597 = vld [vmem:[%s523 + $0x248] sm:$0xff]
  %v598 = vld [vmem:[%s523 + $0x250] sm:$0xff]
  %v599 = vld [vmem:[%s523 + $0x258] sm:$0xff]
  %v600 = vld [vmem:[%s523 + $0x260] sm:$0xff]
  %v601 = vld [vmem:[%s523 + $0x268] sm:$0xff]
  %v602 = vld [vmem:[%s523 + $0x270] sm:$0xff]
  %v603 = vld [vmem:[%s523 + $0x278] sm:$0xff]
  %v604 = vld [vmem:[%s523 + $0x280] sm:$0xff]
  %v605 = vld [vmem:[%s523 + $0x288] sm:$0xff]
  %v606 = vld [vmem:[%s523 + $0x290] sm:$0xff]
  %v607 = vld [vmem:[%s523 + $0x298] sm:$0xff]
  %v608 = vld [vmem:[%s523 + $0x2a0] sm:$0xff]
  %v609 = vld [vmem:[%s523 + $0x2a8] sm:$0xff]
  %v610 = vld [vmem:[%s523 + $0x2b0] sm:$0xff]
  %v611 = vld [vmem:[%s523 + $0x2b8] sm:$0xff]
  %v612 = vld [vmem:[%s523 + $0x2c0] sm:$0xff]
  %v613 = vld [vmem:[%s523 + $0x2c8] sm:$0xff]
  %v614 = vld [vmem:[%s523 + $0x2d0] sm:$0xff]
  %v615 = vld [vmem:[%s523 + $0x2d8] sm:$0xff]
  %v616 = vld [vmem:[%s523 + $0x2e0] sm:$0xff]
  %v617 = vld [vmem:[%s523 + $0x2e8] sm:$0xff]
  %v618 = vld [vmem:[%s523 + $0x2f0] sm:$0xff]
  %v619 = vld [vmem:[%s523 + $0x2f8] sm:$0xff]
  %v620 = vld [vmem:[%s523 + $0x300] sm:$0xff]
  %v621 = vld [vmem:[%s523 + $0x308] sm:$0xff]
  %v622 = vld [vmem:[%s523 + $0x310] sm:$0xff]
  %v623 = vld [vmem:[%s523 + $0x318] sm:$0xff]
  %v624 = vld [vmem:[%s523 + $0x320] sm:$0xff]
  %v625 = vld [vmem:[%s523 + $0x328] sm:$0xff]
  %v626 = vld [vmem:[%s523 + $0x330] sm:$0xff]
  %v627 = vld [vmem:[%s523 + $0x338] sm:$0xff]
  %v628 = vld [vmem:[%s523 + $0x340] sm:$0xff]
  %v629 = vld [vmem:[%s523 + $0x348] sm:$0xff]
  %v630 = vld [vmem:[%s523 + $0x350] sm:$0xff]
  %v631 = vld [vmem:[%s523 + $0x358] sm:$0xff]
  %v632 = vld [vmem:[%s523 + $0x360] sm:$0xff]
  %v633 = vld [vmem:[%s523 + $0x368] sm:$0xff]
  %v634 = vld [vmem:[%s523 + $0x370] sm:$0xff]
  %v635 = vld [vmem:[%s523 + $0x378] sm:$0xff]
  %v636 = vld [vmem:[%s523 + $0x380] sm:$0xff]
  %v637 = vld [vmem:[%s523 + $0x388] sm:$0xff]
  %v638 = vld [vmem:[%s523 + $0x390] sm:$0xff]
  %v639 = vld [vmem:[%s523 + $0x398] sm:$0xff]
  %v640 = vld [vmem:[%s523 + $0x3a0] sm:$0xff]
  %v641 = vld [vmem:[%s523 + $0x3a8] sm:$0xff]
  %v642 = vld [vmem:[%s523 + $0x3b0] sm:$0xff]
  %v643 = vld [vmem:[%s523 + $0x3b8] sm:$0xff]
  %v644 = vld [vmem:[%s523 + $0x3c0] sm:$0xff]
  %v645 = vld [vmem:[%s523 + $0x3c8] sm:$0xff]
  %v646 = vld [vmem:[%s523 + $0x3d0] sm:$0xff]
  %v647 = vld [vmem:[%s523 + $0x3d8] sm:$0xff]
  %v648 = vld [vmem:[%s523 + $0x3e0] sm:$0xff]
  %v649 = vld [vmem:[%s523 + $0x3e8] sm:$0xff]
  %v650 = vld [vmem:[%s523 + $0x3f0] sm:$0xff]
  %v651 = vld [vmem:[%s523 + $0x3f8] sm:$0xff]
  %v652 = vld [vmem:[%s523 + $0x400] sm:$0xff]
  %v653 = vld [vmem:[%s523 + $0x408] sm:$0xff]
  %v654 = vld [vmem:[%s523 + $0x410] sm:$0xff]
  %v655 = vld [vmem:[%s523 + $0x418] sm:$0xff]
  %v656 = vld [vmem:[%s523 + $0x420] sm:$0xff]
  %v657 = vld [vmem:[%s523 + $0x428] sm:$0xff]
  %v658 = vld [vmem:[%s523 + $0x430] sm:$0xff]
  %v659 = vld [vmem:[%s523 + $0x438] sm:$0xff]
  %v660 = vld [vmem:[%s523 + $0x440] sm:$0xff]
  %v661 = vld [vmem:[%s523 + $0x448] sm:$0xff]
  %v662 = vld [vmem:[%s523 + $0x450] sm:$0xff]
  %v663 = vld [vmem:[%s523 + $0x458] sm:$0xff]
  %v664 = vld [vmem:[%s523 + $0x460] sm:$0xff]
  %v665 = vld [vmem:[%s523 + $0x468] sm:$0xff]
  %v666 = vld [vmem:[%s523 + $0x470] sm:$0xff]
  %v667 = vld [vmem:[%s523 + $0x478] sm:$0xff]
  %v668 = vld [vmem:[%s523 + $0x480] sm:$0xff]
  %v669 = vld [vmem:[%s523 + $0x488] sm:$0xff]
  %v670 = vld [vmem:[%s523 + $0x490] sm:$0xff]
  %v671 = vld [vmem:[%s523 + $0x498] sm:$0xff]
  %v672 = vld [vmem:[%s523 + $0x4a0] sm:$0xff]
  %v673 = vld [vmem:[%s523 + $0x4a8] sm:$0xff]
  %v674 = vld [vmem:[%s523 + $0x4b0] sm:$0xff]
  %v675 = vld [vmem:[%s523 + $0x4b8] sm:$0xff]
  %v676 = vld [vmem:[%s523 + $0x4c0] sm:$0xff]
  %v677 = vld [vmem:[%s523 + $0x4c8] sm:$0xff]
  %v678 = vld [vmem:[%s523 + $0x4d0] sm:$0xff]
  %v679 = vld [vmem:[%s523 + $0x4d8] sm:$0xff]
  %v680 = vld [vmem:[%s523 + $0x4e0] sm:$0xff]
  %v681 = vld [vmem:[%s523 + $0x4e8] sm:$0xff]
  %v682 = vld [vmem:[%s523 + $0x4f0] sm:$0xff]
  %v683 = vld [vmem:[%s523 + $0x4f8] sm:$0xff]
  %v684 = vld [vmem:[%s523 + $0x500] sm:$0xff]
  %v685 = vld [vmem:[%s523 + $0x508] sm:$0xff]
  %v686 = vld [vmem:[%s523 + $0x510] sm:$0xff]
  %v687 = vld [vmem:[%s523 + $0x518] sm:$0xff]
  %v688 = vld [vmem:[%s523 + $0x520] sm:$0xff]
  %v689 = vld [vmem:[%s523 + $0x528] sm:$0xff]
  %v690 = vld [vmem:[%s523 + $0x530] sm:$0xff]
  %v691 = vld [vmem:[%s523 + $0x538] sm:$0xff]
  %v692 = vld [vmem:[%s523 + $0x540] sm:$0xff]
  %v693 = vld [vmem:[%s523 + $0x548] sm:$0xff]
  %v694 = vld [vmem:[%s523 + $0x550] sm:$0xff]
  %v695 = vld [vmem:[%s523 + $0x558] sm:$0xff]
  %v696 = vld [vmem:[%s523 + $0x560] sm:$0xff]
  %v697 = vld [vmem:[%s523 + $0x568] sm:$0xff]
  %v698 = vld [vmem:[%s523 + $0x570] sm:$0xff]
  %v699 = vld [vmem:[%s523 + $0x578] sm:$0xff]
  %v700 = vld [vmem:[%s523 + $0x580] sm:$0xff]
  %v701 = vld [vmem:[%s523 + $0x588] sm:$0xff]
  %v702 = vld [vmem:[%s523 + $0x590] sm:$0xff]
  %v703 = vld [vmem:[%s523 + $0x598] sm:$0xff]
  %v704 = vld [vmem:[%s523 + $0x5a0] sm:$0xff]
  %v705 = vld [vmem:[%s523 + $0x5a8] sm:$0xff]
  %v706 = vld [vmem:[%s523 + $0x5b0] sm:$0xff]
  %v707 = vld [vmem:[%s523 + $0x5b8] sm:$0xff]
  %v708 = vld [vmem:[%s523 + $0x5c0] sm:$0xff]
  %v709 = vld [vmem:[%s523 + $0x5c8] sm:$0xff]
  %v710 = vld [vmem:[%s523 + $0x5d0] sm:$0xff]
  %v711 = vld [vmem:[%s523 + $0x5d8] sm:$0xff]
  %v712 = vld [vmem:[%s523 + $0x5e0] sm:$0xff]
  %v713 = vld [vmem:[%s523 + $0x5e8] sm:$0xff]
  %v714 = vld [vmem:[%s523 + $0x5f0] sm:$0xff]
  %v715 = vld [vmem:[%s523 + $0x5f8] sm:$0xff]
  %v716 = vld [vmem:[%s523 + $0x600] sm:$0xff]
  %v717 = vld [vmem:[%s523 + $0x608] sm:$0xff]
  %v718 = vld [vmem:[%s523 + $0x610] sm:$0xff]
  %v719 = vld [vmem:[%s523 + $0x618] sm:$0xff]
  %v720 = vld [vmem:[%s523 + $0x620] sm:$0xff]
  %v721 = vld [vmem:[%s523 + $0x628] sm:$0xff]
  %v722 = vld [vmem:[%s523 + $0x630] sm:$0xff]
  %v723 = vld [vmem:[%s523 + $0x638] sm:$0xff]
  %v724 = vld [vmem:[%s523 + $0x640] sm:$0xff]
  %v725 = vld [vmem:[%s523 + $0x648] sm:$0xff]
  %v726 = vld [vmem:[%s523 + $0x650] sm:$0xff]
  %v727 = vld [vmem:[%s523 + $0x658] sm:$0xff]
  %v728 = vld [vmem:[%s523 + $0x660] sm:$0xff]
  %v729 = vld [vmem:[%s523 + $0x668] sm:$0xff]
  %v730 = vld [vmem:[%s523 + $0x670] sm:$0xff]
  %v731 = vld [vmem:[%s523 + $0x678] sm:$0xff]
  %v732 = vld [vmem:[%s523 + $0x680] sm:$0xff]
  %v733 = vld [vmem:[%s523 + $0x688] sm:$0xff]
  %v734 = vld [vmem:[%s523 + $0x690] sm:$0xff]
  %v735 = vld [vmem:[%s523 + $0x698] sm:$0xff]
  %v736 = vld [vmem:[%s523 + $0x6a0] sm:$0xff]
  %v737 = vld [vmem:[%s523 + $0x6a8] sm:$0xff]
  %v738 = vld [vmem:[%s523 + $0x6b0] sm:$0xff]
  %v739 = vld [vmem:[%s523 + $0x6b8] sm:$0xff]
  %v740 = vld [vmem:[%s523 + $0x6c0] sm:$0xff]
  %v741 = vld [vmem:[%s523 + $0x6c8] sm:$0xff]
  %v742 = vld [vmem:[%s523 + $0x6d0] sm:$0xff]
  %v743 = vld [vmem:[%s523 + $0x6d8] sm:$0xff]
  %v744 = vld [vmem:[%s523 + $0x6e0] sm:$0xff]
  %v745 = vld [vmem:[%s523 + $0x6e8] sm:$0xff]
  %v746 = vld [vmem:[%s523 + $0x6f0] sm:$0xff]
  %v747 = vld [vmem:[%s523 + $0x6f8] sm:$0xff]
  %v748 = vld [vmem:[%s523 + $0x700] sm:$0xff]
  %v749 = vld [vmem:[%s523 + $0x708] sm:$0xff]
  %v750 = vld [vmem:[%s523 + $0x710] sm:$0xff]
  %v751 = vld [vmem:[%s523 + $0x718] sm:$0xff]
  %v752 = vld [vmem:[%s523 + $0x720] sm:$0xff]
  %v753 = vld [vmem:[%s523 + $0x728] sm:$0xff]
  %v754 = vld [vmem:[%s523 + $0x730] sm:$0xff]
  %v755 = vld [vmem:[%s523 + $0x738] sm:$0xff]
  %v756 = vld [vmem:[%s523 + $0x740] sm:$0xff]
  %v757 = vld [vmem:[%s523 + $0x748] sm:$0xff]
  %v758 = vld [vmem:[%s523 + $0x750] sm:$0xff]
  %v759 = vld [vmem:[%s523 + $0x758] sm:$0xff]
  %v760 = vld [vmem:[%s523 + $0x760] sm:$0xff]
  %v761 = vld [vmem:[%s523 + $0x768] sm:$0xff]
  %v762 = vld [vmem:[%s523 + $0x770] sm:$0xff]
  %v763 = vld [vmem:[%s523 + $0x778] sm:$0xff]
  %v764 = vld [vmem:[%s523 + $0x780] sm:$0xff]
  %v765 = vld [vmem:[%s523 + $0x788] sm:$0xff]
  %v766 = vld [vmem:[%s523 + $0x790] sm:$0xff]
  %v767 = vld [vmem:[%s523 + $0x798] sm:$0xff]
  %v768 = vld [vmem:[%s523 + $0x7a0] sm:$0xff]
  %v769 = vld [vmem:[%s523 + $0x7a8] sm:$0xff]
  %v770 = vld [vmem:[%s523 + $0x7b0] sm:$0xff]
  %v771 = vld [vmem:[%s523 + $0x7b8] sm:$0xff]
  %v772 = vld [vmem:[%s523 + $0x7c0] sm:$0xff]
  %v773 = vld [vmem:[%s523 + $0x7c8] sm:$0xff]
  %v774 = vld [vmem:[%s523 + $0x7d0] sm:$0xff]
  %v775 = vld [vmem:[%s523 + $0x7d8] sm:$0xff]
  %v776 = vld [vmem:[%s523 + $0x7e0] sm:$0xff]
  %v777 = vld [vmem:[%s523 + $0x7e8] sm:$0xff]
  %v778 = vld [vmem:[%s523 + $0x7f0] sm:$0xff]
  %v779 = vld [vmem:[%s523 + $0x7f8] sm:$0xff]
  %v780 = vld [vmem:[%s523 + $0x800] sm:$0xff]
  %v781 = vld [vmem:[%s523 + $0x808] sm:$0xff]
  %v782 = vld [vmem:[%s523 + $0x810] sm:$0xff]
  %v783 = vld [vmem:[%s523 + $0x818] sm:$0xff]
  %v784 = vld [vmem:[%s523 + $0x820] sm:$0xff]
  %v785 = vld [vmem:[%s523 + $0x828] sm:$0xff]
  %v786 = vld [vmem:[%s523 + $0x830] sm:$0xff]
  %v787 = vld [vmem:[%s523 + $0x838] sm:$0xff]
  %v788 = vld [vmem:[%s523 + $0x840] sm:$0xff]
  %v789 = vld [vmem:[%s523 + $0x848] sm:$0xff]
  %v790 = vld [vmem:[%s523 + $0x850] sm:$0xff]
  %v791 = vld [vmem:[%s523 + $0x858] sm:$0xff]
  %v792 = vld [vmem:[%s523 + $0x860] sm:$0xff]
  %v793 = vld [vmem:[%s523 + $0x868] sm:$0xff]
  %v794 = vld [vmem:[%s523 + $0x870] sm:$0xff]
  %v795 = vld [vmem:[%s523 + $0x878] sm:$0xff]
  %v796 = vld [vmem:[%s523 + $0x880] sm:$0xff]
  %v797 = vld [vmem:[%s523 + $0x888] sm:$0xff]
  %v798 = vld [vmem:[%s523 + $0x890] sm:$0xff]
  %v799 = vld [vmem:[%s523 + $0x898] sm:$0xff]
  %v800 = vld [vmem:[%s523 + $0x8a0] sm:$0xff]
  %v801 = vld [vmem:[%s523 + $0x8a8] sm:$0xff]
  %v802 = vld [vmem:[%s523 + $0x8b0] sm:$0xff]
  %v803 = vld [vmem:[%s523 + $0x8b8] sm:$0xff]
  %v804 = vld [vmem:[%s523 + $0x8c0] sm:$0xff]
  %v805 = vld [vmem:[%s523 + $0x8c8] sm:$0xff]
  %v806 = vld [vmem:[%s523 + $0x8d0] sm:$0xff]
  %v807 = vld [vmem:[%s523 + $0x8d8] sm:$0xff]
  %v808 = vld [vmem:[%s523 + $0x8e0] sm:$0xff]
  %v809 = vld [vmem:[%s523 + $0x8e8] sm:$0xff]
  %v810 = vld [vmem:[%s523 + $0x8f0] sm:$0xff]
  %v811 = vld [vmem:[%s523 + $0x8f8] sm:$0xff]
  %v812 = vld [vmem:[%s523 + $0x900] sm:$0xff]
  %v813 = vld [vmem:[%s523 + $0x908] sm:$0xff]
  %v814 = vld [vmem:[%s523 + $0x910] sm:$0xff]
  %v815 = vld [vmem:[%s523 + $0x918] sm:$0xff]
  %v816 = vld [vmem:[%s523 + $0x920] sm:$0xff]
  %v817 = vld [vmem:[%s523 + $0x928] sm:$0xff]
  %v818 = vld [vmem:[%s523 + $0x930] sm:$0xff]
  %v819 = vld [vmem:[%s523 + $0x938] sm:$0xff]
  %v820 = vld [vmem:[%s523 + $0x940] sm:$0xff]
  %v821 = vld [vmem:[%s523 + $0x948] sm:$0xff]
  %v822 = vld [vmem:[%s523 + $0x950] sm:$0xff]
  %v823 = vld [vmem:[%s523 + $0x958] sm:$0xff]
  %v824 = vld [vmem:[%s523 + $0x960] sm:$0xff]
  %v825 = vld [vmem:[%s523 + $0x968] sm:$0xff]
  %v826 = vld [vmem:[%s523 + $0x970] sm:$0xff]
  %v827 = vld [vmem:[%s523 + $0x978] sm:$0xff]
  %v828 = vld [vmem:[%s523 + $0x980] sm:$0xff]
  %v829 = vld [vmem:[%s523 + $0x988] sm:$0xff]
  %v830 = vld [vmem:[%s523 + $0x990] sm:$0xff]
  %v831 = vld [vmem:[%s523 + $0x998] sm:$0xff]
  %v832 = vld [vmem:[%s523 + $0x9a0] sm:$0xff]
  %v833 = vld [vmem:[%s523 + $0x9a8] sm:$0xff]
  %v834 = vld [vmem:[%s523 + $0x9b0] sm:$0xff]
  %v835 = vld [vmem:[%s523 + $0x9b8] sm:$0xff]
  %v836 = vld [vmem:[%s523 + $0x9c0] sm:$0xff]
  %v837 = vld [vmem:[%s523 + $0x9c8] sm:$0xff]
  %v838 = vld [vmem:[%s523 + $0x9d0] sm:$0xff]
  %v839 = vld [vmem:[%s523 + $0x9d8] sm:$0xff]
  %v840 = vld [vmem:[%s523 + $0x9e0] sm:$0xff]
  %v841 = vld [vmem:[%s523 + $0x9e8] sm:$0xff]
  %v842 = vld [vmem:[%s523 + $0x9f0] sm:$0xff]
  %v843 = vld [vmem:[%s523 + $0x9f8] sm:$0xff]
  %v844 = vld [vmem:[%s523 + $0xa00] sm:$0xff]
  %v845 = vld [vmem:[%s523 + $0xa08] sm:$0xff]
  %v846 = vld [vmem:[%s523 + $0xa10] sm:$0xff]
  %v847 = vld [vmem:[%s523 + $0xa18] sm:$0xff]
  %v848 = vld [vmem:[%s523 + $0xa20] sm:$0xff]
  %v849 = vld [vmem:[%s523 + $0xa28] sm:$0xff]
  %v850 = vld [vmem:[%s523 + $0xa30] sm:$0xff]
  %v851 = vld [vmem:[%s523 + $0xa38] sm:$0xff]
  %v852 = vld [vmem:[%s523 + $0xa40] sm:$0xff]
  %v853 = vld [vmem:[%s523 + $0xa48] sm:$0xff]
  %v854 = vld [vmem:[%s523 + $0xa50] sm:$0xff]
  %v855 = vld [vmem:[%s523 + $0xa58] sm:$0xff]
  %v856 = vld [vmem:[%s523 + $0xa60] sm:$0xff]
  %v857 = vld [vmem:[%s523 + $0xa68] sm:$0xff]
  %v858 = vld [vmem:[%s523 + $0xa70] sm:$0xff]
  %v859 = vld [vmem:[%s523 + $0xa78] sm:$0xff]
  %v860 = vld [vmem:[%s523 + $0xa80] sm:$0xff]
  %v861 = vld [vmem:[%s523 + $0xa88] sm:$0xff]
  %v862 = vld [vmem:[%s523 + $0xa90] sm:$0xff]
  %v863 = vld [vmem:[%s523 + $0xa98] sm:$0xff]
  %v864 = vld [vmem:[%s523 + $0xaa0] sm:$0xff]
  %v865 = vld [vmem:[%s523 + $0xaa8] sm:$0xff]
  %v866 = vld [vmem:[%s523 + $0xab0] sm:$0xff]
  %v867 = vld [vmem:[%s523 + $0xab8] sm:$0xff]
  %v868 = vld [vmem:[%s523 + $0xac0] sm:$0xff]
  %v869 = vld [vmem:[%s523 + $0xac8] sm:$0xff]
  %v870 = vld [vmem:[%s523 + $0xad0] sm:$0xff]
  %v871 = vld [vmem:[%s523 + $0xad8] sm:$0xff]
  %v872 = vld [vmem:[%s523 + $0xae0] sm:$0xff]
  %v873 = vld [vmem:[%s523 + $0xae8] sm:$0xff]
  %v874 = vld [vmem:[%s523 + $0xaf0] sm:$0xff]
  %v875 = vld [vmem:[%s523 + $0xaf8] sm:$0xff]
  %v876 = vld [vmem:[%s523 + $0xb00] sm:$0xff]
  %v877 = vld [vmem:[%s523 + $0xb08] sm:$0xff]
  %v878 = vld [vmem:[%s523 + $0xb10] sm:$0xff]
  %v879 = vld [vmem:[%s523 + $0xb18] sm:$0xff]
  %v880 = vld [vmem:[%s523 + $0xb20] sm:$0xff]
  %v881 = vld [vmem:[%s523 + $0xb28] sm:$0xff]
  %v882 = vld [vmem:[%s523 + $0xb30] sm:$0xff]
  %v883 = vld [vmem:[%s523 + $0xb38] sm:$0xff]
  %v884 = vld [vmem:[%s523 + $0xb40] sm:$0xff]
  %v885 = vld [vmem:[%s523 + $0xb48] sm:$0xff]
  %v886 = vld [vmem:[%s523 + $0xb50] sm:$0xff]
  %v887 = vld [vmem:[%s523 + $0xb58] sm:$0xff]
  %v888 = vld [vmem:[%s523 + $0xb60] sm:$0xff]
  %v889 = vld [vmem:[%s523 + $0xb68] sm:$0xff]
  %v890 = vld [vmem:[%s523 + $0xb70] sm:$0xff]
  %v891 = vld [vmem:[%s523 + $0xb78] sm:$0xff]
  %v892 = vld [vmem:[%s523 + $0xb80] sm:$0xff]
  %v893 = vld [vmem:[%s523 + $0xb88] sm:$0xff]
  %v894 = vld [vmem:[%s523 + $0xb90] sm:$0xff]
  %v895 = vld [vmem:[%s523 + $0xb98] sm:$0xff]
  %v896 = vld [vmem:[%s523 + $0xba0] sm:$0xff]
  %v897 = vld [vmem:[%s523 + $0xba8] sm:$0xff]
  %v898 = vld [vmem:[%s523 + $0xbb0] sm:$0xff]
  %v899 = vld [vmem:[%s523 + $0xbb8] sm:$0xff]
  %v900 = vld [vmem:[%s523 + $0xbc0] sm:$0xff]
  %v901 = vld [vmem:[%s523 + $0xbc8] sm:$0xff]
  %v902 = vld [vmem:[%s523 + $0xbd0] sm:$0xff]
  %v903 = vld [vmem:[%s523 + $0xbd8] sm:$0xff]
  %v904 = vld [vmem:[%s523 + $0xbe0] sm:$0xff]
  %v905 = vld [vmem:[%s523 + $0xbe8] sm:$0xff]
  %v906 = vld [vmem:[%s523 + $0xbf0] sm:$0xff]
  %v907 = vld [vmem:[%s523 + $0xbf8] sm:$0xff]
  %v908 = vld [vmem:[%s523 + $0xc00] sm:$0xff]
  %v909 = vld [vmem:[%s523 + $0xc08] sm:$0xff]
  %v910 = vld [vmem:[%s523 + $0xc10] sm:$0xff]
  %v911 = vld [vmem:[%s523 + $0xc18] sm:$0xff]
  %v912 = vld [vmem:[%s523 + $0xc20] sm:$0xff]
  %v913 = vld [vmem:[%s523 + $0xc28] sm:$0xff]
  %v914 = vld [vmem:[%s523 + $0xc30] sm:$0xff]
  %v915 = vld [vmem:[%s523 + $0xc38] sm:$0xff]
  %v916 = vld [vmem:[%s523 + $0xc40] sm:$0xff]
  %v917 = vld [vmem:[%s523 + $0xc48] sm:$0xff]
  %v918 = vld [vmem:[%s523 + $0xc50] sm:$0xff]
  %v919 = vld [vmem:[%s523 + $0xc58] sm:$0xff]
  %v920 = vld [vmem:[%s523 + $0xc60] sm:$0xff]
  %v921 = vld [vmem:[%s523 + $0xc68] sm:$0xff]
  %v922 = vld [vmem:[%s523 + $0xc70] sm:$0xff]
  %v923 = vld [vmem:[%s523 + $0xc78] sm:$0xff]
  %v924 = vld [vmem:[%s523 + $0xc80] sm:$0xff]
  %v925 = vld [vmem:[%s523 + $0xc88] sm:$0xff]
  %v926 = vld [vmem:[%s523 + $0xc90] sm:$0xff]
  %v927 = vld [vmem:[%s523 + $0xc98] sm:$0xff]
  %v928 = vld [vmem:[%s523 + $0xca0] sm:$0xff]
  %v929 = vld [vmem:[%s523 + $0xca8] sm:$0xff]
  %v930 = vld [vmem:[%s523 + $0xcb0] sm:$0xff]
  %v931 = vld [vmem:[%s523 + $0xcb8] sm:$0xff]
  %v932 = vld [vmem:[%s523 + $0xcc0] sm:$0xff]
  %v933 = vld [vmem:[%s523 + $0xcc8] sm:$0xff]
  %v934 = vld [vmem:[%s523 + $0xcd0] sm:$0xff]
  %v935 = vld [vmem:[%s523 + $0xcd8] sm:$0xff]
  %v936 = vld [vmem:[%s523 + $0xce0] sm:$0xff]
  %v937 = vld [vmem:[%s523 + $0xce8] sm:$0xff]
  %v938 = vld [vmem:[%s523 + $0xcf0] sm:$0xff]
  %v939 = vld [vmem:[%s523 + $0xcf8] sm:$0xff]
  %v940 = vld [vmem:[%s523 + $0xd00] sm:$0xff]
  %v941 = vld [vmem:[%s523 + $0xd08] sm:$0xff]
  %v942 = vld [vmem:[%s523 + $0xd10] sm:$0xff]
  %v943 = vld [vmem:[%s523 + $0xd18] sm:$0xff]
  %v944 = vld [vmem:[%s523 + $0xd20] sm:$0xff]
  %v945 = vld [vmem:[%s523 + $0xd28] sm:$0xff]
  %v946 = vld [vmem:[%s523 + $0xd30] sm:$0xff]
  %v947 = vld [vmem:[%s523 + $0xd38] sm:$0xff]
  %v948 = vld [vmem:[%s523 + $0xd40] sm:$0xff]
  %v949 = vld [vmem:[%s523 + $0xd48] sm:$0xff]
  %v950 = vld [vmem:[%s523 + $0xd50] sm:$0xff]
  %v951 = vld [vmem:[%s523 + $0xd58] sm:$0xff]
  %v952 = vld [vmem:[%s523 + $0xd60] sm:$0xff]
  %v953 = vld [vmem:[%s523 + $0xd68] sm:$0xff]
  %v954 = vld [vmem:[%s523 + $0xd70] sm:$0xff]
  %v955 = vld [vmem:[%s523 + $0xd78] sm:$0xff]
  %v956 = vld [vmem:[%s523 + $0xd80] sm:$0xff]
  %v957 = vld [vmem:[%s523 + $0xd88] sm:$0xff]
  %v958 = vld [vmem:[%s523 + $0xd90] sm:$0xff]
  %v959 = vld [vmem:[%s523 + $0xd98] sm:$0xff]
  %v960 = vld [vmem:[%s523 + $0xda0] sm:$0xff]
  %v961 = vld [vmem:[%s523 + $0xda8] sm:$0xff]
  %v962 = vld [vmem:[%s523 + $0xdb0] sm:$0xff]
  %v963 = vld [vmem:[%s523 + $0xdb8] sm:$0xff]
  %v964 = vld [vmem:[%s523 + $0xdc0] sm:$0xff]
  %v965 = vld [vmem:[%s523 + $0xdc8] sm:$0xff]
  %v966 = vld [vmem:[%s523 + $0xdd0] sm:$0xff]
  %v967 = vld [vmem:[%s523 + $0xdd8] sm:$0xff]
  %v968 = vld [vmem:[%s523 + $0xde0] sm:$0xff]
  %v969 = vld [vmem:[%s523 + $0xde8] sm:$0xff]
  %v970 = vld [vmem:[%s523 + $0xdf0] sm:$0xff]
  %v971 = vld [vmem:[%s523 + $0xdf8] sm:$0xff]
  %v972 = vld [vmem:[%s523 + $0xe00] sm:$0xff]
  %v973 = vld [vmem:[%s523 + $0xe08] sm:$0xff]
  %v974 = vld [vmem:[%s523 + $0xe10] sm:$0xff]
  %v975 = vld [vmem:[%s523 + $0xe18] sm:$0xff]
  %v976 = vld [vmem:[%s523 + $0xe20] sm:$0xff]
  %v977 = vld [vmem:[%s523 + $0xe28] sm:$0xff]
  %v978 = vld [vmem:[%s523 + $0xe30] sm:$0xff]
  %v979 = vld [vmem:[%s523 + $0xe38] sm:$0xff]
  %v980 = vld [vmem:[%s523 + $0xe40] sm:$0xff]
  %v981 = vld [vmem:[%s523 + $0xe48] sm:$0xff]
  %v982 = vld [vmem:[%s523 + $0xe50] sm:$0xff]
  %v983 = vld [vmem:[%s523 + $0xe58] sm:$0xff]
  %v984 = vld [vmem:[%s523 + $0xe60] sm:$0xff]
  %v985 = vld [vmem:[%s523 + $0xe68] sm:$0xff]
  %v986 = vld [vmem:[%s523 + $0xe70] sm:$0xff]
  %v987 = vld [vmem:[%s523 + $0xe78] sm:$0xff]
  %v988 = vld [vmem:[%s523 + $0xe80] sm:$0xff]
  %v989 = vld [vmem:[%s523 + $0xe88] sm:$0xff]
  %v990 = vld [vmem:[%s523 + $0xe90] sm:$0xff]
  %v991 = vld [vmem:[%s523 + $0xe98] sm:$0xff]
  %v992 = vld [vmem:[%s523 + $0xea0] sm:$0xff]
  %v993 = vld [vmem:[%s523 + $0xea8] sm:$0xff]
  %v994 = vld [vmem:[%s523 + $0xeb0] sm:$0xff]
  %v995 = vld [vmem:[%s523 + $0xeb8] sm:$0xff]
  %v996 = vld [vmem:[%s523 + $0xec0] sm:$0xff]
  %v997 = vld [vmem:[%s523 + $0xec8] sm:$0xff]
  %v998 = vld [vmem:[%s523 + $0xed0] sm:$0xff]
  %v999 = vld [vmem:[%s523 + $0xed8] sm:$0xff]
  %v1000 = vld [vmem:[%s523 + $0xee0] sm:$0xff]
  %v1001 = vld [vmem:[%s523 + $0xee8] sm:$0xff]
  %v1002 = vld [vmem:[%s523 + $0xef0] sm:$0xff]
  %v1003 = vld [vmem:[%s523 + $0xef8] sm:$0xff]
  %v1004 = vld [vmem:[%s523 + $0xf00] sm:$0xff]
  %v1005 = vld [vmem:[%s523 + $0xf08] sm:$0xff]
  %v1006 = vld [vmem:[%s523 + $0xf10] sm:$0xff]
  %v1007 = vld [vmem:[%s523 + $0xf18] sm:$0xff]
  %v1008 = vld [vmem:[%s523 + $0xf20] sm:$0xff]
  %v1009 = vld [vmem:[%s523 + $0xf28] sm:$0xff]
  %v1010 = vld [vmem:[%s523 + $0xf30] sm:$0xff]
  %v1011 = vld [vmem:[%s523 + $0xf38] sm:$0xff]
  %v1012 = vld [vmem:[%s523 + $0xf40] sm:$0xff]
  %v1013 = vld [vmem:[%s523 + $0xf48] sm:$0xff]
  %v1014 = vld [vmem:[%s523 + $0xf50] sm:$0xff]
  %v1015 = vld [vmem:[%s523 + $0xf58] sm:$0xff]
  %v1016 = vld [vmem:[%s523 + $0xf60] sm:$0xff]
  %v1017 = vld [vmem:[%s523 + $0xf68] sm:$0xff]
  %v1018 = vld [vmem:[%s523 + $0xf70] sm:$0xff]
  %v1019 = vld [vmem:[%s523 + $0xf78] sm:$0xff]
  %v1020 = vld [vmem:[%s523 + $0xf80] sm:$0xff]
  %v1021 = vld [vmem:[%s523 + $0xf88] sm:$0xff]
  %v1022 = vld [vmem:[%s523 + $0xf90] sm:$0xff]
  %v1023 = vld [vmem:[%s523 + $0xf98] sm:$0xff]
  %v1024 = vld [vmem:[%s523 + $0xfa0] sm:$0xff]
  %v1025 = vld [vmem:[%s523 + $0xfa8] sm:$0xff]
  %v1026 = vld [vmem:[%s523 + $0xfb0] sm:$0xff]
  %v1027 = vld [vmem:[%s523 + $0xfb8] sm:$0xff]
  %v1028 = vld [vmem:[%s523 + $0xfc0] sm:$0xff]
  %v1029 = vld [vmem:[%s523 + $0xfc8] sm:$0xff]
  %v1030 = vld [vmem:[%s523 + $0xfd0] sm:$0xff]
  %v1031 = vld [vmem:[%s523 + $0xfd8] sm:$0xff]
  %v1032 = vld [vmem:[%s523 + $0xfe0] sm:$0xff]
  %v1033 = vld [vmem:[%s523 + $0xfe8] sm:$0xff]
  %v1034 = vld [vmem:[%s523 + $0xff0] sm:$0xff]
  %v1035 = vld [vmem:[%s523 + $0xff8] sm:$0xff]
  %v1036 = vadd.f32 %v11, %v524
  %v1037 = vadd.f32 %v12, %v525
  %v1038 = vadd.f32 %v13, %v526
  %v1039 = vadd.f32 %v14, %v527
  %v1040 = vadd.f32 %v15, %v528
  %v1041 = vadd.f32 %v16, %v529
  %v1042 = vadd.f32 %v17, %v530
  %v1043 = vadd.f32 %v18, %v531
  %v1044 = vadd.f32 %v19, %v532
  %v1045 = vadd.f32 %v20, %v533
  %v1046 = vadd.f32 %v21, %v534
  %v1047 = vadd.f32 %v22, %v535
  %v1048 = vadd.f32 %v23, %v536
  %v1049 = vadd.f32 %v24, %v537
  %v1050 = vadd.f32 %v25, %v538
  %v1051 = vadd.f32 %v26, %v539
  %v1052 = vadd.f32 %v27, %v540
  %v1053 = vadd.f32 %v28, %v541
  %v1054 = vadd.f32 %v29, %v542
  %v1055 = vadd.f32 %v30, %v543
  %v1056 = vadd.f32 %v31, %v544
  %v1057 = vadd.f32 %v32, %v545
  %v1058 = vadd.f32 %v33, %v546
  %v1059 = vadd.f32 %v34, %v547
  %v1060 = vadd.f32 %v35, %v548
  %v1061 = vadd.f32 %v36, %v549
  %v1062 = vadd.f32 %v37, %v550
  %v1063 = vadd.f32 %v38, %v551
  %v1064 = vadd.f32 %v39, %v552
  %v1065 = vadd.f32 %v40, %v553
  %v1066 = vadd.f32 %v41, %v554
  %v1067 = vadd.f32 %v42, %v555
  %v1068 = vadd.f32 %v43, %v556
  %v1069 = vadd.f32 %v44, %v557
  %v1070 = vadd.f32 %v45, %v558
  %v1071 = vadd.f32 %v46, %v559
  %v1072 = vadd.f32 %v47, %v560
  %v1073 = vadd.f32 %v48, %v561
  %v1074 = vadd.f32 %v49, %v562
  %v1075 = vadd.f32 %v50, %v563
  %v1076 = vadd.f32 %v51, %v564
  %v1077 = vadd.f32 %v52, %v565
  %v1078 = vadd.f32 %v53, %v566
  %v1079 = vadd.f32 %v54, %v567
  %v1080 = vadd.f32 %v55, %v568
  %v1081 = vadd.f32 %v56, %v569
  %v1082 = vadd.f32 %v57, %v570
  %v1083 = vadd.f32 %v58, %v571
  %v1084 = vadd.f32 %v59, %v572
  %v1085 = vadd.f32 %v60, %v573
  %v1086 = vadd.f32 %v61, %v574
  %v1087 = vadd.f32 %v62, %v575
  %v1088 = vadd.f32 %v63, %v576
  %v1089 = vadd.f32 %v64, %v577
  %v1090 = vadd.f32 %v65, %v578
  %v1091 = vadd.f32 %v66, %v579
  %v1092 = vadd.f32 %v67, %v580
  %v1093 = vadd.f32 %v68, %v581
  %v1094 = vadd.f32 %v69, %v582
  %v1095 = vadd.f32 %v70, %v583
  %v1096 = vadd.f32 %v71, %v584
  %v1097 = vadd.f32 %v72, %v585
  %v1098 = vadd.f32 %v73, %v586
  %v1099 = vadd.f32 %v74, %v587
  %v1100 = vadd.f32 %v75, %v588
  %v1101 = vadd.f32 %v76, %v589
  %v1102 = vadd.f32 %v77, %v590
  %v1103 = vadd.f32 %v78, %v591
  %v1104 = vadd.f32 %v79, %v592
  %v1105 = vadd.f32 %v80, %v593
  %v1106 = vadd.f32 %v81, %v594
  %v1107 = vadd.f32 %v82, %v595
  %v1108 = vadd.f32 %v83, %v596
  %v1109 = vadd.f32 %v84, %v597
  %v1110 = vadd.f32 %v85, %v598
  %v1111 = vadd.f32 %v86, %v599
  %v1112 = vadd.f32 %v87, %v600
  %v1113 = vadd.f32 %v88, %v601
  %v1114 = vadd.f32 %v89, %v602
  %v1115 = vadd.f32 %v90, %v603
  %v1116 = vadd.f32 %v91, %v604
  %v1117 = vadd.f32 %v92, %v605
  %v1118 = vadd.f32 %v93, %v606
  %v1119 = vadd.f32 %v94, %v607
  %v1120 = vadd.f32 %v95, %v608
  %v1121 = vadd.f32 %v96, %v609
  %v1122 = vadd.f32 %v97, %v610
  %v1123 = vadd.f32 %v98, %v611
  %v1124 = vadd.f32 %v99, %v612
  %v1125 = vadd.f32 %v100, %v613
  %v1126 = vadd.f32 %v101, %v614
  %v1127 = vadd.f32 %v102, %v615
  %v1128 = vadd.f32 %v103, %v616
  %v1129 = vadd.f32 %v104, %v617
  %v1130 = vadd.f32 %v105, %v618
  %v1131 = vadd.f32 %v106, %v619
  %v1132 = vadd.f32 %v107, %v620
  %v1133 = vadd.f32 %v108, %v621
  %v1134 = vadd.f32 %v109, %v622
  %v1135 = vadd.f32 %v110, %v623
  %v1136 = vadd.f32 %v111, %v624
  %v1137 = vadd.f32 %v112, %v625
  %v1138 = vadd.f32 %v113, %v626
  %v1139 = vadd.f32 %v114, %v627
  %v1140 = vadd.f32 %v115, %v628
  %v1141 = vadd.f32 %v116, %v629
  %v1142 = vadd.f32 %v117, %v630
  %v1143 = vadd.f32 %v118, %v631
  %v1144 = vadd.f32 %v119, %v632
  %v1145 = vadd.f32 %v120, %v633
  %v1146 = vadd.f32 %v121, %v634
  %v1147 = vadd.f32 %v122, %v635
  %v1148 = vadd.f32 %v123, %v636
  %v1149 = vadd.f32 %v124, %v637
  %v1150 = vadd.f32 %v125, %v638
  %v1151 = vadd.f32 %v126, %v639
  %v1152 = vadd.f32 %v127, %v640
  %v1153 = vadd.f32 %v128, %v641
  %v1154 = vadd.f32 %v129, %v642
  %v1155 = vadd.f32 %v130, %v643
  %v1156 = vadd.f32 %v131, %v644
  %v1157 = vadd.f32 %v132, %v645
  %v1158 = vadd.f32 %v133, %v646
  %v1159 = vadd.f32 %v134, %v647
  %v1160 = vadd.f32 %v135, %v648
  %v1161 = vadd.f32 %v136, %v649
  %v1162 = vadd.f32 %v137, %v650
  %v1163 = vadd.f32 %v138, %v651
  %v1164 = vadd.f32 %v139, %v652
  %v1165 = vadd.f32 %v140, %v653
  %v1166 = vadd.f32 %v141, %v654
  %v1167 = vadd.f32 %v142, %v655
  %v1168 = vadd.f32 %v143, %v656
  %v1169 = vadd.f32 %v144, %v657
  %v1170 = vadd.f32 %v145, %v658
  %v1171 = vadd.f32 %v146, %v659
  %v1172 = vadd.f32 %v147, %v660
  %v1173 = vadd.f32 %v148, %v661
  %v1174 = vadd.f32 %v149, %v662
  %v1175 = vadd.f32 %v150, %v663
  %v1176 = vadd.f32 %v151, %v664
  %v1177 = vadd.f32 %v152, %v665
  %v1178 = vadd.f32 %v153, %v666
  %v1179 = vadd.f32 %v154, %v667
  %v1180 = vadd.f32 %v155, %v668
  %v1181 = vadd.f32 %v156, %v669
  %v1182 = vadd.f32 %v157, %v670
  %v1183 = vadd.f32 %v158, %v671
  %v1184 = vadd.f32 %v159, %v672
  %v1185 = vadd.f32 %v160, %v673
  %v1186 = vadd.f32 %v161, %v674
  %v1187 = vadd.f32 %v162, %v675
  %v1188 = vadd.f32 %v163, %v676
  %v1189 = vadd.f32 %v164, %v677
  %v1190 = vadd.f32 %v165, %v678
  %v1191 = vadd.f32 %v166, %v679
  %v1192 = vadd.f32 %v167, %v680
  %v1193 = vadd.f32 %v168, %v681
  %v1194 = vadd.f32 %v169, %v682
  %v1195 = vadd.f32 %v170, %v683
  %v1196 = vadd.f32 %v171, %v684
  %v1197 = vadd.f32 %v172, %v685
  %v1198 = vadd.f32 %v173, %v686
  %v1199 = vadd.f32 %v174, %v687
  %v1200 = vadd.f32 %v175, %v688
  %v1201 = vadd.f32 %v176, %v689
  %v1202 = vadd.f32 %v177, %v690
  %v1203 = vadd.f32 %v178, %v691
  %v1204 = vadd.f32 %v179, %v692
  %v1205 = vadd.f32 %v180, %v693
  %v1206 = vadd.f32 %v181, %v694
  %v1207 = vadd.f32 %v182, %v695
  %v1208 = vadd.f32 %v183, %v696
  %v1209 = vadd.f32 %v184, %v697
  %v1210 = vadd.f32 %v185, %v698
  %v1211 = vadd.f32 %v186, %v699
  %v1212 = vadd.f32 %v187, %v700
  %v1213 = vadd.f32 %v188, %v701
  %v1214 = vadd.f32 %v189, %v702
  %v1215 = vadd.f32 %v190, %v703
  %v1216 = vadd.f32 %v191, %v704
  %v1217 = vadd.f32 %v192, %v705
  %v1218 = vadd.f32 %v193, %v706
  %v1219 = vadd.f32 %v194, %v707
  %v1220 = vadd.f32 %v195, %v708
  %v1221 = vadd.f32 %v196, %v709
  %v1222 = vadd.f32 %v197, %v710
  %v1223 = vadd.f32 %v198, %v711
  %v1224 = vadd.f32 %v199, %v712
  %v1225 = vadd.f32 %v200, %v713
  %v1226 = vadd.f32 %v201, %v714
  %v1227 = vadd.f32 %v202, %v715
  %v1228 = vadd.f32 %v203, %v716
  %v1229 = vadd.f32 %v204, %v717
  %v1230 = vadd.f32 %v205, %v718
  %v1231 = vadd.f32 %v206, %v719
  %v1232 = vadd.f32 %v207, %v720
  %v1233 = vadd.f32 %v208, %v721
  %v1234 = vadd.f32 %v209, %v722
  %v1235 = vadd.f32 %v210, %v723
  %v1236 = vadd.f32 %v211, %v724
  %v1237 = vadd.f32 %v212, %v725
  %v1238 = vadd.f32 %v213, %v726
  %v1239 = vadd.f32 %v214, %v727
  %v1240 = vadd.f32 %v215, %v728
  %v1241 = vadd.f32 %v216, %v729
  %v1242 = vadd.f32 %v217, %v730
  %v1243 = vadd.f32 %v218, %v731
  %v1244 = vadd.f32 %v219, %v732
  %v1245 = vadd.f32 %v220, %v733
  %v1246 = vadd.f32 %v221, %v734
  %v1247 = vadd.f32 %v222, %v735
  %v1248 = vadd.f32 %v223, %v736
  %v1249 = vadd.f32 %v224, %v737
  %v1250 = vadd.f32 %v225, %v738
  %v1251 = vadd.f32 %v226, %v739
  %v1252 = vadd.f32 %v227, %v740
  %v1253 = vadd.f32 %v228, %v741
  %v1254 = vadd.f32 %v229, %v742
  %v1255 = vadd.f32 %v230, %v743
  %v1256 = vadd.f32 %v231, %v744
  %v1257 = vadd.f32 %v232, %v745
  %v1258 = vadd.f32 %v233, %v746
  %v1259 = vadd.f32 %v234, %v747
  %v1260 = vadd.f32 %v235, %v748
  %v1261 = vadd.f32 %v236, %v749
  %v1262 = vadd.f32 %v237, %v750
  %v1263 = vadd.f32 %v238, %v751
  %v1264 = vadd.f32 %v239, %v752
  %v1265 = vadd.f32 %v240, %v753
  %v1266 = vadd.f32 %v241, %v754
  %v1267 = vadd.f32 %v242, %v755
  %v1268 = vadd.f32 %v243, %v756
  %v1269 = vadd.f32 %v244, %v757
  %v1270 = vadd.f32 %v245, %v758
  %v1271 = vadd.f32 %v246, %v759
  %v1272 = vadd.f32 %v247, %v760
  %v1273 = vadd.f32 %v248, %v761
  %v1274 = vadd.f32 %v249, %v762
  %v1275 = vadd.f32 %v250, %v763
  %v1276 = vadd.f32 %v251, %v764
  %v1277 = vadd.f32 %v252, %v765
  %v1278 = vadd.f32 %v253, %v766
  %v1279 = vadd.f32 %v254, %v767
  %v1280 = vadd.f32 %v255, %v768
  %v1281 = vadd.f32 %v256, %v769
  %v1282 = vadd.f32 %v257, %v770
  %v1283 = vadd.f32 %v258, %v771
  %v1284 = vadd.f32 %v259, %v772
  %v1285 = vadd.f32 %v260, %v773
  %v1286 = vadd.f32 %v261, %v774
  %v1287 = vadd.f32 %v262, %v775
  %v1288 = vadd.f32 %v263, %v776
  %v1289 = vadd.f32 %v264, %v777
  %v1290 = vadd.f32 %v265, %v778
  %v1291 = vadd.f32 %v266, %v779
  %v1292 = vadd.f32 %v267, %v780
  %v1293 = vadd.f32 %v268, %v781
  %v1294 = vadd.f32 %v269, %v782
  %v1295 = vadd.f32 %v270, %v783
  %v1296 = vadd.f32 %v271, %v784
  %v1297 = vadd.f32 %v272, %v785
  %v1298 = vadd.f32 %v273, %v786
  %v1299 = vadd.f32 %v274, %v787
  %v1300 = vadd.f32 %v275, %v788
  %v1301 = vadd.f32 %v276, %v789
  %v1302 = vadd.f32 %v277, %v790
  %v1303 = vadd.f32 %v278, %v791
  %v1304 = vadd.f32 %v279, %v792
  %v1305 = vadd.f32 %v280, %v793
  %v1306 = vadd.f32 %v281, %v794
  %v1307 = vadd.f32 %v282, %v795
  %v1308 = vadd.f32 %v283, %v796
  %v1309 = vadd.f32 %v284, %v797
  %v1310 = vadd.f32 %v285, %v798
  %v1311 = vadd.f32 %v286, %v799
  %v1312 = vadd.f32 %v287, %v800
  %v1313 = vadd.f32 %v288, %v801
  %v1314 = vadd.f32 %v289, %v802
  %v1315 = vadd.f32 %v290, %v803
  %v1316 = vadd.f32 %v291, %v804
  %v1317 = vadd.f32 %v292, %v805
  %v1318 = vadd.f32 %v293, %v806
  %v1319 = vadd.f32 %v294, %v807
  %v1320 = vadd.f32 %v295, %v808
  %v1321 = vadd.f32 %v296, %v809
  %v1322 = vadd.f32 %v297, %v810
  %v1323 = vadd.f32 %v298, %v811
  %v1324 = vadd.f32 %v299, %v812
  %v1325 = vadd.f32 %v300, %v813
  %v1326 = vadd.f32 %v301, %v814
  %v1327 = vadd.f32 %v302, %v815
  %v1328 = vadd.f32 %v303, %v816
  %v1329 = vadd.f32 %v304, %v817
  %v1330 = vadd.f32 %v305, %v818
  %v1331 = vadd.f32 %v306, %v819
  %v1332 = vadd.f32 %v307, %v820
  %v1333 = vadd.f32 %v308, %v821
  %v1334 = vadd.f32 %v309, %v822
  %v1335 = vadd.f32 %v310, %v823
  %v1336 = vadd.f32 %v311, %v824
  %v1337 = vadd.f32 %v312, %v825
  %v1338 = vadd.f32 %v313, %v826
  %v1339 = vadd.f32 %v314, %v827
  %v1340 = vadd.f32 %v315, %v828
  %v1341 = vadd.f32 %v316, %v829
  %v1342 = vadd.f32 %v317, %v830
  %v1343 = vadd.f32 %v318, %v831
  %v1344 = vadd.f32 %v319, %v832
  %v1345 = vadd.f32 %v320, %v833
  %v1346 = vadd.f32 %v321, %v834
  %v1347 = vadd.f32 %v322, %v835
  %v1348 = vadd.f32 %v323, %v836
  %v1349 = vadd.f32 %v324, %v837
  %v1350 = vadd.f32 %v325, %v838
  %v1351 = vadd.f32 %v326, %v839
  %v1352 = vadd.f32 %v327, %v840
  %v1353 = vadd.f32 %v328, %v841
  %v1354 = vadd.f32 %v329, %v842
  %v1355 = vadd.f32 %v330, %v843
  %v1356 = vadd.f32 %v331, %v844
  %v1357 = vadd.f32 %v332, %v845
  %v1358 = vadd.f32 %v333, %v846
  %v1359 = vadd.f32 %v334, %v847
  %v1360 = vadd.f32 %v335, %v848
  %v1361 = vadd.f32 %v336, %v849
  %v1362 = vadd.f32 %v337, %v850
  %v1363 = vadd.f32 %v338, %v851
  %v1364 = vadd.f32 %v339, %v852
  %v1365 = vadd.f32 %v340, %v853
  %v1366 = vadd.f32 %v341, %v854
  %v1367 = vadd.f32 %v342, %v855
  %v1368 = vadd.f32 %v343, %v856
  %v1369 = vadd.f32 %v344, %v857
  %v1370 = vadd.f32 %v345, %v858
  %v1371 = vadd.f32 %v346, %v859
  %v1372 = vadd.f32 %v347, %v860
  %v1373 = vadd.f32 %v348, %v861
  %v1374 = vadd.f32 %v349, %v862
  %v1375 = vadd.f32 %v350, %v863
  %v1376 = vadd.f32 %v351, %v864
  %v1377 = vadd.f32 %v352, %v865
  %v1378 = vadd.f32 %v353, %v866
  %v1379 = vadd.f32 %v354, %v867
  %v1380 = vadd.f32 %v355, %v868
  %v1381 = vadd.f32 %v356, %v869
  %v1382 = vadd.f32 %v357, %v870
  %v1383 = vadd.f32 %v358, %v871
  %v1384 = vadd.f32 %v359, %v872
  %v1385 = vadd.f32 %v360, %v873
  %v1386 = vadd.f32 %v361, %v874
  %v1387 = vadd.f32 %v362, %v875
  %v1388 = vadd.f32 %v363, %v876
  %v1389 = vadd.f32 %v364, %v877
  %v1390 = vadd.f32 %v365, %v878
  %v1391 = vadd.f32 %v366, %v879
  %v1392 = vadd.f32 %v367, %v880
  %v1393 = vadd.f32 %v368, %v881
  %v1394 = vadd.f32 %v369, %v882
  %v1395 = vadd.f32 %v370, %v883
  %v1396 = vadd.f32 %v371, %v884
  %v1397 = vadd.f32 %v372, %v885
  %v1398 = vadd.f32 %v373, %v886
  %v1399 = vadd.f32 %v374, %v887
  %v1400 = vadd.f32 %v375, %v888
  %v1401 = vadd.f32 %v376, %v889
  %v1402 = vadd.f32 %v377, %v890
  %v1403 = vadd.f32 %v378, %v891
  %v1404 = vadd.f32 %v379, %v892
  %v1405 = vadd.f32 %v380, %v893
  %v1406 = vadd.f32 %v381, %v894
  %v1407 = vadd.f32 %v382, %v895
  %v1408 = vadd.f32 %v383, %v896
  %v1409 = vadd.f32 %v384, %v897
  %v1410 = vadd.f32 %v385, %v898
  %v1411 = vadd.f32 %v386, %v899
  %v1412 = vadd.f32 %v387, %v900
  %v1413 = vadd.f32 %v388, %v901
  %v1414 = vadd.f32 %v389, %v902
  %v1415 = vadd.f32 %v390, %v903
  %v1416 = vadd.f32 %v391, %v904
  %v1417 = vadd.f32 %v392, %v905
  %v1418 = vadd.f32 %v393, %v906
  %v1419 = vadd.f32 %v394, %v907
  %v1420 = vadd.f32 %v395, %v908
  %v1421 = vadd.f32 %v396, %v909
  %v1422 = vadd.f32 %v397, %v910
  %v1423 = vadd.f32 %v398, %v911
  %v1424 = vadd.f32 %v399, %v912
  %v1425 = vadd.f32 %v400, %v913
  %v1426 = vadd.f32 %v401, %v914
  %v1427 = vadd.f32 %v402, %v915
  %v1428 = vadd.f32 %v403, %v916
  %v1429 = vadd.f32 %v404, %v917
  %v1430 = vadd.f32 %v405, %v918
  %v1431 = vadd.f32 %v406, %v919
  %v1432 = vadd.f32 %v407, %v920
  %v1433 = vadd.f32 %v408, %v921
  %v1434 = vadd.f32 %v409, %v922
  %v1435 = vadd.f32 %v410, %v923
  %v1436 = vadd.f32 %v411, %v924
  %v1437 = vadd.f32 %v412, %v925
  %v1438 = vadd.f32 %v413, %v926
  %v1439 = vadd.f32 %v414, %v927
  %v1440 = vadd.f32 %v415, %v928
  %v1441 = vadd.f32 %v416, %v929
  %v1442 = vadd.f32 %v417, %v930
  %v1443 = vadd.f32 %v418, %v931
  %v1444 = vadd.f32 %v419, %v932
  %v1445 = vadd.f32 %v420, %v933
  %v1446 = vadd.f32 %v421, %v934
  %v1447 = vadd.f32 %v422, %v935
  %v1448 = vadd.f32 %v423, %v936
  %v1449 = vadd.f32 %v424, %v937
  %v1450 = vadd.f32 %v425, %v938
  %v1451 = vadd.f32 %v426, %v939
  %v1452 = vadd.f32 %v427, %v940
  %v1453 = vadd.f32 %v428, %v941
  %v1454 = vadd.f32 %v429, %v942
  %v1455 = vadd.f32 %v430, %v943
  %v1456 = vadd.f32 %v431, %v944
  %v1457 = vadd.f32 %v432, %v945
  %v1458 = vadd.f32 %v433, %v946
  %v1459 = vadd.f32 %v434, %v947
  %v1460 = vadd.f32 %v435, %v948
  %v1461 = vadd.f32 %v436, %v949
  %v1462 = vadd.f32 %v437, %v950
  %v1463 = vadd.f32 %v438, %v951
  %v1464 = vadd.f32 %v439, %v952
  %v1465 = vadd.f32 %v440, %v953
  %v1466 = vadd.f32 %v441, %v954
  %v1467 = vadd.f32 %v442, %v955
  %v1468 = vadd.f32 %v443, %v956
  %v1469 = vadd.f32 %v444, %v957
  %v1470 = vadd.f32 %v445, %v958
  %v1471 = vadd.f32 %v446, %v959
  %v1472 = vadd.f32 %v447, %v960
  %v1473 = vadd.f32 %v448, %v961
  %v1474 = vadd.f32 %v449, %v962
  %v1475 = vadd.f32 %v450, %v963
  %v1476 = vadd.f32 %v451, %v964
  %v1477 = vadd.f32 %v452, %v965
  %v1478 = vadd.f32 %v453, %v966
  %v1479 = vadd.f32 %v454, %v967
  %v1480 = vadd.f32 %v455, %v968
  %v1481 = vadd.f32 %v456, %v969
  %v1482 = vadd.f32 %v457, %v970
  %v1483 = vadd.f32 %v458, %v971
  %v1484 = vadd.f32 %v459, %v972
  %v1485 = vadd.f32 %v460, %v973
  %v1486 = vadd.f32 %v461, %v974
  %v1487 = vadd.f32 %v462, %v975
  %v1488 = vadd.f32 %v463, %v976
  %v1489 = vadd.f32 %v464, %v977
  %v1490 = vadd.f32 %v465, %v978
  %v1491 = vadd.f32 %v466, %v979
  %v1492 = vadd.f32 %v467, %v980
  %v1493 = vadd.f32 %v468, %v981
  %v1494 = vadd.f32 %v469, %v982
  %v1495 = vadd.f32 %v470, %v983
  %v1496 = vadd.f32 %v471, %v984
  %v1497 = vadd.f32 %v472, %v985
  %v1498 = vadd.f32 %v473, %v986
  %v1499 = vadd.f32 %v474, %v987
  %v1500 = vadd.f32 %v475, %v988
  %v1501 = vadd.f32 %v476, %v989
  %v1502 = vadd.f32 %v477, %v990
  %v1503 = vadd.f32 %v478, %v991
  %v1504 = vadd.f32 %v479, %v992
  %v1505 = vadd.f32 %v480, %v993
  %v1506 = vadd.f32 %v481, %v994
  %v1507 = vadd.f32 %v482, %v995
  %v1508 = vadd.f32 %v483, %v996
  %v1509 = vadd.f32 %v484, %v997
  %v1510 = vadd.f32 %v485, %v998
  %v1511 = vadd.f32 %v486, %v999
  %v1512 = vadd.f32 %v487, %v1000
  %v1513 = vadd.f32 %v488, %v1001
  %v1514 = vadd.f32 %v489, %v1002
  %v1515 = vadd.f32 %v490, %v1003
  %v1516 = vadd.f32 %v491, %v1004
  %v1517 = vadd.f32 %v492, %v1005
  %v1518 = vadd.f32 %v493, %v1006
  %v1519 = vadd.f32 %v494, %v1007
  %v1520 = vadd.f32 %v495, %v1008
  %v1521 = vadd.f32 %v496, %v1009
  %v1522 = vadd.f32 %v497, %v1010
  %v1523 = vadd.f32 %v498, %v1011
  %v1524 = vadd.f32 %v499, %v1012
  %v1525 = vadd.f32 %v500, %v1013
  %v1526 = vadd.f32 %v501, %v1014
  %v1527 = vadd.f32 %v502, %v1015
  %v1528 = vadd.f32 %v503, %v1016
  %v1529 = vadd.f32 %v504, %v1017
  %v1530 = vadd.f32 %v505, %v1018
  %v1531 = vadd.f32 %v506, %v1019
  %v1532 = vadd.f32 %v507, %v1020
  %v1533 = vadd.f32 %v508, %v1021
  %v1534 = vadd.f32 %v509, %v1022
  %v1535 = vadd.f32 %v510, %v1023
  %v1536 = vadd.f32 %v511, %v1024
  %v1537 = vadd.f32 %v512, %v1025
  %v1538 = vadd.f32 %v513, %v1026
  %v1539 = vadd.f32 %v514, %v1027
  %v1540 = vadd.f32 %v515, %v1028
  %v1541 = vadd.f32 %v516, %v1029
  %v1542 = vadd.f32 %v517, %v1030
  %v1543 = vadd.f32 %v518, %v1031
  %v1544 = vadd.f32 %v519, %v1032
  %v1545 = vadd.f32 %v520, %v1033
  %v1546 = vadd.f32 %v521, %v1034
  %v1547 = vadd.f32 %v522, %v1035
  %v1548 = vmul.f32 %v1036, 0.5
  %v1549 = vmul.f32 %v1037, 0.5
  %v1550 = vmul.f32 %v1038, 0.5
  %v1551 = vmul.f32 %v1039, 0.5
  %v1552 = vmul.f32 %v1040, 0.5
  %v1553 = vmul.f32 %v1041, 0.5
  %v1554 = vmul.f32 %v1042, 0.5
  %v1555 = vmul.f32 %v1043, 0.5
  %v1556 = vmul.f32 %v1044, 0.5
  %v1557 = vmul.f32 %v1045, 0.5
  %v1558 = vmul.f32 %v1046, 0.5
  %v1559 = vmul.f32 %v1047, 0.5
  %v1560 = vmul.f32 %v1048, 0.5
  %v1561 = vmul.f32 %v1049, 0.5
  %v1562 = vmul.f32 %v1050, 0.5
  %v1563 = vmul.f32 %v1051, 0.5
  %v1564 = vmul.f32 %v1052, 0.5
  %v1565 = vmul.f32 %v1053, 0.5
  %v1566 = vmul.f32 %v1054, 0.5
  %v1567 = vmul.f32 %v1055, 0.5
  %v1568 = vmul.f32 %v1056, 0.5
  %v1569 = vmul.f32 %v1057, 0.5
  %v1570 = vmul.f32 %v1058, 0.5
  %v1571 = vmul.f32 %v1059, 0.5
  %v1572 = vmul.f32 %v1060, 0.5
  %v1573 = vmul.f32 %v1061, 0.5
  %v1574 = vmul.f32 %v1062, 0.5
  %v1575 = vmul.f32 %v1063, 0.5
  %v1576 = vmul.f32 %v1064, 0.5
  %v1577 = vmul.f32 %v1065, 0.5
  %v1578 = vmul.f32 %v1066, 0.5
  %v1579 = vmul.f32 %v1067, 0.5
  %v1580 = vmul.f32 %v1068, 0.5
  %v1581 = vmul.f32 %v1069, 0.5
  %v1582 = vmul.f32 %v1070, 0.5
  %v1583 = vmul.f32 %v1071, 0.5
  %v1584 = vmul.f32 %v1072, 0.5
  %v1585 = vmul.f32 %v1073, 0.5
  %v1586 = vmul.f32 %v1074, 0.5
  %v1587 = vmul.f32 %v1075, 0.5
  %v1588 = vmul.f32 %v1076, 0.5
  %v1589 = vmul.f32 %v1077, 0.5
  %v1590 = vmul.f32 %v1078, 0.5
  %v1591 = vmul.f32 %v1079, 0.5
  %v1592 = vmul.f32 %v1080, 0.5
  %v1593 = vmul.f32 %v1081, 0.5
  %v1594 = vmul.f32 %v1082, 0.5
  %v1595 = vmul.f32 %v1083, 0.5
  %v1596 = vmul.f32 %v1084, 0.5
  %v1597 = vmul.f32 %v1085, 0.5
  %v1598 = vmul.f32 %v1086, 0.5
  %v1599 = vmul.f32 %v1087, 0.5
  %v1600 = vmul.f32 %v1088, 0.5
  %v1601 = vmul.f32 %v1089, 0.5
  %v1602 = vmul.f32 %v1090, 0.5
  %v1603 = vmul.f32 %v1091, 0.5
  %v1604 = vmul.f32 %v1092, 0.5
  %v1605 = vmul.f32 %v1093, 0.5
  %v1606 = vmul.f32 %v1094, 0.5
  %v1607 = vmul.f32 %v1095, 0.5
  %v1608 = vmul.f32 %v1096, 0.5
  %v1609 = vmul.f32 %v1097, 0.5
  %v1610 = vmul.f32 %v1098, 0.5
  %v1611 = vmul.f32 %v1099, 0.5
  %v1612 = vmul.f32 %v1100, 0.5
  %v1613 = vmul.f32 %v1101, 0.5
  %v1614 = vmul.f32 %v1102, 0.5
  %v1615 = vmul.f32 %v1103, 0.5
  %v1616 = vmul.f32 %v1104, 0.5
  %v1617 = vmul.f32 %v1105, 0.5
  %v1618 = vmul.f32 %v1106, 0.5
  %v1619 = vmul.f32 %v1107, 0.5
  %v1620 = vmul.f32 %v1108, 0.5
  %v1621 = vmul.f32 %v1109, 0.5
  %v1622 = vmul.f32 %v1110, 0.5
  %v1623 = vmul.f32 %v1111, 0.5
  %v1624 = vmul.f32 %v1112, 0.5
  %v1625 = vmul.f32 %v1113, 0.5
  %v1626 = vmul.f32 %v1114, 0.5
  %v1627 = vmul.f32 %v1115, 0.5
  %v1628 = vmul.f32 %v1116, 0.5
  %v1629 = vmul.f32 %v1117, 0.5
  %v1630 = vmul.f32 %v1118, 0.5
  %v1631 = vmul.f32 %v1119, 0.5
  %v1632 = vmul.f32 %v1120, 0.5
  %v1633 = vmul.f32 %v1121, 0.5
  %v1634 = vmul.f32 %v1122, 0.5
  %v1635 = vmul.f32 %v1123, 0.5
  %v1636 = vmul.f32 %v1124, 0.5
  %v1637 = vmul.f32 %v1125, 0.5
  %v1638 = vmul.f32 %v1126, 0.5
  %v1639 = vmul.f32 %v1127, 0.5
  %v1640 = vmul.f32 %v1128, 0.5
  %v1641 = vmul.f32 %v1129, 0.5
  %v1642 = vmul.f32 %v1130, 0.5
  %v1643 = vmul.f32 %v1131, 0.5
  %v1644 = vmul.f32 %v1132, 0.5
  %v1645 = vmul.f32 %v1133, 0.5
  %v1646 = vmul.f32 %v1134, 0.5
  %v1647 = vmul.f32 %v1135, 0.5
  %v1648 = vmul.f32 %v1136, 0.5
  %v1649 = vmul.f32 %v1137, 0.5
  %v1650 = vmul.f32 %v1138, 0.5
  %v1651 = vmul.f32 %v1139, 0.5
  %v1652 = vmul.f32 %v1140, 0.5
  %v1653 = vmul.f32 %v1141, 0.5
  %v1654 = vmul.f32 %v1142, 0.5
  %v1655 = vmul.f32 %v1143, 0.5
  %v1656 = vmul.f32 %v1144, 0.5
  %v1657 = vmul.f32 %v1145, 0.5
  %v1658 = vmul.f32 %v1146, 0.5
  %v1659 = vmul.f32 %v1147, 0.5
  %v1660 = vmul.f32 %v1148, 0.5
  %v1661 = vmul.f32 %v1149, 0.5
  %v1662 = vmul.f32 %v1150, 0.5
  %v1663 = vmul.f32 %v1151, 0.5
  %v1664 = vmul.f32 %v1152, 0.5
  %v1665 = vmul.f32 %v1153, 0.5
  %v1666 = vmul.f32 %v1154, 0.5
  %v1667 = vmul.f32 %v1155, 0.5
  %v1668 = vmul.f32 %v1156, 0.5
  %v1669 = vmul.f32 %v1157, 0.5
  %v1670 = vmul.f32 %v1158, 0.5
  %v1671 = vmul.f32 %v1159, 0.5
  %v1672 = vmul.f32 %v1160, 0.5
  %v1673 = vmul.f32 %v1161, 0.5
  %v1674 = vmul.f32 %v1162, 0.5
  %v1675 = vmul.f32 %v1163, 0.5
  %v1676 = vmul.f32 %v1164, 0.5
  %v1677 = vmul.f32 %v1165, 0.5
  %v1678 = vmul.f32 %v1166, 0.5
  %v1679 = vmul.f32 %v1167, 0.5
  %v1680 = vmul.f32 %v1168, 0.5
  %v1681 = vmul.f32 %v1169, 0.5
  %v1682 = vmul.f32 %v1170, 0.5
  %v1683 = vmul.f32 %v1171, 0.5
  %v1684 = vmul.f32 %v1172, 0.5
  %v1685 = vmul.f32 %v1173, 0.5
  %v1686 = vmul.f32 %v1174, 0.5
  %v1687 = vmul.f32 %v1175, 0.5
  %v1688 = vmul.f32 %v1176, 0.5
  %v1689 = vmul.f32 %v1177, 0.5
  %v1690 = vmul.f32 %v1178, 0.5
  %v1691 = vmul.f32 %v1179, 0.5
  %v1692 = vmul.f32 %v1180, 0.5
  %v1693 = vmul.f32 %v1181, 0.5
  %v1694 = vmul.f32 %v1182, 0.5
  %v1695 = vmul.f32 %v1183, 0.5
  %v1696 = vmul.f32 %v1184, 0.5
  %v1697 = vmul.f32 %v1185, 0.5
  %v1698 = vmul.f32 %v1186, 0.5
  %v1699 = vmul.f32 %v1187, 0.5
  %v1700 = vmul.f32 %v1188, 0.5
  %v1701 = vmul.f32 %v1189, 0.5
  %v1702 = vmul.f32 %v1190, 0.5
  %v1703 = vmul.f32 %v1191, 0.5
  %v1704 = vmul.f32 %v1192, 0.5
  %v1705 = vmul.f32 %v1193, 0.5
  %v1706 = vmul.f32 %v1194, 0.5
  %v1707 = vmul.f32 %v1195, 0.5
  %v1708 = vmul.f32 %v1196, 0.5
  %v1709 = vmul.f32 %v1197, 0.5
  %v1710 = vmul.f32 %v1198, 0.5
  %v1711 = vmul.f32 %v1199, 0.5
  %v1712 = vmul.f32 %v1200, 0.5
  %v1713 = vmul.f32 %v1201, 0.5
  %v1714 = vmul.f32 %v1202, 0.5
  %v1715 = vmul.f32 %v1203, 0.5
  %v1716 = vmul.f32 %v1204, 0.5
  %v1717 = vmul.f32 %v1205, 0.5
  %v1718 = vmul.f32 %v1206, 0.5
  %v1719 = vmul.f32 %v1207, 0.5
  %v1720 = vmul.f32 %v1208, 0.5
  %v1721 = vmul.f32 %v1209, 0.5
  %v1722 = vmul.f32 %v1210, 0.5
  %v1723 = vmul.f32 %v1211, 0.5
  %v1724 = vmul.f32 %v1212, 0.5
  %v1725 = vmul.f32 %v1213, 0.5
  %v1726 = vmul.f32 %v1214, 0.5
  %v1727 = vmul.f32 %v1215, 0.5
  %v1728 = vmul.f32 %v1216, 0.5
  %v1729 = vmul.f32 %v1217, 0.5
  %v1730 = vmul.f32 %v1218, 0.5
  %v1731 = vmul.f32 %v1219, 0.5
  %v1732 = vmul.f32 %v1220, 0.5
  %v1733 = vmul.f32 %v1221, 0.5
  %v1734 = vmul.f32 %v1222, 0.5
  %v1735 = vmul.f32 %v1223, 0.5
  %v1736 = vmul.f32 %v1224, 0.5
  %v1737 = vmul.f32 %v1225, 0.5
  %v1738 = vmul.f32 %v1226, 0.5
  %v1739 = vmul.f32 %v1227, 0.5
  %v1740 = vmul.f32 %v1228, 0.5
  %v1741 = vmul.f32 %v1229, 0.5
  %v1742 = vmul.f32 %v1230, 0.5
  %v1743 = vmul.f32 %v1231, 0.5
  %v1744 = vmul.f32 %v1232, 0.5
  %v1745 = vmul.f32 %v1233, 0.5
  %v1746 = vmul.f32 %v1234, 0.5
  %v1747 = vmul.f32 %v1235, 0.5
  %v1748 = vmul.f32 %v1236, 0.5
  %v1749 = vmul.f32 %v1237, 0.5
  %v1750 = vmul.f32 %v1238, 0.5
  %v1751 = vmul.f32 %v1239, 0.5
  %v1752 = vmul.f32 %v1240, 0.5
  %v1753 = vmul.f32 %v1241, 0.5
  %v1754 = vmul.f32 %v1242, 0.5
  %v1755 = vmul.f32 %v1243, 0.5
  %v1756 = vmul.f32 %v1244, 0.5
  %v1757 = vmul.f32 %v1245, 0.5
  %v1758 = vmul.f32 %v1246, 0.5
  %v1759 = vmul.f32 %v1247, 0.5
  %v1760 = vmul.f32 %v1248, 0.5
  %v1761 = vmul.f32 %v1249, 0.5
  %v1762 = vmul.f32 %v1250, 0.5
  %v1763 = vmul.f32 %v1251, 0.5
  %v1764 = vmul.f32 %v1252, 0.5
  %v1765 = vmul.f32 %v1253, 0.5
  %v1766 = vmul.f32 %v1254, 0.5
  %v1767 = vmul.f32 %v1255, 0.5
  %v1768 = vmul.f32 %v1256, 0.5
  %v1769 = vmul.f32 %v1257, 0.5
  %v1770 = vmul.f32 %v1258, 0.5
  %v1771 = vmul.f32 %v1259, 0.5
  %v1772 = vmul.f32 %v1260, 0.5
  %v1773 = vmul.f32 %v1261, 0.5
  %v1774 = vmul.f32 %v1262, 0.5
  %v1775 = vmul.f32 %v1263, 0.5
  %v1776 = vmul.f32 %v1264, 0.5
  %v1777 = vmul.f32 %v1265, 0.5
  %v1778 = vmul.f32 %v1266, 0.5
  %v1779 = vmul.f32 %v1267, 0.5
  %v1780 = vmul.f32 %v1268, 0.5
  %v1781 = vmul.f32 %v1269, 0.5
  %v1782 = vmul.f32 %v1270, 0.5
  %v1783 = vmul.f32 %v1271, 0.5
  %v1784 = vmul.f32 %v1272, 0.5
  %v1785 = vmul.f32 %v1273, 0.5
  %v1786 = vmul.f32 %v1274, 0.5
  %v1787 = vmul.f32 %v1275, 0.5
  %v1788 = vmul.f32 %v1276, 0.5
  %v1789 = vmul.f32 %v1277, 0.5
  %v1790 = vmul.f32 %v1278, 0.5
  %v1791 = vmul.f32 %v1279, 0.5
  %v1792 = vmul.f32 %v1280, 0.5
  %v1793 = vmul.f32 %v1281, 0.5
  %v1794 = vmul.f32 %v1282, 0.5
  %v1795 = vmul.f32 %v1283, 0.5
  %v1796 = vmul.f32 %v1284, 0.5
  %v1797 = vmul.f32 %v1285, 0.5
  %v1798 = vmul.f32 %v1286, 0.5
  %v1799 = vmul.f32 %v1287, 0.5
  %v1800 = vmul.f32 %v1288, 0.5
  %v1801 = vmul.f32 %v1289, 0.5
  %v1802 = vmul.f32 %v1290, 0.5
  %v1803 = vmul.f32 %v1291, 0.5
  %v1804 = vmul.f32 %v1292, 0.5
  %v1805 = vmul.f32 %v1293, 0.5
  %v1806 = vmul.f32 %v1294, 0.5
  %v1807 = vmul.f32 %v1295, 0.5
  %v1808 = vmul.f32 %v1296, 0.5
  %v1809 = vmul.f32 %v1297, 0.5
  %v1810 = vmul.f32 %v1298, 0.5
  %v1811 = vmul.f32 %v1299, 0.5
  %v1812 = vmul.f32 %v1300, 0.5
  %v1813 = vmul.f32 %v1301, 0.5
  %v1814 = vmul.f32 %v1302, 0.5
  %v1815 = vmul.f32 %v1303, 0.5
  %v1816 = vmul.f32 %v1304, 0.5
  %v1817 = vmul.f32 %v1305, 0.5
  %v1818 = vmul.f32 %v1306, 0.5
  %v1819 = vmul.f32 %v1307, 0.5
  %v1820 = vmul.f32 %v1308, 0.5
  %v1821 = vmul.f32 %v1309, 0.5
  %v1822 = vmul.f32 %v1310, 0.5
  %v1823 = vmul.f32 %v1311, 0.5
  %v1824 = vmul.f32 %v1312, 0.5
  %v1825 = vmul.f32 %v1313, 0.5
  %v1826 = vmul.f32 %v1314, 0.5
  %v1827 = vmul.f32 %v1315, 0.5
  %v1828 = vmul.f32 %v1316, 0.5
  %v1829 = vmul.f32 %v1317, 0.5
  %v1830 = vmul.f32 %v1318, 0.5
  %v1831 = vmul.f32 %v1319, 0.5
  %v1832 = vmul.f32 %v1320, 0.5
  %v1833 = vmul.f32 %v1321, 0.5
  %v1834 = vmul.f32 %v1322, 0.5
  %v1835 = vmul.f32 %v1323, 0.5
  %v1836 = vmul.f32 %v1324, 0.5
  %v1837 = vmul.f32 %v1325, 0.5
  %v1838 = vmul.f32 %v1326, 0.5
  %v1839 = vmul.f32 %v1327, 0.5
  %v1840 = vmul.f32 %v1328, 0.5
  %v1841 = vmul.f32 %v1329, 0.5
  %v1842 = vmul.f32 %v1330, 0.5
  %v1843 = vmul.f32 %v1331, 0.5
  %v1844 = vmul.f32 %v1332, 0.5
  %v1845 = vmul.f32 %v1333, 0.5
  %v1846 = vmul.f32 %v1334, 0.5
  %v1847 = vmul.f32 %v1335, 0.5
  %v1848 = vmul.f32 %v1336, 0.5
  %v1849 = vmul.f32 %v1337, 0.5
  %v1850 = vmul.f32 %v1338, 0.5
  %v1851 = vmul.f32 %v1339, 0.5
  %v1852 = vmul.f32 %v1340, 0.5
  %v1853 = vmul.f32 %v1341, 0.5
  %v1854 = vmul.f32 %v1342, 0.5
  %v1855 = vmul.f32 %v1343, 0.5
  %v1856 = vmul.f32 %v1344, 0.5
  %v1857 = vmul.f32 %v1345, 0.5
  %v1858 = vmul.f32 %v1346, 0.5
  %v1859 = vmul.f32 %v1347, 0.5
  %v1860 = vmul.f32 %v1348, 0.5
  %v1861 = vmul.f32 %v1349, 0.5
  %v1862 = vmul.f32 %v1350, 0.5
  %v1863 = vmul.f32 %v1351, 0.5
  %v1864 = vmul.f32 %v1352, 0.5
  %v1865 = vmul.f32 %v1353, 0.5
  %v1866 = vmul.f32 %v1354, 0.5
  %v1867 = vmul.f32 %v1355, 0.5
  %v1868 = vmul.f32 %v1356, 0.5
  %v1869 = vmul.f32 %v1357, 0.5
  %v1870 = vmul.f32 %v1358, 0.5
  %v1871 = vmul.f32 %v1359, 0.5
  %v1872 = vmul.f32 %v1360, 0.5
  %v1873 = vmul.f32 %v1361, 0.5
  %v1874 = vmul.f32 %v1362, 0.5
  %v1875 = vmul.f32 %v1363, 0.5
  %v1876 = vmul.f32 %v1364, 0.5
  %v1877 = vmul.f32 %v1365, 0.5
  %v1878 = vmul.f32 %v1366, 0.5
  %v1879 = vmul.f32 %v1367, 0.5
  %v1880 = vmul.f32 %v1368, 0.5
  %v1881 = vmul.f32 %v1369, 0.5
  %v1882 = vmul.f32 %v1370, 0.5
  %v1883 = vmul.f32 %v1371, 0.5
  %v1884 = vmul.f32 %v1372, 0.5
  %v1885 = vmul.f32 %v1373, 0.5
  %v1886 = vmul.f32 %v1374, 0.5
  %v1887 = vmul.f32 %v1375, 0.5
  %v1888 = vmul.f32 %v1376, 0.5
  %v1889 = vmul.f32 %v1377, 0.5
  %v1890 = vmul.f32 %v1378, 0.5
  %v1891 = vmul.f32 %v1379, 0.5
  %v1892 = vmul.f32 %v1380, 0.5
  %v1893 = vmul.f32 %v1381, 0.5
  %v1894 = vmul.f32 %v1382, 0.5
  %v1895 = vmul.f32 %v1383, 0.5
  %v1896 = vmul.f32 %v1384, 0.5
  %v1897 = vmul.f32 %v1385, 0.5
  %v1898 = vmul.f32 %v1386, 0.5
  %v1899 = vmul.f32 %v1387, 0.5
  %v1900 = vmul.f32 %v1388, 0.5
  %v1901 = vmul.f32 %v1389, 0.5
  %v1902 = vmul.f32 %v1390, 0.5
  %v1903 = vmul.f32 %v1391, 0.5
  %v1904 = vmul.f32 %v1392, 0.5
  %v1905 = vmul.f32 %v1393, 0.5
  %v1906 = vmul.f32 %v1394, 0.5
  %v1907 = vmul.f32 %v1395, 0.5
  %v1908 = vmul.f32 %v1396, 0.5
  %v1909 = vmul.f32 %v1397, 0.5
  %v1910 = vmul.f32 %v1398, 0.5
  %v1911 = vmul.f32 %v1399, 0.5
  %v1912 = vmul.f32 %v1400, 0.5
  %v1913 = vmul.f32 %v1401, 0.5
  %v1914 = vmul.f32 %v1402, 0.5
  %v1915 = vmul.f32 %v1403, 0.5
  %v1916 = vmul.f32 %v1404, 0.5
  %v1917 = vmul.f32 %v1405, 0.5
  %v1918 = vmul.f32 %v1406, 0.5
  %v1919 = vmul.f32 %v1407, 0.5
  %v1920 = vmul.f32 %v1408, 0.5
  %v1921 = vmul.f32 %v1409, 0.5
  %v1922 = vmul.f32 %v1410, 0.5
  %v1923 = vmul.f32 %v1411, 0.5
  %v1924 = vmul.f32 %v1412, 0.5
  %v1925 = vmul.f32 %v1413, 0.5
  %v1926 = vmul.f32 %v1414, 0.5
  %v1927 = vmul.f32 %v1415, 0.5
  %v1928 = vmul.f32 %v1416, 0.5
  %v1929 = vmul.f32 %v1417, 0.5
  %v1930 = vmul.f32 %v1418, 0.5
  %v1931 = vmul.f32 %v1419, 0.5
  %v1932 = vmul.f32 %v1420, 0.5
  %v1933 = vmul.f32 %v1421, 0.5
  %v1934 = vmul.f32 %v1422, 0.5
  %v1935 = vmul.f32 %v1423, 0.5
  %v1936 = vmul.f32 %v1424, 0.5
  %v1937 = vmul.f32 %v1425, 0.5
  %v1938 = vmul.f32 %v1426, 0.5
  %v1939 = vmul.f32 %v1427, 0.5
  %v1940 = vmul.f32 %v1428, 0.5
  %v1941 = vmul.f32 %v1429, 0.5
  %v1942 = vmul.f32 %v1430, 0.5
  %v1943 = vmul.f32 %v1431, 0.5
  %v1944 = vmul.f32 %v1432, 0.5
  %v1945 = vmul.f32 %v1433, 0.5
  %v1946 = vmul.f32 %v1434, 0.5
  %v1947 = vmul.f32 %v1435, 0.5
  %v1948 = vmul.f32 %v1436, 0.5
  %v1949 = vmul.f32 %v1437, 0.5
  %v1950 = vmul.f32 %v1438, 0.5
  %v1951 = vmul.f32 %v1439, 0.5
  %v1952 = vmul.f32 %v1440, 0.5
  %v1953 = vmul.f32 %v1441, 0.5
  %v1954 = vmul.f32 %v1442, 0.5
  %v1955 = vmul.f32 %v1443, 0.5
  %v1956 = vmul.f32 %v1444, 0.5
  %v1957 = vmul.f32 %v1445, 0.5
  %v1958 = vmul.f32 %v1446, 0.5
  %v1959 = vmul.f32 %v1447, 0.5
  %v1960 = vmul.f32 %v1448, 0.5
  %v1961 = vmul.f32 %v1449, 0.5
  %v1962 = vmul.f32 %v1450, 0.5
  %v1963 = vmul.f32 %v1451, 0.5
  %v1964 = vmul.f32 %v1452, 0.5
  %v1965 = vmul.f32 %v1453, 0.5
  %v1966 = vmul.f32 %v1454, 0.5
  %v1967 = vmul.f32 %v1455, 0.5
  %v1968 = vmul.f32 %v1456, 0.5
  %v1969 = vmul.f32 %v1457, 0.5
  %v1970 = vmul.f32 %v1458, 0.5
  %v1971 = vmul.f32 %v1459, 0.5
  %v1972 = vmul.f32 %v1460, 0.5
  %v1973 = vmul.f32 %v1461, 0.5
  %v1974 = vmul.f32 %v1462, 0.5
  %v1975 = vmul.f32 %v1463, 0.5
  %v1976 = vmul.f32 %v1464, 0.5
  %v1977 = vmul.f32 %v1465, 0.5
  %v1978 = vmul.f32 %v1466, 0.5
  %v1979 = vmul.f32 %v1467, 0.5
  %v1980 = vmul.f32 %v1468, 0.5
  %v1981 = vmul.f32 %v1469, 0.5
  %v1982 = vmul.f32 %v1470, 0.5
  %v1983 = vmul.f32 %v1471, 0.5
  %v1984 = vmul.f32 %v1472, 0.5
  %v1985 = vmul.f32 %v1473, 0.5
  %v1986 = vmul.f32 %v1474, 0.5
  %v1987 = vmul.f32 %v1475, 0.5
  %v1988 = vmul.f32 %v1476, 0.5
  %v1989 = vmul.f32 %v1477, 0.5
  %v1990 = vmul.f32 %v1478, 0.5
  %v1991 = vmul.f32 %v1479, 0.5
  %v1992 = vmul.f32 %v1480, 0.5
  %v1993 = vmul.f32 %v1481, 0.5
  %v1994 = vmul.f32 %v1482, 0.5
  %v1995 = vmul.f32 %v1483, 0.5
  %v1996 = vmul.f32 %v1484, 0.5
  %v1997 = vmul.f32 %v1485, 0.5
  %v1998 = vmul.f32 %v1486, 0.5
  %v1999 = vmul.f32 %v1487, 0.5
  %v2000 = vmul.f32 %v1488, 0.5
  %v2001 = vmul.f32 %v1489, 0.5
  %v2002 = vmul.f32 %v1490, 0.5
  %v2003 = vmul.f32 %v1491, 0.5
  %v2004 = vmul.f32 %v1492, 0.5
  %v2005 = vmul.f32 %v1493, 0.5
  %v2006 = vmul.f32 %v1494, 0.5
  %v2007 = vmul.f32 %v1495, 0.5
  %v2008 = vmul.f32 %v1496, 0.5
  %v2009 = vmul.f32 %v1497, 0.5
  %v2010 = vmul.f32 %v1498, 0.5
  %v2011 = vmul.f32 %v1499, 0.5
  %v2012 = vmul.f32 %v1500, 0.5
  %v2013 = vmul.f32 %v1501, 0.5
  %v2014 = vmul.f32 %v1502, 0.5
  %v2015 = vmul.f32 %v1503, 0.5
  %v2016 = vmul.f32 %v1504, 0.5
  %v2017 = vmul.f32 %v1505, 0.5
  %v2018 = vmul.f32 %v1506, 0.5
  %v2019 = vmul.f32 %v1507, 0.5
  %v2020 = vmul.f32 %v1508, 0.5
  %v2021 = vmul.f32 %v1509, 0.5
  %v2022 = vmul.f32 %v1510, 0.5
  %v2023 = vmul.f32 %v1511, 0.5
  %v2024 = vmul.f32 %v1512, 0.5
  %v2025 = vmul.f32 %v1513, 0.5
  %v2026 = vmul.f32 %v1514, 0.5
  %v2027 = vmul.f32 %v1515, 0.5
  %v2028 = vmul.f32 %v1516, 0.5
  %v2029 = vmul.f32 %v1517, 0.5
  %v2030 = vmul.f32 %v1518, 0.5
  %v2031 = vmul.f32 %v1519, 0.5
  %v2032 = vmul.f32 %v1520, 0.5
  %v2033 = vmul.f32 %v1521, 0.5
  %v2034 = vmul.f32 %v1522, 0.5
  %v2035 = vmul.f32 %v1523, 0.5
  %v2036 = vmul.f32 %v1524, 0.5
  %v2037 = vmul.f32 %v1525, 0.5
  %v2038 = vmul.f32 %v1526, 0.5
  %v2039 = vmul.f32 %v1527, 0.5
  %v2040 = vmul.f32 %v1528, 0.5
  %v2041 = vmul.f32 %v1529, 0.5
  %v2042 = vmul.f32 %v1530, 0.5
  %v2043 = vmul.f32 %v1531, 0.5
  %v2044 = vmul.f32 %v1532, 0.5
  %v2045 = vmul.f32 %v1533, 0.5
  %v2046 = vmul.f32 %v1534, 0.5
  %v2047 = vmul.f32 %v1535, 0.5
  %v2048 = vmul.f32 %v1536, 0.5
  %v2049 = vmul.f32 %v1537, 0.5
  %v2050 = vmul.f32 %v1538, 0.5
  %v2051 = vmul.f32 %v1539, 0.5
  %v2052 = vmul.f32 %v1540, 0.5
  %v2053 = vmul.f32 %v1541, 0.5
  %v2054 = vmul.f32 %v1542, 0.5
  %v2055 = vmul.f32 %v1543, 0.5
  %v2056 = vmul.f32 %v1544, 0.5
  %v2057 = vmul.f32 %v1545, 0.5
  %v2058 = vmul.f32 %v1546, 0.5
  %v2059 = vmul.f32 %v1547, 0.5
  %v2060 = vld [vmem:[%s1] sm:$0xff]
  %v2061 = vld [vmem:[%s1 + $0x8] sm:$0x7f]
  %vm2062 = vcmask 121856
  %v2064 = vsel %vm2062, %v1548, 0
  %v2067 = vsel %vm2062, %v1549, 0
  %v2070 = vsel %vm2062, %v1550, 0
  %v2073 = vsel %vm2062, %v1551, 0
  %v2076 = vsel %vm2062, %v1552, 0
  %v2079 = vsel %vm2062, %v1553, 0
  %v2082 = vsel %vm2062, %v1554, 0
  %v2085 = vsel %vm2062, %v1555, 0
  %v2088 = vsel %vm2062, %v1556, 0
  %v2091 = vsel %vm2062, %v1557, 0
  %v2094 = vsel %vm2062, %v1558, 0
  %v2097 = vsel %vm2062, %v1559, 0
  %v2100 = vsel %vm2062, %v1560, 0
  %v2103 = vsel %vm2062, %v1561, 0
  %v2106 = vsel %vm2062, %v1562, 0
  %v2109 = vsel %vm2062, %v1563, 0
  %v2112 = vsel %vm2062, %v1564, 0
  %v2115 = vsel %vm2062, %v1565, 0
  %v2118 = vsel %vm2062, %v1566, 0
  %v2121 = vsel %vm2062, %v1567, 0
  %v2124 = vsel %vm2062, %v1568, 0
  %v2127 = vsel %vm2062, %v1569, 0
  %v2130 = vsel %vm2062, %v1570, 0
  %v2133 = vsel %vm2062, %v1571, 0
  %v2136 = vsel %vm2062, %v1572, 0
  %v2139 = vsel %vm2062, %v1573, 0
  %v2142 = vsel %vm2062, %v1574, 0
  %v2145 = vsel %vm2062, %v1575, 0
  %v2148 = vsel %vm2062, %v1576, 0
  %v2151 = vsel %vm2062, %v1577, 0
  %v2154 = vsel %vm2062, %v1578, 0
  %v2157 = vsel %vm2062, %v1579, 0
  %v2160 = vsel %vm2062, %v1580, 0
  %v2163 = vsel %vm2062, %v1581, 0
  %v2166 = vsel %vm2062, %v1582, 0
  %v2169 = vsel %vm2062, %v1583, 0
  %v2172 = vsel %vm2062, %v1584, 0
  %v2175 = vsel %vm2062, %v1585, 0
  %v2178 = vsel %vm2062, %v1586, 0
  %v2181 = vsel %vm2062, %v1587, 0
  %v2184 = vsel %vm2062, %v1588, 0
  %v2187 = vsel %vm2062, %v1589, 0
  %v2190 = vsel %vm2062, %v1590, 0
  %v2193 = vsel %vm2062, %v1591, 0
  %v2196 = vsel %vm2062, %v1592, 0
  %v2199 = vsel %vm2062, %v1593, 0
  %v2202 = vsel %vm2062, %v1594, 0
  %v2205 = vsel %vm2062, %v1595, 0
  %v2208 = vsel %vm2062, %v1596, 0
  %v2211 = vsel %vm2062, %v1597, 0
  %v2214 = vsel %vm2062, %v1598, 0
  %v2217 = vsel %vm2062, %v1599, 0
  %v2220 = vsel %vm2062, %v1600, 0
  %v2223 = vsel %vm2062, %v1601, 0
  %v2226 = vsel %vm2062, %v1602, 0
  %v2229 = vsel %vm2062, %v1603, 0
  %v2232 = vsel %vm2062, %v1604, 0
  %v2235 = vsel %vm2062, %v1605, 0
  %v2238 = vsel %vm2062, %v1606, 0
  %v2241 = vsel %vm2062, %v1607, 0
  %v2244 = vsel %vm2062, %v1608, 0
  %v2247 = vsel %vm2062, %v1609, 0
  %v2250 = vsel %vm2062, %v1610, 0
  %v2253 = vsel %vm2062, %v1611, 0
  %v2256 = vsel %vm2062, %v1612, 0
  %v2259 = vsel %vm2062, %v1613, 0
  %v2262 = vsel %vm2062, %v1614, 0
  %v2265 = vsel %vm2062, %v1615, 0
  %v2268 = vsel %vm2062, %v1616, 0
  %v2271 = vsel %vm2062, %v1617, 0
  %v2274 = vsel %vm2062, %v1618, 0
  %v2277 = vsel %vm2062, %v1619, 0
  %v2280 = vsel %vm2062, %v1620, 0
  %v2283 = vsel %vm2062, %v1621, 0
  %v2286 = vsel %vm2062, %v1622, 0
  %v2289 = vsel %vm2062, %v1623, 0
  %v2292 = vsel %vm2062, %v1624, 0
  %v2295 = vsel %vm2062, %v1625, 0
  %v2298 = vsel %vm2062, %v1626, 0
  %v2301 = vsel %vm2062, %v1627, 0
  %v2304 = vsel %vm2062, %v1628, 0
  %v2307 = vsel %vm2062, %v1629, 0
  %v2310 = vsel %vm2062, %v1630, 0
  %v2313 = vsel %vm2062, %v1631, 0
  %v2316 = vsel %vm2062, %v1632, 0
  %v2319 = vsel %vm2062, %v1633, 0
  %v2322 = vsel %vm2062, %v1634, 0
  %v2325 = vsel %vm2062, %v1635, 0
  %v2328 = vsel %vm2062, %v1636, 0
  %v2331 = vsel %vm2062, %v1637, 0
  %v2334 = vsel %vm2062, %v1638, 0
  %v2337 = vsel %vm2062, %v1639, 0
  %v2340 = vsel %vm2062, %v1640, 0
  %v2343 = vsel %vm2062, %v1641, 0
  %v2346 = vsel %vm2062, %v1642, 0
  %v2349 = vsel %vm2062, %v1643, 0
  %v2352 = vsel %vm2062, %v1644, 0
  %v2355 = vsel %vm2062, %v1645, 0
  %v2358 = vsel %vm2062, %v1646, 0
  %v2361 = vsel %vm2062, %v1647, 0
  %v2364 = vsel %vm2062, %v1648, 0
  %v2367 = vsel %vm2062, %v1649, 0
  %v2370 = vsel %vm2062, %v1650, 0
  %v2373 = vsel %vm2062, %v1651, 0
  %v2376 = vsel %vm2062, %v1652, 0
  %v2379 = vsel %vm2062, %v1653, 0
  %v2382 = vsel %vm2062, %v1654, 0
  %v2385 = vsel %vm2062, %v1655, 0
  %v2388 = vsel %vm2062, %v1656, 0
  %v2391 = vsel %vm2062, %v1657, 0
  %v2394 = vsel %vm2062, %v1658, 0
  %v2397 = vsel %vm2062, %v1659, 0
  %v2400 = vsel %vm2062, %v1660, 0
  %v2403 = vsel %vm2062, %v1661, 0
  %v2406 = vsel %vm2062, %v1662, 0
  %v2409 = vsel %vm2062, %v1663, 0
  %v2412 = vsel %vm2062, %v1664, 0
  %v2415 = vsel %vm2062, %v1665, 0
  %v2418 = vsel %vm2062, %v1666, 0
  %v2421 = vsel %vm2062, %v1667, 0
  %v2424 = vsel %vm2062, %v1668, 0
  %v2427 = vsel %vm2062, %v1669, 0
  %v2430 = vsel %vm2062, %v1670, 0
  %v2433 = vsel %vm2062, %v1671, 0
  %v2436 = vsel %vm2062, %v1672, 0
  %v2439 = vsel %vm2062, %v1673, 0
  %v2442 = vsel %vm2062, %v1674, 0
  %v2445 = vsel %vm2062, %v1675, 0
  %v2448 = vsel %vm2062, %v1676, 0
  %v2451 = vsel %vm2062, %v1677, 0
  %v2454 = vsel %vm2062, %v1678, 0
  %v2457 = vsel %vm2062, %v1679, 0
  %v2460 = vsel %vm2062, %v1680, 0
  %v2463 = vsel %vm2062, %v1681, 0
  %v2466 = vsel %vm2062, %v1682, 0
  %v2469 = vsel %vm2062, %v1683, 0
  %v2472 = vsel %vm2062, %v1684, 0
  %v2475 = vsel %vm2062, %v1685, 0
  %v2478 = vsel %vm2062, %v1686, 0
  %v2481 = vsel %vm2062, %v1687, 0
  %v2484 = vsel %vm2062, %v1688, 0
  %v2487 = vsel %vm2062, %v1689, 0
  %v2490 = vsel %vm2062, %v1690, 0
  %v2493 = vsel %vm2062, %v1691, 0
  %v2496 = vsel %vm2062, %v1692, 0
  %v2499 = vsel %vm2062, %v1693, 0
  %v2502 = vsel %vm2062, %v1694, 0
  %v2505 = vsel %vm2062, %v1695, 0
  %v2508 = vsel %vm2062, %v1696, 0
  %v2511 = vsel %vm2062, %v1697, 0
  %v2514 = vsel %vm2062, %v1698, 0
  %v2517 = vsel %vm2062, %v1699, 0
  %v2520 = vsel %vm2062, %v1700, 0
  %v2523 = vsel %vm2062, %v1701, 0
  %v2526 = vsel %vm2062, %v1702, 0
  %v2529 = vsel %vm2062, %v1703, 0
  %v2532 = vsel %vm2062, %v1704, 0
  %v2535 = vsel %vm2062, %v1705, 0
  %v2538 = vsel %vm2062, %v1706, 0
  %v2541 = vsel %vm2062, %v1707, 0
  %v2544 = vsel %vm2062, %v1708, 0
  %v2547 = vsel %vm2062, %v1709, 0
  %v2550 = vsel %vm2062, %v1710, 0
  %v2553 = vsel %vm2062, %v1711, 0
  %v2556 = vsel %vm2062, %v1712, 0
  %v2559 = vsel %vm2062, %v1713, 0
  %v2562 = vsel %vm2062, %v1714, 0
  %v2565 = vsel %vm2062, %v1715, 0
  %v2568 = vsel %vm2062, %v1716, 0
  %v2571 = vsel %vm2062, %v1717, 0
  %v2574 = vsel %vm2062, %v1718, 0
  %v2577 = vsel %vm2062, %v1719, 0
  %v2580 = vsel %vm2062, %v1720, 0
  %v2583 = vsel %vm2062, %v1721, 0
  %v2586 = vsel %vm2062, %v1722, 0
  %v2589 = vsel %vm2062, %v1723, 0
  %v2592 = vsel %vm2062, %v1724, 0
  %v2595 = vsel %vm2062, %v1725, 0
  %v2598 = vsel %vm2062, %v1726, 0
  %v2601 = vsel %vm2062, %v1727, 0
  %v2604 = vsel %vm2062, %v1728, 0
  %v2607 = vsel %vm2062, %v1729, 0
  %v2610 = vsel %vm2062, %v1730, 0
  %v2613 = vsel %vm2062, %v1731, 0
  %v2616 = vsel %vm2062, %v1732, 0
  %v2619 = vsel %vm2062, %v1733, 0
  %v2622 = vsel %vm2062, %v1734, 0
  %v2625 = vsel %vm2062, %v1735, 0
  %v2628 = vsel %vm2062, %v1736, 0
  %v2631 = vsel %vm2062, %v1737, 0
  %v2634 = vsel %vm2062, %v1738, 0
  %v2637 = vsel %vm2062, %v1739, 0
  %v2640 = vsel %vm2062, %v1740, 0
  %v2643 = vsel %vm2062, %v1741, 0
  %v2646 = vsel %vm2062, %v1742, 0
  %v2649 = vsel %vm2062, %v1743, 0
  %v2652 = vsel %vm2062, %v1744, 0
  %v2655 = vsel %vm2062, %v1745, 0
  %v2658 = vsel %vm2062, %v1746, 0
  %v2661 = vsel %vm2062, %v1747, 0
  %v2664 = vsel %vm2062, %v1748, 0
  %v2667 = vsel %vm2062, %v1749, 0
  %v2670 = vsel %vm2062, %v1750, 0
  %v2673 = vsel %vm2062, %v1751, 0
  %v2676 = vsel %vm2062, %v1752, 0
  %v2679 = vsel %vm2062, %v1753, 0
  %v2682 = vsel %vm2062, %v1754, 0
  %v2685 = vsel %vm2062, %v1755, 0
  %v2688 = vsel %vm2062, %v1756, 0
  %v2691 = vsel %vm2062, %v1757, 0
  %v2694 = vsel %vm2062, %v1758, 0
  %v2697 = vsel %vm2062, %v1759, 0
  %v2700 = vsel %vm2062, %v1760, 0
  %v2703 = vsel %vm2062, %v1761, 0
  %v2706 = vsel %vm2062, %v1762, 0
  %v2709 = vsel %vm2062, %v1763, 0
  %v2712 = vsel %vm2062, %v1764, 0
  %v2715 = vsel %vm2062, %v1765, 0
  %v2718 = vsel %vm2062, %v1766, 0
  %v2721 = vsel %vm2062, %v1767, 0
  %v2724 = vsel %vm2062, %v1768, 0
  %v2727 = vsel %vm2062, %v1769, 0
  %v2730 = vsel %vm2062, %v1770, 0
  %v2733 = vsel %vm2062, %v1771, 0
  %v2736 = vsel %vm2062, %v1772, 0
  %v2739 = vsel %vm2062, %v1773, 0
  %v2742 = vsel %vm2062, %v1774, 0
  %v2745 = vsel %vm2062, %v1775, 0
  %v2748 = vsel %vm2062, %v1776, 0
  %v2751 = vsel %vm2062, %v1777, 0
  %v2754 = vsel %vm2062, %v1778, 0
  %v2757 = vsel %vm2062, %v1779, 0
  %v2760 = vsel %vm2062, %v1780, 0
  %v2763 = vsel %vm2062, %v1781, 0
  %v2766 = vsel %vm2062, %v1782, 0
  %v2769 = vsel %vm2062, %v1783, 0
  %v2772 = vsel %vm2062, %v1784, 0
  %v2775 = vsel %vm2062, %v1785, 0
  %v2778 = vsel %vm2062, %v1786, 0
  %v2781 = vsel %vm2062, %v1787, 0
  %v2784 = vsel %vm2062, %v1788, 0
  %v2787 = vsel %vm2062, %v1789, 0
  %v2790 = vsel %vm2062, %v1790, 0
  %v2793 = vsel %vm2062, %v1791, 0
  %v2796 = vsel %vm2062, %v1792, 0
  %v2799 = vsel %vm2062, %v1793, 0
  %v2802 = vsel %vm2062, %v1794, 0
  %v2805 = vsel %vm2062, %v1795, 0
  %v2808 = vsel %vm2062, %v1796, 0
  %v2811 = vsel %vm2062, %v1797, 0
  %v2814 = vsel %vm2062, %v1798, 0
  %v2817 = vsel %vm2062, %v1799, 0
  %v2820 = vsel %vm2062, %v1800, 0
  %v2823 = vsel %vm2062, %v1801, 0
  %v2826 = vsel %vm2062, %v1802, 0
  %v2829 = vsel %vm2062, %v1803, 0
  %v2832 = vsel %vm2062, %v1804, 0
  %v2835 = vsel %vm2062, %v1805, 0
  %v2838 = vsel %vm2062, %v1806, 0
  %v2841 = vsel %vm2062, %v1807, 0
  %v2844 = vsel %vm2062, %v1808, 0
  %v2847 = vsel %vm2062, %v1809, 0
  %v2850 = vsel %vm2062, %v1810, 0
  %v2853 = vsel %vm2062, %v1811, 0
  %v2856 = vsel %vm2062, %v1812, 0
  %v2859 = vsel %vm2062, %v1813, 0
  %v2862 = vsel %vm2062, %v1814, 0
  %v2865 = vsel %vm2062, %v1815, 0
  %v2868 = vsel %vm2062, %v1816, 0
  %v2871 = vsel %vm2062, %v1817, 0
  %v2874 = vsel %vm2062, %v1818, 0
  %v2877 = vsel %vm2062, %v1819, 0
  %v2880 = vsel %vm2062, %v1820, 0
  %v2883 = vsel %vm2062, %v1821, 0
  %v2886 = vsel %vm2062, %v1822, 0
  %v2889 = vsel %vm2062, %v1823, 0
  %v2892 = vsel %vm2062, %v1824, 0
  %v2895 = vsel %vm2062, %v1825, 0
  %v2898 = vsel %vm2062, %v1826, 0
  %v2901 = vsel %vm2062, %v1827, 0
  %v2904 = vsel %vm2062, %v1828, 0
  %v2907 = vsel %vm2062, %v1829, 0
  %v2910 = vsel %vm2062, %v1830, 0
  %v2913 = vsel %vm2062, %v1831, 0
  %v2916 = vsel %vm2062, %v1832, 0
  %v2919 = vsel %vm2062, %v1833, 0
  %v2922 = vsel %vm2062, %v1834, 0
  %v2925 = vsel %vm2062, %v1835, 0
  %v2928 = vsel %vm2062, %v1836, 0
  %v2931 = vsel %vm2062, %v1837, 0
  %v2934 = vsel %vm2062, %v1838, 0
  %v2937 = vsel %vm2062, %v1839, 0
  %v2940 = vsel %vm2062, %v1840, 0
  %v2943 = vsel %vm2062, %v1841, 0
  %v2946 = vsel %vm2062, %v1842, 0
  %v2949 = vsel %vm2062, %v1843, 0
  %v2952 = vsel %vm2062, %v1844, 0
  %v2955 = vsel %vm2062, %v1845, 0
  %v2958 = vsel %vm2062, %v1846, 0
  %v2961 = vsel %vm2062, %v1847, 0
  %v2964 = vsel %vm2062, %v1848, 0
  %v2967 = vsel %vm2062, %v1849, 0
  %v2970 = vsel %vm2062, %v1850, 0
  %v2973 = vsel %vm2062, %v1851, 0
  %v2976 = vsel %vm2062, %v1852, 0
  %v2979 = vsel %vm2062, %v1853, 0
  %v2982 = vsel %vm2062, %v1854, 0
  %v2985 = vsel %vm2062, %v1855, 0
  %v2988 = vsel %vm2062, %v1856, 0
  %v2991 = vsel %vm2062, %v1857, 0
  %v2994 = vsel %vm2062, %v1858, 0
  %v2997 = vsel %vm2062, %v1859, 0
  %v3000 = vsel %vm2062, %v1860, 0
  %v3003 = vsel %vm2062, %v1861, 0
  %v3006 = vsel %vm2062, %v1862, 0
  %v3009 = vsel %vm2062, %v1863, 0
  %v3012 = vsel %vm2062, %v1864, 0
  %v3015 = vsel %vm2062, %v1865, 0
  %v3018 = vsel %vm2062, %v1866, 0
  %v3021 = vsel %vm2062, %v1867, 0
  %v3024 = vsel %vm2062, %v1868, 0
  %v3027 = vsel %vm2062, %v1869, 0
  %v3030 = vsel %vm2062, %v1870, 0
  %v3033 = vsel %vm2062, %v1871, 0
  %v3036 = vsel %vm2062, %v1872, 0
  %v3039 = vsel %vm2062, %v1873, 0
  %v3042 = vsel %vm2062, %v1874, 0
  %v3045 = vsel %vm2062, %v1875, 0
  %v3048 = vsel %vm2062, %v1876, 0
  %v3051 = vsel %vm2062, %v1877, 0
  %v3054 = vsel %vm2062, %v1878, 0
  %v3057 = vsel %vm2062, %v1879, 0
  %v3060 = vsel %vm2062, %v1880, 0
  %v3063 = vsel %vm2062, %v1881, 0
  %v3066 = vsel %vm2062, %v1882, 0
  %v3069 = vsel %vm2062, %v1883, 0
  %v3072 = vsel %vm2062, %v1884, 0
  %v3075 = vsel %vm2062, %v1885, 0
  %v3078 = vsel %vm2062, %v1886, 0
  %v3081 = vsel %vm2062, %v1887, 0
  %v3084 = vsel %vm2062, %v1888, 0
  %v3087 = vsel %vm2062, %v1889, 0
  %v3090 = vsel %vm2062, %v1890, 0
  %v3093 = vsel %vm2062, %v1891, 0
  %v3096 = vsel %vm2062, %v1892, 0
  %v3099 = vsel %vm2062, %v1893, 0
  %v3102 = vsel %vm2062, %v1894, 0
  %v3105 = vsel %vm2062, %v1895, 0
  %v3108 = vsel %vm2062, %v1896, 0
  %v3111 = vsel %vm2062, %v1897, 0
  %v3114 = vsel %vm2062, %v1898, 0
  %v3117 = vsel %vm2062, %v1899, 0
  %v3120 = vsel %vm2062, %v1900, 0
  %v3123 = vsel %vm2062, %v1901, 0
  %v3126 = vsel %vm2062, %v1902, 0
  %v3129 = vsel %vm2062, %v1903, 0
  %v3132 = vsel %vm2062, %v1904, 0
  %v3135 = vsel %vm2062, %v1905, 0
  %v3138 = vsel %vm2062, %v1906, 0
  %v3141 = vsel %vm2062, %v1907, 0
  %v3144 = vsel %vm2062, %v1908, 0
  %v3147 = vsel %vm2062, %v1909, 0
  %v3150 = vsel %vm2062, %v1910, 0
  %v3153 = vsel %vm2062, %v1911, 0
  %v3156 = vsel %vm2062, %v1912, 0
  %v3159 = vsel %vm2062, %v1913, 0
  %v3162 = vsel %vm2062, %v1914, 0
  %v3165 = vsel %vm2062, %v1915, 0
  %v3168 = vsel %vm2062, %v1916, 0
  %v3171 = vsel %vm2062, %v1917, 0
  %v3174 = vsel %vm2062, %v1918, 0
  %v3177 = vsel %vm2062, %v1919, 0
  %v3180 = vsel %vm2062, %v1920, 0
  %v3183 = vsel %vm2062, %v1921, 0
  %v3186 = vsel %vm2062, %v1922, 0
  %v3189 = vsel %vm2062, %v1923, 0
  %v3192 = vsel %vm2062, %v1924, 0
  %v3195 = vsel %vm2062, %v1925, 0
  %v3198 = vsel %vm2062, %v1926, 0
  %v3201 = vsel %vm2062, %v1927, 0
  %v3204 = vsel %vm2062, %v1928, 0
  %v3207 = vsel %vm2062, %v1929, 0
  %v3210 = vsel %vm2062, %v1930, 0
  %v3213 = vsel %vm2062, %v1931, 0
  %v3216 = vsel %vm2062, %v1932, 0
  %v3219 = vsel %vm2062, %v1933, 0
  %v3222 = vsel %vm2062, %v1934, 0
  %v3225 = vsel %vm2062, %v1935, 0
  %v3228 = vsel %vm2062, %v1936, 0
  %v3231 = vsel %vm2062, %v1937, 0
  %v3234 = vsel %vm2062, %v1938, 0
  %v3237 = vsel %vm2062, %v1939, 0
  %v3240 = vsel %vm2062, %v1940, 0
  %v3243 = vsel %vm2062, %v1941, 0
  %v3246 = vsel %vm2062, %v1942, 0
  %v3249 = vsel %vm2062, %v1943, 0
  %v3252 = vsel %vm2062, %v1944, 0
  %v3255 = vsel %vm2062, %v1945, 0
  %v3258 = vsel %vm2062, %v1946, 0
  %v3261 = vsel %vm2062, %v1947, 0
  %v3264 = vsel %vm2062, %v1948, 0
  %v3267 = vsel %vm2062, %v1949, 0
  %v3270 = vsel %vm2062, %v1950, 0
  %v3273 = vsel %vm2062, %v1951, 0
  %v3276 = vsel %vm2062, %v1952, 0
  %v3279 = vsel %vm2062, %v1953, 0
  %v3282 = vsel %vm2062, %v1954, 0
  %v3285 = vsel %vm2062, %v1955, 0
  %v3288 = vsel %vm2062, %v1956, 0
  %v3291 = vsel %vm2062, %v1957, 0
  %v3294 = vsel %vm2062, %v1958, 0
  %v3297 = vsel %vm2062, %v1959, 0
  %v3300 = vsel %vm2062, %v1960, 0
  %v3303 = vsel %vm2062, %v1961, 0
  %v3306 = vsel %vm2062, %v1962, 0
  %v3309 = vsel %vm2062, %v1963, 0
  %v3312 = vsel %vm2062, %v1964, 0
  %v3315 = vsel %vm2062, %v1965, 0
  %v3318 = vsel %vm2062, %v1966, 0
  %v3321 = vsel %vm2062, %v1967, 0
  %v3324 = vsel %vm2062, %v1968, 0
  %v3327 = vsel %vm2062, %v1969, 0
  %v3330 = vsel %vm2062, %v1970, 0
  %v3333 = vsel %vm2062, %v1971, 0
  %v3336 = vsel %vm2062, %v1972, 0
  %v3339 = vsel %vm2062, %v1973, 0
  %v3342 = vsel %vm2062, %v1974, 0
  %v3345 = vsel %vm2062, %v1975, 0
  %v3348 = vsel %vm2062, %v1976, 0
  %v3351 = vsel %vm2062, %v1977, 0
  %v3354 = vsel %vm2062, %v1978, 0
  %v3357 = vsel %vm2062, %v1979, 0
  %v3360 = vsel %vm2062, %v1980, 0
  %v3363 = vsel %vm2062, %v1981, 0
  %v3366 = vsel %vm2062, %v1982, 0
  %v3369 = vsel %vm2062, %v1983, 0
  %v3372 = vsel %vm2062, %v1984, 0
  %v3375 = vsel %vm2062, %v1985, 0
  %v3378 = vsel %vm2062, %v1986, 0
  %v3381 = vsel %vm2062, %v1987, 0
  %v3384 = vsel %vm2062, %v1988, 0
  %v3387 = vsel %vm2062, %v1989, 0
  %v3390 = vsel %vm2062, %v1990, 0
  %v3393 = vsel %vm2062, %v1991, 0
  %v3396 = vsel %vm2062, %v1992, 0
  %v3399 = vsel %vm2062, %v1993, 0
  %v3402 = vsel %vm2062, %v1994, 0
  %v3405 = vsel %vm2062, %v1995, 0
  %v3408 = vsel %vm2062, %v1996, 0
  %v3411 = vsel %vm2062, %v1997, 0
  %v3414 = vsel %vm2062, %v1998, 0
  %v3417 = vsel %vm2062, %v1999, 0
  %v3420 = vsel %vm2062, %v2000, 0
  %v3423 = vsel %vm2062, %v2001, 0
  %v3426 = vsel %vm2062, %v2002, 0
  %v3429 = vsel %vm2062, %v2003, 0
  %v3432 = vsel %vm2062, %v2004, 0
  %v3435 = vsel %vm2062, %v2005, 0
  %v3438 = vsel %vm2062, %v2006, 0
  %v3441 = vsel %vm2062, %v2007, 0
  %v3444 = vsel %vm2062, %v2008, 0
  %v3447 = vsel %vm2062, %v2009, 0
  %v3450 = vsel %vm2062, %v2010, 0
  %v3453 = vsel %vm2062, %v2011, 0
  %v3456 = vsel %vm2062, %v2012, 0
  %v3459 = vsel %vm2062, %v2013, 0
  %v3462 = vsel %vm2062, %v2014, 0
  %v3465 = vsel %vm2062, %v2015, 0
  %v3468 = vsel %vm2062, %v2016, 0
  %v3471 = vsel %vm2062, %v2017, 0
  %v3474 = vsel %vm2062, %v2018, 0
  %v3477 = vsel %vm2062, %v2019, 0
  %v3480 = vsel %vm2062, %v2020, 0
  %v3483 = vsel %vm2062, %v2021, 0
  %v3486 = vsel %vm2062, %v2022, 0
  %v3489 = vsel %vm2062, %v2023, 0
  %v3492 = vsel %vm2062, %v2024, 0
  %v3495 = vsel %vm2062, %v2025, 0
  %v3498 = vsel %vm2062, %v2026, 0
  %v3501 = vsel %vm2062, %v2027, 0
  %v3504 = vsel %vm2062, %v2028, 0
  %v3507 = vsel %vm2062, %v2029, 0
  %v3510 = vsel %vm2062, %v2030, 0
  %v3513 = vsel %vm2062, %v2031, 0
  %v3516 = vsel %vm2062, %v2032, 0
  %v3519 = vsel %vm2062, %v2033, 0
  %v3522 = vsel %vm2062, %v2034, 0
  %v3525 = vsel %vm2062, %v2035, 0
  %v3528 = vsel %vm2062, %v2036, 0
  %v3531 = vsel %vm2062, %v2037, 0
  %v3534 = vsel %vm2062, %v2038, 0
  %v3537 = vsel %vm2062, %v2039, 0
  %v3540 = vsel %vm2062, %v2040, 0
  %v3543 = vsel %vm2062, %v2041, 0
  %v3546 = vsel %vm2062, %v2042, 0
  %v3549 = vsel %vm2062, %v2043, 0
  %v3552 = vsel %vm2062, %v2044, 0
  %v3555 = vsel %vm2062, %v2045, 0
  %v3558 = vsel %vm2062, %v2046, 0
  %v3561 = vsel %vm2062, %v2047, 0
  %v3564 = vsel %vm2062, %v2048, 0
  %v3567 = vsel %vm2062, %v2049, 0
  %v3570 = vsel %vm2062, %v2050, 0
  %v3573 = vsel %vm2062, %v2051, 0
  %v3576 = vsel %vm2062, %v2052, 0
  %v3579 = vsel %vm2062, %v2053, 0
  %v3582 = vsel %vm2062, %v2054, 0
  %v3585 = vsel %vm2062, %v2055, 0
  %v3588 = vsel %vm2062, %v2056, 0
  %v3591 = vsel %vm2062, %v2057, 0
  %v3594 = vsel %vm2062, %v2058, 0
  %v3597 = vsel %vm2062, %v2059, 0
  %vm3599 = vcmask 1046528
  %v3601 = vsel %vm3599, %v2061, 0
  %3603 = vmatpush.msra.mxu0 0.0
  %3604 = vmatpush.msra.mxu0 0.0
  %3605 = vmatpush.msra.mxu0 0.0
  %3606 = vmatpush.msra.mxu0 0.0
  %3607 = vmatpush.msra.mxu0 0.0
  %3608 = vmatpush.msra.mxu0 0.0
  %3609 = vmatpush.msra.mxu0 0.0
  %3610 = vmatpush.msra.mxu0 0.0
  %3611 = vmatpush.msra.mxu0 0.0
  %3612 = vmatpush.msra.mxu0 0.0
  %3613 = vmatpush.msra.mxu0 0.0
  %3614 = vmatpush.msra.mxu0 0.0
  %3615 = vmatpush.msra.mxu0 0.0
  %3616 = vmatpush.msra.mxu0 0.0
  %3617 = vmatpush.msra.mxu0 %v3601
  %3618 = vmatpush.msra.mxu0 %v2060
  %3619 = vmatmul.f32.gmra.mxu0 %v2064
  %v3620 = vpop.f32.mrf.mxu0
  %v3621 = vadd.f32 0.0, %v3620
  %3622 = vmatmul.f32.gmra.mxu0 %v2067
  %v3623 = vpop.f32.mrf.mxu0
  %v3624 = vadd.f32 0.0, %v3623
  %3625 = vmatmul.f32.gmra.mxu0 %v2070
  %v3626 = vpop.f32.mrf.mxu0
  %v3627 = vadd.f32 0.0, %v3626
  %3628 = vmatmul.f32.gmra.mxu0 %v2073
  %v3629 = vpop.f32.mrf.mxu0
  %v3630 = vadd.f32 0.0, %v3629
  %3631 = vmatmul.f32.gmra.mxu0 %v2076
  %v3632 = vpop.f32.mrf.mxu0
  %v3633 = vadd.f32 0.0, %v3632
  %3634 = vmatmul.f32.gmra.mxu0 %v2079
  %v3635 = vpop.f32.mrf.mxu0
  %v3636 = vadd.f32 0.0, %v3635
  %3637 = vmatmul.f32.gmra.mxu0 %v2082
  %v3638 = vpop.f32.mrf.mxu0
  %v3639 = vadd.f32 0.0, %v3638
  %3640 = vmatmul.f32.gmra.mxu0 %v2085
  %v3641 = vpop.f32.mrf.mxu0
  %v3642 = vadd.f32 0.0, %v3641
  %3643 = vmatmul.f32.gmra.mxu0 %v2088
  %v3644 = vpop.f32.mrf.mxu0
  %v3645 = vadd.f32 0.0, %v3644
  %3646 = vmatmul.f32.gmra.mxu0 %v2091
  %v3647 = vpop.f32.mrf.mxu0
  %v3648 = vadd.f32 0.0, %v3647
  %3649 = vmatmul.f32.gmra.mxu0 %v2094
  %v3650 = vpop.f32.mrf.mxu0
  %v3651 = vadd.f32 0.0, %v3650
  %3652 = vmatmul.f32.gmra.mxu0 %v2097
  %v3653 = vpop.f32.mrf.mxu0
  %v3654 = vadd.f32 0.0, %v3653
  %3655 = vmatmul.f32.gmra.mxu0 %v2100
  %v3656 = vpop.f32.mrf.mxu0
  %v3657 = vadd.f32 0.0, %v3656
  %3658 = vmatmul.f32.gmra.mxu0 %v2103
  %v3659 = vpop.f32.mrf.mxu0
  %v3660 = vadd.f32 0.0, %v3659
  %3661 = vmatmul.f32.gmra.mxu0 %v2106
  %v3662 = vpop.f32.mrf.mxu0
  %v3663 = vadd.f32 0.0, %v3662
  %3664 = vmatmul.f32.gmra.mxu0 %v2109
  %v3665 = vpop.f32.mrf.mxu0
  %v3666 = vadd.f32 0.0, %v3665
  %3667 = vmatmul.f32.gmra.mxu0 %v2112
  %v3668 = vpop.f32.mrf.mxu0
  %v3669 = vadd.f32 0.0, %v3668
  %3670 = vmatmul.f32.gmra.mxu0 %v2115
  %v3671 = vpop.f32.mrf.mxu0
  %v3672 = vadd.f32 0.0, %v3671
  %3673 = vmatmul.f32.gmra.mxu0 %v2118
  %v3674 = vpop.f32.mrf.mxu0
  %v3675 = vadd.f32 0.0, %v3674
  %3676 = vmatmul.f32.gmra.mxu0 %v2121
  %v3677 = vpop.f32.mrf.mxu0
  %v3678 = vadd.f32 0.0, %v3677
  %3679 = vmatmul.f32.gmra.mxu0 %v2124
  %v3680 = vpop.f32.mrf.mxu0
  %v3681 = vadd.f32 0.0, %v3680
  %3682 = vmatmul.f32.gmra.mxu0 %v2127
  %v3683 = vpop.f32.mrf.mxu0
  %v3684 = vadd.f32 0.0, %v3683
  %3685 = vmatmul.f32.gmra.mxu0 %v2130
  %v3686 = vpop.f32.mrf.mxu0
  %v3687 = vadd.f32 0.0, %v3686
  %3688 = vmatmul.f32.gmra.mxu0 %v2133
  %v3689 = vpop.f32.mrf.mxu0
  %v3690 = vadd.f32 0.0, %v3689
  %3691 = vmatmul.f32.gmra.mxu0 %v2136
  %v3692 = vpop.f32.mrf.mxu0
  %v3693 = vadd.f32 0.0, %v3692
  %3694 = vmatmul.f32.gmra.mxu0 %v2139
  %v3695 = vpop.f32.mrf.mxu0
  %v3696 = vadd.f32 0.0, %v3695
  %3697 = vmatmul.f32.gmra.mxu0 %v2142
  %v3698 = vpop.f32.mrf.mxu0
  %v3699 = vadd.f32 0.0, %v3698
  %3700 = vmatmul.f32.gmra.mxu0 %v2145
  %v3701 = vpop.f32.mrf.mxu0
  %v3702 = vadd.f32 0.0, %v3701
  %3703 = vmatmul.f32.gmra.mxu0 %v2148
  %v3704 = vpop.f32.mrf.mxu0
  %v3705 = vadd.f32 0.0, %v3704
  %3706 = vmatmul.f32.gmra.mxu0 %v2151
  %v3707 = vpop.f32.mrf.mxu0
  %v3708 = vadd.f32 0.0, %v3707
  %3709 = vmatmul.f32.gmra.mxu0 %v2154
  %v3710 = vpop.f32.mrf.mxu0
  %v3711 = vadd.f32 0.0, %v3710
  %3712 = vmatmul.f32.gmra.mxu0 %v2157
  %v3713 = vpop.f32.mrf.mxu0
  %v3714 = vadd.f32 0.0, %v3713
  %3715 = vmatmul.f32.gmra.mxu0 %v2160
  %v3716 = vpop.f32.mrf.mxu0
  %v3717 = vadd.f32 0.0, %v3716
  %3718 = vmatmul.f32.gmra.mxu0 %v2163
  %v3719 = vpop.f32.mrf.mxu0
  %v3720 = vadd.f32 0.0, %v3719
  %3721 = vmatmul.f32.gmra.mxu0 %v2166
  %v3722 = vpop.f32.mrf.mxu0
  %v3723 = vadd.f32 0.0, %v3722
  %3724 = vmatmul.f32.gmra.mxu0 %v2169
  %v3725 = vpop.f32.mrf.mxu0
  %v3726 = vadd.f32 0.0, %v3725
  %3727 = vmatmul.f32.gmra.mxu0 %v2172
  %v3728 = vpop.f32.mrf.mxu0
  %v3729 = vadd.f32 0.0, %v3728
  %3730 = vmatmul.f32.gmra.mxu0 %v2175
  %v3731 = vpop.f32.mrf.mxu0
  %v3732 = vadd.f32 0.0, %v3731
  %3733 = vmatmul.f32.gmra.mxu0 %v2178
  %v3734 = vpop.f32.mrf.mxu0
  %v3735 = vadd.f32 0.0, %v3734
  %3736 = vmatmul.f32.gmra.mxu0 %v2181
  %v3737 = vpop.f32.mrf.mxu0
  %v3738 = vadd.f32 0.0, %v3737
  %3739 = vmatmul.f32.gmra.mxu0 %v2184
  %v3740 = vpop.f32.mrf.mxu0
  %v3741 = vadd.f32 0.0, %v3740
  %3742 = vmatmul.f32.gmra.mxu0 %v2187
  %v3743 = vpop.f32.mrf.mxu0
  %v3744 = vadd.f32 0.0, %v3743
  %3745 = vmatmul.f32.gmra.mxu0 %v2190
  %v3746 = vpop.f32.mrf.mxu0
  %v3747 = vadd.f32 0.0, %v3746
  %3748 = vmatmul.f32.gmra.mxu0 %v2193
  %v3749 = vpop.f32.mrf.mxu0
  %v3750 = vadd.f32 0.0, %v3749
  %3751 = vmatmul.f32.gmra.mxu0 %v2196
  %v3752 = vpop.f32.mrf.mxu0
  %v3753 = vadd.f32 0.0, %v3752
  %3754 = vmatmul.f32.gmra.mxu0 %v2199
  %v3755 = vpop.f32.mrf.mxu0
  %v3756 = vadd.f32 0.0, %v3755
  %3757 = vmatmul.f32.gmra.mxu0 %v2202
  %v3758 = vpop.f32.mrf.mxu0
  %v3759 = vadd.f32 0.0, %v3758
  %3760 = vmatmul.f32.gmra.mxu0 %v2205
  %v3761 = vpop.f32.mrf.mxu0
  %v3762 = vadd.f32 0.0, %v3761
  %3763 = vmatmul.f32.gmra.mxu0 %v2208
  %v3764 = vpop.f32.mrf.mxu0
  %v3765 = vadd.f32 0.0, %v3764
  %3766 = vmatmul.f32.gmra.mxu0 %v2211
  %v3767 = vpop.f32.mrf.mxu0
  %v3768 = vadd.f32 0.0, %v3767
  %3769 = vmatmul.f32.gmra.mxu0 %v2214
  %v3770 = vpop.f32.mrf.mxu0
  %v3771 = vadd.f32 0.0, %v3770
  %3772 = vmatmul.f32.gmra.mxu0 %v2217
  %v3773 = vpop.f32.mrf.mxu0
  %v3774 = vadd.f32 0.0, %v3773
  %3775 = vmatmul.f32.gmra.mxu0 %v2220
  %v3776 = vpop.f32.mrf.mxu0
  %v3777 = vadd.f32 0.0, %v3776
  %3778 = vmatmul.f32.gmra.mxu0 %v2223
  %v3779 = vpop.f32.mrf.mxu0
  %v3780 = vadd.f32 0.0, %v3779
  %3781 = vmatmul.f32.gmra.mxu0 %v2226
  %v3782 = vpop.f32.mrf.mxu0
  %v3783 = vadd.f32 0.0, %v3782
  %3784 = vmatmul.f32.gmra.mxu0 %v2229
  %v3785 = vpop.f32.mrf.mxu0
  %v3786 = vadd.f32 0.0, %v3785
  %3787 = vmatmul.f32.gmra.mxu0 %v2232
  %v3788 = vpop.f32.mrf.mxu0
  %v3789 = vadd.f32 0.0, %v3788
  %3790 = vmatmul.f32.gmra.mxu0 %v2235
  %v3791 = vpop.f32.mrf.mxu0
  %v3792 = vadd.f32 0.0, %v3791
  %3793 = vmatmul.f32.gmra.mxu0 %v2238
  %v3794 = vpop.f32.mrf.mxu0
  %v3795 = vadd.f32 0.0, %v3794
  %3796 = vmatmul.f32.gmra.mxu0 %v2241
  %v3797 = vpop.f32.mrf.mxu0
  %v3798 = vadd.f32 0.0, %v3797
  %3799 = vmatmul.f32.gmra.mxu0 %v2244
  %v3800 = vpop.f32.mrf.mxu0
  %v3801 = vadd.f32 0.0, %v3800
  %3802 = vmatmul.f32.gmra.mxu0 %v2247
  %v3803 = vpop.f32.mrf.mxu0
  %v3804 = vadd.f32 0.0, %v3803
  %3805 = vmatmul.f32.gmra.mxu0 %v2250
  %v3806 = vpop.f32.mrf.mxu0
  %v3807 = vadd.f32 0.0, %v3806
  %3808 = vmatmul.f32.gmra.mxu0 %v2253
  %v3809 = vpop.f32.mrf.mxu0
  %v3810 = vadd.f32 0.0, %v3809
  %3811 = vmatmul.f32.gmra.mxu0 %v2256
  %v3812 = vpop.f32.mrf.mxu0
  %v3813 = vadd.f32 0.0, %v3812
  %3814 = vmatmul.f32.gmra.mxu0 %v2259
  %v3815 = vpop.f32.mrf.mxu0
  %v3816 = vadd.f32 0.0, %v3815
  %3817 = vmatmul.f32.gmra.mxu0 %v2262
  %v3818 = vpop.f32.mrf.mxu0
  %v3819 = vadd.f32 0.0, %v3818
  %3820 = vmatmul.f32.gmra.mxu0 %v2265
  %v3821 = vpop.f32.mrf.mxu0
  %v3822 = vadd.f32 0.0, %v3821
  %3823 = vmatmul.f32.gmra.mxu0 %v2268
  %v3824 = vpop.f32.mrf.mxu0
  %v3825 = vadd.f32 0.0, %v3824
  %3826 = vmatmul.f32.gmra.mxu0 %v2271
  %v3827 = vpop.f32.mrf.mxu0
  %v3828 = vadd.f32 0.0, %v3827
  %3829 = vmatmul.f32.gmra.mxu0 %v2274
  %v3830 = vpop.f32.mrf.mxu0
  %v3831 = vadd.f32 0.0, %v3830
  %3832 = vmatmul.f32.gmra.mxu0 %v2277
  %v3833 = vpop.f32.mrf.mxu0
  %v3834 = vadd.f32 0.0, %v3833
  %3835 = vmatmul.f32.gmra.mxu0 %v2280
  %v3836 = vpop.f32.mrf.mxu0
  %v3837 = vadd.f32 0.0, %v3836
  %3838 = vmatmul.f32.gmra.mxu0 %v2283
  %v3839 = vpop.f32.mrf.mxu0
  %v3840 = vadd.f32 0.0, %v3839
  %3841 = vmatmul.f32.gmra.mxu0 %v2286
  %v3842 = vpop.f32.mrf.mxu0
  %v3843 = vadd.f32 0.0, %v3842
  %3844 = vmatmul.f32.gmra.mxu0 %v2289
  %v3845 = vpop.f32.mrf.mxu0
  %v3846 = vadd.f32 0.0, %v3845
  %3847 = vmatmul.f32.gmra.mxu0 %v2292
  %v3848 = vpop.f32.mrf.mxu0
  %v3849 = vadd.f32 0.0, %v3848
  %3850 = vmatmul.f32.gmra.mxu0 %v2295
  %v3851 = vpop.f32.mrf.mxu0
  %v3852 = vadd.f32 0.0, %v3851
  %3853 = vmatmul.f32.gmra.mxu0 %v2298
  %v3854 = vpop.f32.mrf.mxu0
  %v3855 = vadd.f32 0.0, %v3854
  %3856 = vmatmul.f32.gmra.mxu0 %v2301
  %v3857 = vpop.f32.mrf.mxu0
  %v3858 = vadd.f32 0.0, %v3857
  %3859 = vmatmul.f32.gmra.mxu0 %v2304
  %v3860 = vpop.f32.mrf.mxu0
  %v3861 = vadd.f32 0.0, %v3860
  %3862 = vmatmul.f32.gmra.mxu0 %v2307
  %v3863 = vpop.f32.mrf.mxu0
  %v3864 = vadd.f32 0.0, %v3863
  %3865 = vmatmul.f32.gmra.mxu0 %v2310
  %v3866 = vpop.f32.mrf.mxu0
  %v3867 = vadd.f32 0.0, %v3866
  %3868 = vmatmul.f32.gmra.mxu0 %v2313
  %v3869 = vpop.f32.mrf.mxu0
  %v3870 = vadd.f32 0.0, %v3869
  %3871 = vmatmul.f32.gmra.mxu0 %v2316
  %v3872 = vpop.f32.mrf.mxu0
  %v3873 = vadd.f32 0.0, %v3872
  %3874 = vmatmul.f32.gmra.mxu0 %v2319
  %v3875 = vpop.f32.mrf.mxu0
  %v3876 = vadd.f32 0.0, %v3875
  %3877 = vmatmul.f32.gmra.mxu0 %v2322
  %v3878 = vpop.f32.mrf.mxu0
  %v3879 = vadd.f32 0.0, %v3878
  %3880 = vmatmul.f32.gmra.mxu0 %v2325
  %v3881 = vpop.f32.mrf.mxu0
  %v3882 = vadd.f32 0.0, %v3881
  %3883 = vmatmul.f32.gmra.mxu0 %v2328
  %v3884 = vpop.f32.mrf.mxu0
  %v3885 = vadd.f32 0.0, %v3884
  %3886 = vmatmul.f32.gmra.mxu0 %v2331
  %v3887 = vpop.f32.mrf.mxu0
  %v3888 = vadd.f32 0.0, %v3887
  %3889 = vmatmul.f32.gmra.mxu0 %v2334
  %v3890 = vpop.f32.mrf.mxu0
  %v3891 = vadd.f32 0.0, %v3890
  %3892 = vmatmul.f32.gmra.mxu0 %v2337
  %v3893 = vpop.f32.mrf.mxu0
  %v3894 = vadd.f32 0.0, %v3893
  %3895 = vmatmul.f32.gmra.mxu0 %v2340
  %v3896 = vpop.f32.mrf.mxu0
  %v3897 = vadd.f32 0.0, %v3896
  %3898 = vmatmul.f32.gmra.mxu0 %v2343
  %v3899 = vpop.f32.mrf.mxu0
  %v3900 = vadd.f32 0.0, %v3899
  %3901 = vmatmul.f32.gmra.mxu0 %v2346
  %v3902 = vpop.f32.mrf.mxu0
  %v3903 = vadd.f32 0.0, %v3902
  %3904 = vmatmul.f32.gmra.mxu0 %v2349
  %v3905 = vpop.f32.mrf.mxu0
  %v3906 = vadd.f32 0.0, %v3905
  %3907 = vmatmul.f32.gmra.mxu0 %v2352
  %v3908 = vpop.f32.mrf.mxu0
  %v3909 = vadd.f32 0.0, %v3908
  %3910 = vmatmul.f32.gmra.mxu0 %v2355
  %v3911 = vpop.f32.mrf.mxu0
  %v3912 = vadd.f32 0.0, %v3911
  %3913 = vmatmul.f32.gmra.mxu0 %v2358
  %v3914 = vpop.f32.mrf.mxu0
  %v3915 = vadd.f32 0.0, %v3914
  %3916 = vmatmul.f32.gmra.mxu0 %v2361
  %v3917 = vpop.f32.mrf.mxu0
  %v3918 = vadd.f32 0.0, %v3917
  %3919 = vmatmul.f32.gmra.mxu0 %v2364
  %v3920 = vpop.f32.mrf.mxu0
  %v3921 = vadd.f32 0.0, %v3920
  %3922 = vmatmul.f32.gmra.mxu0 %v2367
  %v3923 = vpop.f32.mrf.mxu0
  %v3924 = vadd.f32 0.0, %v3923
  %3925 = vmatmul.f32.gmra.mxu0 %v2370
  %v3926 = vpop.f32.mrf.mxu0
  %v3927 = vadd.f32 0.0, %v3926
  %3928 = vmatmul.f32.gmra.mxu0 %v2373
  %v3929 = vpop.f32.mrf.mxu0
  %v3930 = vadd.f32 0.0, %v3929
  %3931 = vmatmul.f32.gmra.mxu0 %v2376
  %v3932 = vpop.f32.mrf.mxu0
  %v3933 = vadd.f32 0.0, %v3932
  %3934 = vmatmul.f32.gmra.mxu0 %v2379
  %v3935 = vpop.f32.mrf.mxu0
  %v3936 = vadd.f32 0.0, %v3935
  %3937 = vmatmul.f32.gmra.mxu0 %v2382
  %v3938 = vpop.f32.mrf.mxu0
  %v3939 = vadd.f32 0.0, %v3938
  %3940 = vmatmul.f32.gmra.mxu0 %v2385
  %v3941 = vpop.f32.mrf.mxu0
  %v3942 = vadd.f32 0.0, %v3941
  %3943 = vmatmul.f32.gmra.mxu0 %v2388
  %v3944 = vpop.f32.mrf.mxu0
  %v3945 = vadd.f32 0.0, %v3944
  %3946 = vmatmul.f32.gmra.mxu0 %v2391
  %v3947 = vpop.f32.mrf.mxu0
  %v3948 = vadd.f32 0.0, %v3947
  %3949 = vmatmul.f32.gmra.mxu0 %v2394
  %v3950 = vpop.f32.mrf.mxu0
  %v3951 = vadd.f32 0.0, %v3950
  %3952 = vmatmul.f32.gmra.mxu0 %v2397
  %v3953 = vpop.f32.mrf.mxu0
  %v3954 = vadd.f32 0.0, %v3953
  %3955 = vmatmul.f32.gmra.mxu0 %v2400
  %v3956 = vpop.f32.mrf.mxu0
  %v3957 = vadd.f32 0.0, %v3956
  %3958 = vmatmul.f32.gmra.mxu0 %v2403
  %v3959 = vpop.f32.mrf.mxu0
  %v3960 = vadd.f32 0.0, %v3959
  %3961 = vmatmul.f32.gmra.mxu0 %v2406
  %v3962 = vpop.f32.mrf.mxu0
  %v3963 = vadd.f32 0.0, %v3962
  %3964 = vmatmul.f32.gmra.mxu0 %v2409
  %v3965 = vpop.f32.mrf.mxu0
  %v3966 = vadd.f32 0.0, %v3965
  %3967 = vmatmul.f32.gmra.mxu0 %v2412
  %v3968 = vpop.f32.mrf.mxu0
  %v3969 = vadd.f32 0.0, %v3968
  %3970 = vmatmul.f32.gmra.mxu0 %v2415
  %v3971 = vpop.f32.mrf.mxu0
  %v3972 = vadd.f32 0.0, %v3971
  %3973 = vmatmul.f32.gmra.mxu0 %v2418
  %v3974 = vpop.f32.mrf.mxu0
  %v3975 = vadd.f32 0.0, %v3974
  %3976 = vmatmul.f32.gmra.mxu0 %v2421
  %v3977 = vpop.f32.mrf.mxu0
  %v3978 = vadd.f32 0.0, %v3977
  %3979 = vmatmul.f32.gmra.mxu0 %v2424
  %v3980 = vpop.f32.mrf.mxu0
  %v3981 = vadd.f32 0.0, %v3980
  %3982 = vmatmul.f32.gmra.mxu0 %v2427
  %v3983 = vpop.f32.mrf.mxu0
  %v3984 = vadd.f32 0.0, %v3983
  %3985 = vmatmul.f32.gmra.mxu0 %v2430
  %v3986 = vpop.f32.mrf.mxu0
  %v3987 = vadd.f32 0.0, %v3986
  %3988 = vmatmul.f32.gmra.mxu0 %v2433
  %v3989 = vpop.f32.mrf.mxu0
  %v3990 = vadd.f32 0.0, %v3989
  %3991 = vmatmul.f32.gmra.mxu0 %v2436
  %v3992 = vpop.f32.mrf.mxu0
  %v3993 = vadd.f32 0.0, %v3992
  %3994 = vmatmul.f32.gmra.mxu0 %v2439
  %v3995 = vpop.f32.mrf.mxu0
  %v3996 = vadd.f32 0.0, %v3995
  %3997 = vmatmul.f32.gmra.mxu0 %v2442
  %v3998 = vpop.f32.mrf.mxu0
  %v3999 = vadd.f32 0.0, %v3998
  %4000 = vmatmul.f32.gmra.mxu0 %v2445
  %v4001 = vpop.f32.mrf.mxu0
  %v4002 = vadd.f32 0.0, %v4001
  %4003 = vmatmul.f32.gmra.mxu0 %v2448
  %v4004 = vpop.f32.mrf.mxu0
  %v4005 = vadd.f32 0.0, %v4004
  %4006 = vmatmul.f32.gmra.mxu0 %v2451
  %v4007 = vpop.f32.mrf.mxu0
  %v4008 = vadd.f32 0.0, %v4007
  %4009 = vmatmul.f32.gmra.mxu0 %v2454
  %v4010 = vpop.f32.mrf.mxu0
  %v4011 = vadd.f32 0.0, %v4010
  %4012 = vmatmul.f32.gmra.mxu0 %v2457
  %v4013 = vpop.f32.mrf.mxu0
  %v4014 = vadd.f32 0.0, %v4013
  %4015 = vmatmul.f32.gmra.mxu0 %v2460
  %v4016 = vpop.f32.mrf.mxu0
  %v4017 = vadd.f32 0.0, %v4016
  %4018 = vmatmul.f32.gmra.mxu0 %v2463
  %v4019 = vpop.f32.mrf.mxu0
  %v4020 = vadd.f32 0.0, %v4019
  %4021 = vmatmul.f32.gmra.mxu0 %v2466
  %v4022 = vpop.f32.mrf.mxu0
  %v4023 = vadd.f32 0.0, %v4022
  %4024 = vmatmul.f32.gmra.mxu0 %v2469
  %v4025 = vpop.f32.mrf.mxu0
  %v4026 = vadd.f32 0.0, %v4025
  %4027 = vmatmul.f32.gmra.mxu0 %v2472
  %v4028 = vpop.f32.mrf.mxu0
  %v4029 = vadd.f32 0.0, %v4028
  %4030 = vmatmul.f32.gmra.mxu0 %v2475
  %v4031 = vpop.f32.mrf.mxu0
  %v4032 = vadd.f32 0.0, %v4031
  %4033 = vmatmul.f32.gmra.mxu0 %v2478
  %v4034 = vpop.f32.mrf.mxu0
  %v4035 = vadd.f32 0.0, %v4034
  %4036 = vmatmul.f32.gmra.mxu0 %v2481
  %v4037 = vpop.f32.mrf.mxu0
  %v4038 = vadd.f32 0.0, %v4037
  %4039 = vmatmul.f32.gmra.mxu0 %v2484
  %v4040 = vpop.f32.mrf.mxu0
  %v4041 = vadd.f32 0.0, %v4040
  %4042 = vmatmul.f32.gmra.mxu0 %v2487
  %v4043 = vpop.f32.mrf.mxu0
  %v4044 = vadd.f32 0.0, %v4043
  %4045 = vmatmul.f32.gmra.mxu0 %v2490
  %v4046 = vpop.f32.mrf.mxu0
  %v4047 = vadd.f32 0.0, %v4046
  %4048 = vmatmul.f32.gmra.mxu0 %v2493
  %v4049 = vpop.f32.mrf.mxu0
  %v4050 = vadd.f32 0.0, %v4049
  %4051 = vmatmul.f32.gmra.mxu0 %v2496
  %v4052 = vpop.f32.mrf.mxu0
  %v4053 = vadd.f32 0.0, %v4052
  %4054 = vmatmul.f32.gmra.mxu0 %v2499
  %v4055 = vpop.f32.mrf.mxu0
  %v4056 = vadd.f32 0.0, %v4055
  %4057 = vmatmul.f32.gmra.mxu0 %v2502
  %v4058 = vpop.f32.mrf.mxu0
  %v4059 = vadd.f32 0.0, %v4058
  %4060 = vmatmul.f32.gmra.mxu0 %v2505
  %v4061 = vpop.f32.mrf.mxu0
  %v4062 = vadd.f32 0.0, %v4061
  %4063 = vmatmul.f32.gmra.mxu0 %v2508
  %v4064 = vpop.f32.mrf.mxu0
  %v4065 = vadd.f32 0.0, %v4064
  %4066 = vmatmul.f32.gmra.mxu0 %v2511
  %v4067 = vpop.f32.mrf.mxu0
  %v4068 = vadd.f32 0.0, %v4067
  %4069 = vmatmul.f32.gmra.mxu0 %v2514
  %v4070 = vpop.f32.mrf.mxu0
  %v4071 = vadd.f32 0.0, %v4070
  %4072 = vmatmul.f32.gmra.mxu0 %v2517
  %v4073 = vpop.f32.mrf.mxu0
  %v4074 = vadd.f32 0.0, %v4073
  %4075 = vmatmul.f32.gmra.mxu0 %v2520
  %v4076 = vpop.f32.mrf.mxu0
  %v4077 = vadd.f32 0.0, %v4076
  %4078 = vmatmul.f32.gmra.mxu0 %v2523
  %v4079 = vpop.f32.mrf.mxu0
  %v4080 = vadd.f32 0.0, %v4079
  %4081 = vmatmul.f32.gmra.mxu0 %v2526
  %v4082 = vpop.f32.mrf.mxu0
  %v4083 = vadd.f32 0.0, %v4082
  %4084 = vmatmul.f32.gmra.mxu0 %v2529
  %v4085 = vpop.f32.mrf.mxu0
  %v4086 = vadd.f32 0.0, %v4085
  %4087 = vmatmul.f32.gmra.mxu0 %v2532
  %v4088 = vpop.f32.mrf.mxu0
  %v4089 = vadd.f32 0.0, %v4088
  %4090 = vmatmul.f32.gmra.mxu0 %v2535
  %v4091 = vpop.f32.mrf.mxu0
  %v4092 = vadd.f32 0.0, %v4091
  %4093 = vmatmul.f32.gmra.mxu0 %v2538
  %v4094 = vpop.f32.mrf.mxu0
  %v4095 = vadd.f32 0.0, %v4094
  %4096 = vmatmul.f32.gmra.mxu0 %v2541
  %v4097 = vpop.f32.mrf.mxu0
  %v4098 = vadd.f32 0.0, %v4097
  %4099 = vmatmul.f32.gmra.mxu0 %v2544
  %v4100 = vpop.f32.mrf.mxu0
  %v4101 = vadd.f32 0.0, %v4100
  %4102 = vmatmul.f32.gmra.mxu0 %v2547
  %v4103 = vpop.f32.mrf.mxu0
  %v4104 = vadd.f32 0.0, %v4103
  %4105 = vmatmul.f32.gmra.mxu0 %v2550
  %v4106 = vpop.f32.mrf.mxu0
  %v4107 = vadd.f32 0.0, %v4106
  %4108 = vmatmul.f32.gmra.mxu0 %v2553
  %v4109 = vpop.f32.mrf.mxu0
  %v4110 = vadd.f32 0.0, %v4109
  %4111 = vmatmul.f32.gmra.mxu0 %v2556
  %v4112 = vpop.f32.mrf.mxu0
  %v4113 = vadd.f32 0.0, %v4112
  %4114 = vmatmul.f32.gmra.mxu0 %v2559
  %v4115 = vpop.f32.mrf.mxu0
  %v4116 = vadd.f32 0.0, %v4115
  %4117 = vmatmul.f32.gmra.mxu0 %v2562
  %v4118 = vpop.f32.mrf.mxu0
  %v4119 = vadd.f32 0.0, %v4118
  %4120 = vmatmul.f32.gmra.mxu0 %v2565
  %v4121 = vpop.f32.mrf.mxu0
  %v4122 = vadd.f32 0.0, %v4121
  %4123 = vmatmul.f32.gmra.mxu0 %v2568
  %v4124 = vpop.f32.mrf.mxu0
  %v4125 = vadd.f32 0.0, %v4124
  %4126 = vmatmul.f32.gmra.mxu0 %v2571
  %v4127 = vpop.f32.mrf.mxu0
  %v4128 = vadd.f32 0.0, %v4127
  %4129 = vmatmul.f32.gmra.mxu0 %v2574
  %v4130 = vpop.f32.mrf.mxu0
  %v4131 = vadd.f32 0.0, %v4130
  %4132 = vmatmul.f32.gmra.mxu0 %v2577
  %v4133 = vpop.f32.mrf.mxu0
  %v4134 = vadd.f32 0.0, %v4133
  %4135 = vmatmul.f32.gmra.mxu0 %v2580
  %v4136 = vpop.f32.mrf.mxu0
  %v4137 = vadd.f32 0.0, %v4136
  %4138 = vmatmul.f32.gmra.mxu0 %v2583
  %v4139 = vpop.f32.mrf.mxu0
  %v4140 = vadd.f32 0.0, %v4139
  %4141 = vmatmul.f32.gmra.mxu0 %v2586
  %v4142 = vpop.f32.mrf.mxu0
  %v4143 = vadd.f32 0.0, %v4142
  %4144 = vmatmul.f32.gmra.mxu0 %v2589
  %v4145 = vpop.f32.mrf.mxu0
  %v4146 = vadd.f32 0.0, %v4145
  %4147 = vmatmul.f32.gmra.mxu0 %v2592
  %v4148 = vpop.f32.mrf.mxu0
  %v4149 = vadd.f32 0.0, %v4148
  %4150 = vmatmul.f32.gmra.mxu0 %v2595
  %v4151 = vpop.f32.mrf.mxu0
  %v4152 = vadd.f32 0.0, %v4151
  %4153 = vmatmul.f32.gmra.mxu0 %v2598
  %v4154 = vpop.f32.mrf.mxu0
  %v4155 = vadd.f32 0.0, %v4154
  %4156 = vmatmul.f32.gmra.mxu0 %v2601
  %v4157 = vpop.f32.mrf.mxu0
  %v4158 = vadd.f32 0.0, %v4157
  %4159 = vmatmul.f32.gmra.mxu0 %v2604
  %v4160 = vpop.f32.mrf.mxu0
  %v4161 = vadd.f32 0.0, %v4160
  %4162 = vmatmul.f32.gmra.mxu0 %v2607
  %v4163 = vpop.f32.mrf.mxu0
  %v4164 = vadd.f32 0.0, %v4163
  %4165 = vmatmul.f32.gmra.mxu0 %v2610
  %v4166 = vpop.f32.mrf.mxu0
  %v4167 = vadd.f32 0.0, %v4166
  %4168 = vmatmul.f32.gmra.mxu0 %v2613
  %v4169 = vpop.f32.mrf.mxu0
  %v4170 = vadd.f32 0.0, %v4169
  %4171 = vmatmul.f32.gmra.mxu0 %v2616
  %v4172 = vpop.f32.mrf.mxu0
  %v4173 = vadd.f32 0.0, %v4172
  %4174 = vmatmul.f32.gmra.mxu0 %v2619
  %v4175 = vpop.f32.mrf.mxu0
  %v4176 = vadd.f32 0.0, %v4175
  %4177 = vmatmul.f32.gmra.mxu0 %v2622
  %v4178 = vpop.f32.mrf.mxu0
  %v4179 = vadd.f32 0.0, %v4178
  %4180 = vmatmul.f32.gmra.mxu0 %v2625
  %v4181 = vpop.f32.mrf.mxu0
  %v4182 = vadd.f32 0.0, %v4181
  %4183 = vmatmul.f32.gmra.mxu0 %v2628
  %v4184 = vpop.f32.mrf.mxu0
  %v4185 = vadd.f32 0.0, %v4184
  %4186 = vmatmul.f32.gmra.mxu0 %v2631
  %v4187 = vpop.f32.mrf.mxu0
  %v4188 = vadd.f32 0.0, %v4187
  %4189 = vmatmul.f32.gmra.mxu0 %v2634
  %v4190 = vpop.f32.mrf.mxu0
  %v4191 = vadd.f32 0.0, %v4190
  %4192 = vmatmul.f32.gmra.mxu0 %v2637
  %v4193 = vpop.f32.mrf.mxu0
  %v4194 = vadd.f32 0.0, %v4193
  %4195 = vmatmul.f32.gmra.mxu0 %v2640
  %v4196 = vpop.f32.mrf.mxu0
  %v4197 = vadd.f32 0.0, %v4196
  %4198 = vmatmul.f32.gmra.mxu0 %v2643
  %v4199 = vpop.f32.mrf.mxu0
  %v4200 = vadd.f32 0.0, %v4199
  %4201 = vmatmul.f32.gmra.mxu0 %v2646
  %v4202 = vpop.f32.mrf.mxu0
  %v4203 = vadd.f32 0.0, %v4202
  %4204 = vmatmul.f32.gmra.mxu0 %v2649
  %v4205 = vpop.f32.mrf.mxu0
  %v4206 = vadd.f32 0.0, %v4205
  %4207 = vmatmul.f32.gmra.mxu0 %v2652
  %v4208 = vpop.f32.mrf.mxu0
  %v4209 = vadd.f32 0.0, %v4208
  %4210 = vmatmul.f32.gmra.mxu0 %v2655
  %v4211 = vpop.f32.mrf.mxu0
  %v4212 = vadd.f32 0.0, %v4211
  %4213 = vmatmul.f32.gmra.mxu0 %v2658
  %v4214 = vpop.f32.mrf.mxu0
  %v4215 = vadd.f32 0.0, %v4214
  %4216 = vmatmul.f32.gmra.mxu0 %v2661
  %v4217 = vpop.f32.mrf.mxu0
  %v4218 = vadd.f32 0.0, %v4217
  %4219 = vmatmul.f32.gmra.mxu0 %v2664
  %v4220 = vpop.f32.mrf.mxu0
  %v4221 = vadd.f32 0.0, %v4220
  %4222 = vmatmul.f32.gmra.mxu0 %v2667
  %v4223 = vpop.f32.mrf.mxu0
  %v4224 = vadd.f32 0.0, %v4223
  %4225 = vmatmul.f32.gmra.mxu0 %v2670
  %v4226 = vpop.f32.mrf.mxu0
  %v4227 = vadd.f32 0.0, %v4226
  %4228 = vmatmul.f32.gmra.mxu0 %v2673
  %v4229 = vpop.f32.mrf.mxu0
  %v4230 = vadd.f32 0.0, %v4229
  %4231 = vmatmul.f32.gmra.mxu0 %v2676
  %v4232 = vpop.f32.mrf.mxu0
  %v4233 = vadd.f32 0.0, %v4232
  %4234 = vmatmul.f32.gmra.mxu0 %v2679
  %v4235 = vpop.f32.mrf.mxu0
  %v4236 = vadd.f32 0.0, %v4235
  %4237 = vmatmul.f32.gmra.mxu0 %v2682
  %v4238 = vpop.f32.mrf.mxu0
  %v4239 = vadd.f32 0.0, %v4238
  %4240 = vmatmul.f32.gmra.mxu0 %v2685
  %v4241 = vpop.f32.mrf.mxu0
  %v4242 = vadd.f32 0.0, %v4241
  %4243 = vmatmul.f32.gmra.mxu0 %v2688
  %v4244 = vpop.f32.mrf.mxu0
  %v4245 = vadd.f32 0.0, %v4244
  %4246 = vmatmul.f32.gmra.mxu0 %v2691
  %v4247 = vpop.f32.mrf.mxu0
  %v4248 = vadd.f32 0.0, %v4247
  %4249 = vmatmul.f32.gmra.mxu0 %v2694
  %v4250 = vpop.f32.mrf.mxu0
  %v4251 = vadd.f32 0.0, %v4250
  %4252 = vmatmul.f32.gmra.mxu0 %v2697
  %v4253 = vpop.f32.mrf.mxu0
  %v4254 = vadd.f32 0.0, %v4253
  %4255 = vmatmul.f32.gmra.mxu0 %v2700
  %v4256 = vpop.f32.mrf.mxu0
  %v4257 = vadd.f32 0.0, %v4256
  %4258 = vmatmul.f32.gmra.mxu0 %v2703
  %v4259 = vpop.f32.mrf.mxu0
  %v4260 = vadd.f32 0.0, %v4259
  %4261 = vmatmul.f32.gmra.mxu0 %v2706
  %v4262 = vpop.f32.mrf.mxu0
  %v4263 = vadd.f32 0.0, %v4262
  %4264 = vmatmul.f32.gmra.mxu0 %v2709
  %v4265 = vpop.f32.mrf.mxu0
  %v4266 = vadd.f32 0.0, %v4265
  %4267 = vmatmul.f32.gmra.mxu0 %v2712
  %v4268 = vpop.f32.mrf.mxu0
  %v4269 = vadd.f32 0.0, %v4268
  %4270 = vmatmul.f32.gmra.mxu0 %v2715
  %v4271 = vpop.f32.mrf.mxu0
  %v4272 = vadd.f32 0.0, %v4271
  %4273 = vmatmul.f32.gmra.mxu0 %v2718
  %v4274 = vpop.f32.mrf.mxu0
  %v4275 = vadd.f32 0.0, %v4274
  %4276 = vmatmul.f32.gmra.mxu0 %v2721
  %v4277 = vpop.f32.mrf.mxu0
  %v4278 = vadd.f32 0.0, %v4277
  %4279 = vmatmul.f32.gmra.mxu0 %v2724
  %v4280 = vpop.f32.mrf.mxu0
  %v4281 = vadd.f32 0.0, %v4280
  %4282 = vmatmul.f32.gmra.mxu0 %v2727
  %v4283 = vpop.f32.mrf.mxu0
  %v4284 = vadd.f32 0.0, %v4283
  %4285 = vmatmul.f32.gmra.mxu0 %v2730
  %v4286 = vpop.f32.mrf.mxu0
  %v4287 = vadd.f32 0.0, %v4286
  %4288 = vmatmul.f32.gmra.mxu0 %v2733
  %v4289 = vpop.f32.mrf.mxu0
  %v4290 = vadd.f32 0.0, %v4289
  %4291 = vmatmul.f32.gmra.mxu0 %v2736
  %v4292 = vpop.f32.mrf.mxu0
  %v4293 = vadd.f32 0.0, %v4292
  %4294 = vmatmul.f32.gmra.mxu0 %v2739
  %v4295 = vpop.f32.mrf.mxu0
  %v4296 = vadd.f32 0.0, %v4295
  %4297 = vmatmul.f32.gmra.mxu0 %v2742
  %v4298 = vpop.f32.mrf.mxu0
  %v4299 = vadd.f32 0.0, %v4298
  %4300 = vmatmul.f32.gmra.mxu0 %v2745
  %v4301 = vpop.f32.mrf.mxu0
  %v4302 = vadd.f32 0.0, %v4301
  %4303 = vmatmul.f32.gmra.mxu0 %v2748
  %v4304 = vpop.f32.mrf.mxu0
  %v4305 = vadd.f32 0.0, %v4304
  %4306 = vmatmul.f32.gmra.mxu0 %v2751
  %v4307 = vpop.f32.mrf.mxu0
  %v4308 = vadd.f32 0.0, %v4307
  %4309 = vmatmul.f32.gmra.mxu0 %v2754
  %v4310 = vpop.f32.mrf.mxu0
  %v4311 = vadd.f32 0.0, %v4310
  %4312 = vmatmul.f32.gmra.mxu0 %v2757
  %v4313 = vpop.f32.mrf.mxu0
  %v4314 = vadd.f32 0.0, %v4313
  %4315 = vmatmul.f32.gmra.mxu0 %v2760
  %v4316 = vpop.f32.mrf.mxu0
  %v4317 = vadd.f32 0.0, %v4316
  %4318 = vmatmul.f32.gmra.mxu0 %v2763
  %v4319 = vpop.f32.mrf.mxu0
  %v4320 = vadd.f32 0.0, %v4319
  %4321 = vmatmul.f32.gmra.mxu0 %v2766
  %v4322 = vpop.f32.mrf.mxu0
  %v4323 = vadd.f32 0.0, %v4322
  %4324 = vmatmul.f32.gmra.mxu0 %v2769
  %v4325 = vpop.f32.mrf.mxu0
  %v4326 = vadd.f32 0.0, %v4325
  %4327 = vmatmul.f32.gmra.mxu0 %v2772
  %v4328 = vpop.f32.mrf.mxu0
  %v4329 = vadd.f32 0.0, %v4328
  %4330 = vmatmul.f32.gmra.mxu0 %v2775
  %v4331 = vpop.f32.mrf.mxu0
  %v4332 = vadd.f32 0.0, %v4331
  %4333 = vmatmul.f32.gmra.mxu0 %v2778
  %v4334 = vpop.f32.mrf.mxu0
  %v4335 = vadd.f32 0.0, %v4334
  %4336 = vmatmul.f32.gmra.mxu0 %v2781
  %v4337 = vpop.f32.mrf.mxu0
  %v4338 = vadd.f32 0.0, %v4337
  %4339 = vmatmul.f32.gmra.mxu0 %v2784
  %v4340 = vpop.f32.mrf.mxu0
  %v4341 = vadd.f32 0.0, %v4340
  %4342 = vmatmul.f32.gmra.mxu0 %v2787
  %v4343 = vpop.f32.mrf.mxu0
  %v4344 = vadd.f32 0.0, %v4343
  %4345 = vmatmul.f32.gmra.mxu0 %v2790
  %v4346 = vpop.f32.mrf.mxu0
  %v4347 = vadd.f32 0.0, %v4346
  %4348 = vmatmul.f32.gmra.mxu0 %v2793
  %v4349 = vpop.f32.mrf.mxu0
  %v4350 = vadd.f32 0.0, %v4349
  %4351 = vmatmul.f32.gmra.mxu0 %v2796
  %v4352 = vpop.f32.mrf.mxu0
  %v4353 = vadd.f32 0.0, %v4352
  %4354 = vmatmul.f32.gmra.mxu0 %v2799
  %v4355 = vpop.f32.mrf.mxu0
  %v4356 = vadd.f32 0.0, %v4355
  %4357 = vmatmul.f32.gmra.mxu0 %v2802
  %v4358 = vpop.f32.mrf.mxu0
  %v4359 = vadd.f32 0.0, %v4358
  %4360 = vmatmul.f32.gmra.mxu0 %v2805
  %v4361 = vpop.f32.mrf.mxu0
  %v4362 = vadd.f32 0.0, %v4361
  %4363 = vmatmul.f32.gmra.mxu0 %v2808
  %v4364 = vpop.f32.mrf.mxu0
  %v4365 = vadd.f32 0.0, %v4364
  %4366 = vmatmul.f32.gmra.mxu0 %v2811
  %v4367 = vpop.f32.mrf.mxu0
  %v4368 = vadd.f32 0.0, %v4367
  %4369 = vmatmul.f32.gmra.mxu0 %v2814
  %v4370 = vpop.f32.mrf.mxu0
  %v4371 = vadd.f32 0.0, %v4370
  %4372 = vmatmul.f32.gmra.mxu0 %v2817
  %v4373 = vpop.f32.mrf.mxu0
  %v4374 = vadd.f32 0.0, %v4373
  %4375 = vmatmul.f32.gmra.mxu0 %v2820
  %v4376 = vpop.f32.mrf.mxu0
  %v4377 = vadd.f32 0.0, %v4376
  %4378 = vmatmul.f32.gmra.mxu0 %v2823
  %v4379 = vpop.f32.mrf.mxu0
  %v4380 = vadd.f32 0.0, %v4379
  %4381 = vmatmul.f32.gmra.mxu0 %v2826
  %v4382 = vpop.f32.mrf.mxu0
  %v4383 = vadd.f32 0.0, %v4382
  %4384 = vmatmul.f32.gmra.mxu0 %v2829
  %v4385 = vpop.f32.mrf.mxu0
  %v4386 = vadd.f32 0.0, %v4385
  %4387 = vmatmul.f32.gmra.mxu0 %v2832
  %v4388 = vpop.f32.mrf.mxu0
  %v4389 = vadd.f32 0.0, %v4388
  %4390 = vmatmul.f32.gmra.mxu0 %v2835
  %v4391 = vpop.f32.mrf.mxu0
  %v4392 = vadd.f32 0.0, %v4391
  %4393 = vmatmul.f32.gmra.mxu0 %v2838
  %v4394 = vpop.f32.mrf.mxu0
  %v4395 = vadd.f32 0.0, %v4394
  %4396 = vmatmul.f32.gmra.mxu0 %v2841
  %v4397 = vpop.f32.mrf.mxu0
  %v4398 = vadd.f32 0.0, %v4397
  %4399 = vmatmul.f32.gmra.mxu0 %v2844
  %v4400 = vpop.f32.mrf.mxu0
  %v4401 = vadd.f32 0.0, %v4400
  %4402 = vmatmul.f32.gmra.mxu0 %v2847
  %v4403 = vpop.f32.mrf.mxu0
  %v4404 = vadd.f32 0.0, %v4403
  %4405 = vmatmul.f32.gmra.mxu0 %v2850
  %v4406 = vpop.f32.mrf.mxu0
  %v4407 = vadd.f32 0.0, %v4406
  %4408 = vmatmul.f32.gmra.mxu0 %v2853
  %v4409 = vpop.f32.mrf.mxu0
  %v4410 = vadd.f32 0.0, %v4409
  %4411 = vmatmul.f32.gmra.mxu0 %v2856
  %v4412 = vpop.f32.mrf.mxu0
  %v4413 = vadd.f32 0.0, %v4412
  %4414 = vmatmul.f32.gmra.mxu0 %v2859
  %v4415 = vpop.f32.mrf.mxu0
  %v4416 = vadd.f32 0.0, %v4415
  %4417 = vmatmul.f32.gmra.mxu0 %v2862
  %v4418 = vpop.f32.mrf.mxu0
  %v4419 = vadd.f32 0.0, %v4418
  %4420 = vmatmul.f32.gmra.mxu0 %v2865
  %v4421 = vpop.f32.mrf.mxu0
  %v4422 = vadd.f32 0.0, %v4421
  %4423 = vmatmul.f32.gmra.mxu0 %v2868
  %v4424 = vpop.f32.mrf.mxu0
  %v4425 = vadd.f32 0.0, %v4424
  %4426 = vmatmul.f32.gmra.mxu0 %v2871
  %v4427 = vpop.f32.mrf.mxu0
  %v4428 = vadd.f32 0.0, %v4427
  %4429 = vmatmul.f32.gmra.mxu0 %v2874
  %v4430 = vpop.f32.mrf.mxu0
  %v4431 = vadd.f32 0.0, %v4430
  %4432 = vmatmul.f32.gmra.mxu0 %v2877
  %v4433 = vpop.f32.mrf.mxu0
  %v4434 = vadd.f32 0.0, %v4433
  %4435 = vmatmul.f32.gmra.mxu0 %v2880
  %v4436 = vpop.f32.mrf.mxu0
  %v4437 = vadd.f32 0.0, %v4436
  %4438 = vmatmul.f32.gmra.mxu0 %v2883
  %v4439 = vpop.f32.mrf.mxu0
  %v4440 = vadd.f32 0.0, %v4439
  %4441 = vmatmul.f32.gmra.mxu0 %v2886
  %v4442 = vpop.f32.mrf.mxu0
  %v4443 = vadd.f32 0.0, %v4442
  %4444 = vmatmul.f32.gmra.mxu0 %v2889
  %v4445 = vpop.f32.mrf.mxu0
  %v4446 = vadd.f32 0.0, %v4445
  %4447 = vmatmul.f32.gmra.mxu0 %v2892
  %v4448 = vpop.f32.mrf.mxu0
  %v4449 = vadd.f32 0.0, %v4448
  %4450 = vmatmul.f32.gmra.mxu0 %v2895
  %v4451 = vpop.f32.mrf.mxu0
  %v4452 = vadd.f32 0.0, %v4451
  %4453 = vmatmul.f32.gmra.mxu0 %v2898
  %v4454 = vpop.f32.mrf.mxu0
  %v4455 = vadd.f32 0.0, %v4454
  %4456 = vmatmul.f32.gmra.mxu0 %v2901
  %v4457 = vpop.f32.mrf.mxu0
  %v4458 = vadd.f32 0.0, %v4457
  %4459 = vmatmul.f32.gmra.mxu0 %v2904
  %v4460 = vpop.f32.mrf.mxu0
  %v4461 = vadd.f32 0.0, %v4460
  %4462 = vmatmul.f32.gmra.mxu0 %v2907
  %v4463 = vpop.f32.mrf.mxu0
  %v4464 = vadd.f32 0.0, %v4463
  %4465 = vmatmul.f32.gmra.mxu0 %v2910
  %v4466 = vpop.f32.mrf.mxu0
  %v4467 = vadd.f32 0.0, %v4466
  %4468 = vmatmul.f32.gmra.mxu0 %v2913
  %v4469 = vpop.f32.mrf.mxu0
  %v4470 = vadd.f32 0.0, %v4469
  %4471 = vmatmul.f32.gmra.mxu0 %v2916
  %v4472 = vpop.f32.mrf.mxu0
  %v4473 = vadd.f32 0.0, %v4472
  %4474 = vmatmul.f32.gmra.mxu0 %v2919
  %v4475 = vpop.f32.mrf.mxu0
  %v4476 = vadd.f32 0.0, %v4475
  %4477 = vmatmul.f32.gmra.mxu0 %v2922
  %v4478 = vpop.f32.mrf.mxu0
  %v4479 = vadd.f32 0.0, %v4478
  %4480 = vmatmul.f32.gmra.mxu0 %v2925
  %v4481 = vpop.f32.mrf.mxu0
  %v4482 = vadd.f32 0.0, %v4481
  %4483 = vmatmul.f32.gmra.mxu0 %v2928
  %v4484 = vpop.f32.mrf.mxu0
  %v4485 = vadd.f32 0.0, %v4484
  %4486 = vmatmul.f32.gmra.mxu0 %v2931
  %v4487 = vpop.f32.mrf.mxu0
  %v4488 = vadd.f32 0.0, %v4487
  %4489 = vmatmul.f32.gmra.mxu0 %v2934
  %v4490 = vpop.f32.mrf.mxu0
  %v4491 = vadd.f32 0.0, %v4490
  %4492 = vmatmul.f32.gmra.mxu0 %v2937
  %v4493 = vpop.f32.mrf.mxu0
  %v4494 = vadd.f32 0.0, %v4493
  %4495 = vmatmul.f32.gmra.mxu0 %v2940
  %v4496 = vpop.f32.mrf.mxu0
  %v4497 = vadd.f32 0.0, %v4496
  %4498 = vmatmul.f32.gmra.mxu0 %v2943
  %v4499 = vpop.f32.mrf.mxu0
  %v4500 = vadd.f32 0.0, %v4499
  %4501 = vmatmul.f32.gmra.mxu0 %v2946
  %v4502 = vpop.f32.mrf.mxu0
  %v4503 = vadd.f32 0.0, %v4502
  %4504 = vmatmul.f32.gmra.mxu0 %v2949
  %v4505 = vpop.f32.mrf.mxu0
  %v4506 = vadd.f32 0.0, %v4505
  %4507 = vmatmul.f32.gmra.mxu0 %v2952
  %v4508 = vpop.f32.mrf.mxu0
  %v4509 = vadd.f32 0.0, %v4508
  %4510 = vmatmul.f32.gmra.mxu0 %v2955
  %v4511 = vpop.f32.mrf.mxu0
  %v4512 = vadd.f32 0.0, %v4511
  %4513 = vmatmul.f32.gmra.mxu0 %v2958
  %v4514 = vpop.f32.mrf.mxu0
  %v4515 = vadd.f32 0.0, %v4514
  %4516 = vmatmul.f32.gmra.mxu0 %v2961
  %v4517 = vpop.f32.mrf.mxu0
  %v4518 = vadd.f32 0.0, %v4517
  %4519 = vmatmul.f32.gmra.mxu0 %v2964
  %v4520 = vpop.f32.mrf.mxu0
  %v4521 = vadd.f32 0.0, %v4520
  %4522 = vmatmul.f32.gmra.mxu0 %v2967
  %v4523 = vpop.f32.mrf.mxu0
  %v4524 = vadd.f32 0.0, %v4523
  %4525 = vmatmul.f32.gmra.mxu0 %v2970
  %v4526 = vpop.f32.mrf.mxu0
  %v4527 = vadd.f32 0.0, %v4526
  %4528 = vmatmul.f32.gmra.mxu0 %v2973
  %v4529 = vpop.f32.mrf.mxu0
  %v4530 = vadd.f32 0.0, %v4529
  %4531 = vmatmul.f32.gmra.mxu0 %v2976
  %v4532 = vpop.f32.mrf.mxu0
  %v4533 = vadd.f32 0.0, %v4532
  %4534 = vmatmul.f32.gmra.mxu0 %v2979
  %v4535 = vpop.f32.mrf.mxu0
  %v4536 = vadd.f32 0.0, %v4535
  %4537 = vmatmul.f32.gmra.mxu0 %v2982
  %v4538 = vpop.f32.mrf.mxu0
  %v4539 = vadd.f32 0.0, %v4538
  %4540 = vmatmul.f32.gmra.mxu0 %v2985
  %v4541 = vpop.f32.mrf.mxu0
  %v4542 = vadd.f32 0.0, %v4541
  %4543 = vmatmul.f32.gmra.mxu0 %v2988
  %v4544 = vpop.f32.mrf.mxu0
  %v4545 = vadd.f32 0.0, %v4544
  %4546 = vmatmul.f32.gmra.mxu0 %v2991
  %v4547 = vpop.f32.mrf.mxu0
  %v4548 = vadd.f32 0.0, %v4547
  %4549 = vmatmul.f32.gmra.mxu0 %v2994
  %v4550 = vpop.f32.mrf.mxu0
  %v4551 = vadd.f32 0.0, %v4550
  %4552 = vmatmul.f32.gmra.mxu0 %v2997
  %v4553 = vpop.f32.mrf.mxu0
  %v4554 = vadd.f32 0.0, %v4553
  %4555 = vmatmul.f32.gmra.mxu0 %v3000
  %v4556 = vpop.f32.mrf.mxu0
  %v4557 = vadd.f32 0.0, %v4556
  %4558 = vmatmul.f32.gmra.mxu0 %v3003
  %v4559 = vpop.f32.mrf.mxu0
  %v4560 = vadd.f32 0.0, %v4559
  %4561 = vmatmul.f32.gmra.mxu0 %v3006
  %v4562 = vpop.f32.mrf.mxu0
  %v4563 = vadd.f32 0.0, %v4562
  %4564 = vmatmul.f32.gmra.mxu0 %v3009
  %v4565 = vpop.f32.mrf.mxu0
  %v4566 = vadd.f32 0.0, %v4565
  %4567 = vmatmul.f32.gmra.mxu0 %v3012
  %v4568 = vpop.f32.mrf.mxu0
  %v4569 = vadd.f32 0.0, %v4568
  %4570 = vmatmul.f32.gmra.mxu0 %v3015
  %v4571 = vpop.f32.mrf.mxu0
  %v4572 = vadd.f32 0.0, %v4571
  %4573 = vmatmul.f32.gmra.mxu0 %v3018
  %v4574 = vpop.f32.mrf.mxu0
  %v4575 = vadd.f32 0.0, %v4574
  %4576 = vmatmul.f32.gmra.mxu0 %v3021
  %v4577 = vpop.f32.mrf.mxu0
  %v4578 = vadd.f32 0.0, %v4577
  %4579 = vmatmul.f32.gmra.mxu0 %v3024
  %v4580 = vpop.f32.mrf.mxu0
  %v4581 = vadd.f32 0.0, %v4580
  %4582 = vmatmul.f32.gmra.mxu0 %v3027
  %v4583 = vpop.f32.mrf.mxu0
  %v4584 = vadd.f32 0.0, %v4583
  %4585 = vmatmul.f32.gmra.mxu0 %v3030
  %v4586 = vpop.f32.mrf.mxu0
  %v4587 = vadd.f32 0.0, %v4586
  %4588 = vmatmul.f32.gmra.mxu0 %v3033
  %v4589 = vpop.f32.mrf.mxu0
  %v4590 = vadd.f32 0.0, %v4589
  %4591 = vmatmul.f32.gmra.mxu0 %v3036
  %v4592 = vpop.f32.mrf.mxu0
  %v4593 = vadd.f32 0.0, %v4592
  %4594 = vmatmul.f32.gmra.mxu0 %v3039
  %v4595 = vpop.f32.mrf.mxu0
  %v4596 = vadd.f32 0.0, %v4595
  %4597 = vmatmul.f32.gmra.mxu0 %v3042
  %v4598 = vpop.f32.mrf.mxu0
  %v4599 = vadd.f32 0.0, %v4598
  %4600 = vmatmul.f32.gmra.mxu0 %v3045
  %v4601 = vpop.f32.mrf.mxu0
  %v4602 = vadd.f32 0.0, %v4601
  %4603 = vmatmul.f32.gmra.mxu0 %v3048
  %v4604 = vpop.f32.mrf.mxu0
  %v4605 = vadd.f32 0.0, %v4604
  %4606 = vmatmul.f32.gmra.mxu0 %v3051
  %v4607 = vpop.f32.mrf.mxu0
  %v4608 = vadd.f32 0.0, %v4607
  %4609 = vmatmul.f32.gmra.mxu0 %v3054
  %v4610 = vpop.f32.mrf.mxu0
  %v4611 = vadd.f32 0.0, %v4610
  %4612 = vmatmul.f32.gmra.mxu0 %v3057
  %v4613 = vpop.f32.mrf.mxu0
  %v4614 = vadd.f32 0.0, %v4613
  %4615 = vmatmul.f32.gmra.mxu0 %v3060
  %v4616 = vpop.f32.mrf.mxu0
  %v4617 = vadd.f32 0.0, %v4616
  %4618 = vmatmul.f32.gmra.mxu0 %v3063
  %v4619 = vpop.f32.mrf.mxu0
  %v4620 = vadd.f32 0.0, %v4619
  %4621 = vmatmul.f32.gmra.mxu0 %v3066
  %v4622 = vpop.f32.mrf.mxu0
  %v4623 = vadd.f32 0.0, %v4622
  %4624 = vmatmul.f32.gmra.mxu0 %v3069
  %v4625 = vpop.f32.mrf.mxu0
  %v4626 = vadd.f32 0.0, %v4625
  %4627 = vmatmul.f32.gmra.mxu0 %v3072
  %v4628 = vpop.f32.mrf.mxu0
  %v4629 = vadd.f32 0.0, %v4628
  %4630 = vmatmul.f32.gmra.mxu0 %v3075
  %v4631 = vpop.f32.mrf.mxu0
  %v4632 = vadd.f32 0.0, %v4631
  %4633 = vmatmul.f32.gmra.mxu0 %v3078
  %v4634 = vpop.f32.mrf.mxu0
  %v4635 = vadd.f32 0.0, %v4634
  %4636 = vmatmul.f32.gmra.mxu0 %v3081
  %v4637 = vpop.f32.mrf.mxu0
  %v4638 = vadd.f32 0.0, %v4637
  %4639 = vmatmul.f32.gmra.mxu0 %v3084
  %v4640 = vpop.f32.mrf.mxu0
  %v4641 = vadd.f32 0.0, %v4640
  %4642 = vmatmul.f32.gmra.mxu0 %v3087
  %v4643 = vpop.f32.mrf.mxu0
  %v4644 = vadd.f32 0.0, %v4643
  %4645 = vmatmul.f32.gmra.mxu0 %v3090
  %v4646 = vpop.f32.mrf.mxu0
  %v4647 = vadd.f32 0.0, %v4646
  %4648 = vmatmul.f32.gmra.mxu0 %v3093
  %v4649 = vpop.f32.mrf.mxu0
  %v4650 = vadd.f32 0.0, %v4649
  %4651 = vmatmul.f32.gmra.mxu0 %v3096
  %v4652 = vpop.f32.mrf.mxu0
  %v4653 = vadd.f32 0.0, %v4652
  %4654 = vmatmul.f32.gmra.mxu0 %v3099
  %v4655 = vpop.f32.mrf.mxu0
  %v4656 = vadd.f32 0.0, %v4655
  %4657 = vmatmul.f32.gmra.mxu0 %v3102
  %v4658 = vpop.f32.mrf.mxu0
  %v4659 = vadd.f32 0.0, %v4658
  %4660 = vmatmul.f32.gmra.mxu0 %v3105
  %v4661 = vpop.f32.mrf.mxu0
  %v4662 = vadd.f32 0.0, %v4661
  %4663 = vmatmul.f32.gmra.mxu0 %v3108
  %v4664 = vpop.f32.mrf.mxu0
  %v4665 = vadd.f32 0.0, %v4664
  %4666 = vmatmul.f32.gmra.mxu0 %v3111
  %v4667 = vpop.f32.mrf.mxu0
  %v4668 = vadd.f32 0.0, %v4667
  %4669 = vmatmul.f32.gmra.mxu0 %v3114
  %v4670 = vpop.f32.mrf.mxu0
  %v4671 = vadd.f32 0.0, %v4670
  %4672 = vmatmul.f32.gmra.mxu0 %v3117
  %v4673 = vpop.f32.mrf.mxu0
  %v4674 = vadd.f32 0.0, %v4673
  %4675 = vmatmul.f32.gmra.mxu0 %v3120
  %v4676 = vpop.f32.mrf.mxu0
  %v4677 = vadd.f32 0.0, %v4676
  %4678 = vmatmul.f32.gmra.mxu0 %v3123
  %v4679 = vpop.f32.mrf.mxu0
  %v4680 = vadd.f32 0.0, %v4679
  %4681 = vmatmul.f32.gmra.mxu0 %v3126
  %v4682 = vpop.f32.mrf.mxu0
  %v4683 = vadd.f32 0.0, %v4682
  %4684 = vmatmul.f32.gmra.mxu0 %v3129
  %v4685 = vpop.f32.mrf.mxu0
  %v4686 = vadd.f32 0.0, %v4685
  %4687 = vmatmul.f32.gmra.mxu0 %v3132
  %v4688 = vpop.f32.mrf.mxu0
  %v4689 = vadd.f32 0.0, %v4688
  %4690 = vmatmul.f32.gmra.mxu0 %v3135
  %v4691 = vpop.f32.mrf.mxu0
  %v4692 = vadd.f32 0.0, %v4691
  %4693 = vmatmul.f32.gmra.mxu0 %v3138
  %v4694 = vpop.f32.mrf.mxu0
  %v4695 = vadd.f32 0.0, %v4694
  %4696 = vmatmul.f32.gmra.mxu0 %v3141
  %v4697 = vpop.f32.mrf.mxu0
  %v4698 = vadd.f32 0.0, %v4697
  %4699 = vmatmul.f32.gmra.mxu0 %v3144
  %v4700 = vpop.f32.mrf.mxu0
  %v4701 = vadd.f32 0.0, %v4700
  %4702 = vmatmul.f32.gmra.mxu0 %v3147
  %v4703 = vpop.f32.mrf.mxu0
  %v4704 = vadd.f32 0.0, %v4703
  %4705 = vmatmul.f32.gmra.mxu0 %v3150
  %v4706 = vpop.f32.mrf.mxu0
  %v4707 = vadd.f32 0.0, %v4706
  %4708 = vmatmul.f32.gmra.mxu0 %v3153
  %v4709 = vpop.f32.mrf.mxu0
  %v4710 = vadd.f32 0.0, %v4709
  %4711 = vmatmul.f32.gmra.mxu0 %v3156
  %v4712 = vpop.f32.mrf.mxu0
  %v4713 = vadd.f32 0.0, %v4712
  %4714 = vmatmul.f32.gmra.mxu0 %v3159
  %v4715 = vpop.f32.mrf.mxu0
  %v4716 = vadd.f32 0.0, %v4715
  %4717 = vmatmul.f32.gmra.mxu0 %v3162
  %v4718 = vpop.f32.mrf.mxu0
  %v4719 = vadd.f32 0.0, %v4718
  %4720 = vmatmul.f32.gmra.mxu0 %v3165
  %v4721 = vpop.f32.mrf.mxu0
  %v4722 = vadd.f32 0.0, %v4721
  %4723 = vmatmul.f32.gmra.mxu0 %v3168
  %v4724 = vpop.f32.mrf.mxu0
  %v4725 = vadd.f32 0.0, %v4724
  %4726 = vmatmul.f32.gmra.mxu0 %v3171
  %v4727 = vpop.f32.mrf.mxu0
  %v4728 = vadd.f32 0.0, %v4727
  %4729 = vmatmul.f32.gmra.mxu0 %v3174
  %v4730 = vpop.f32.mrf.mxu0
  %v4731 = vadd.f32 0.0, %v4730
  %4732 = vmatmul.f32.gmra.mxu0 %v3177
  %v4733 = vpop.f32.mrf.mxu0
  %v4734 = vadd.f32 0.0, %v4733
  %4735 = vmatmul.f32.gmra.mxu0 %v3180
  %v4736 = vpop.f32.mrf.mxu0
  %v4737 = vadd.f32 0.0, %v4736
  %4738 = vmatmul.f32.gmra.mxu0 %v3183
  %v4739 = vpop.f32.mrf.mxu0
  %v4740 = vadd.f32 0.0, %v4739
  %4741 = vmatmul.f32.gmra.mxu0 %v3186
  %v4742 = vpop.f32.mrf.mxu0
  %v4743 = vadd.f32 0.0, %v4742
  %4744 = vmatmul.f32.gmra.mxu0 %v3189
  %v4745 = vpop.f32.mrf.mxu0
  %v4746 = vadd.f32 0.0, %v4745
  %4747 = vmatmul.f32.gmra.mxu0 %v3192
  %v4748 = vpop.f32.mrf.mxu0
  %v4749 = vadd.f32 0.0, %v4748
  %4750 = vmatmul.f32.gmra.mxu0 %v3195
  %v4751 = vpop.f32.mrf.mxu0
  %v4752 = vadd.f32 0.0, %v4751
  %4753 = vmatmul.f32.gmra.mxu0 %v3198
  %v4754 = vpop.f32.mrf.mxu0
  %v4755 = vadd.f32 0.0, %v4754
  %4756 = vmatmul.f32.gmra.mxu0 %v3201
  %v4757 = vpop.f32.mrf.mxu0
  %v4758 = vadd.f32 0.0, %v4757
  %4759 = vmatmul.f32.gmra.mxu0 %v3204
  %v4760 = vpop.f32.mrf.mxu0
  %v4761 = vadd.f32 0.0, %v4760
  %4762 = vmatmul.f32.gmra.mxu0 %v3207
  %v4763 = vpop.f32.mrf.mxu0
  %v4764 = vadd.f32 0.0, %v4763
  %4765 = vmatmul.f32.gmra.mxu0 %v3210
  %v4766 = vpop.f32.mrf.mxu0
  %v4767 = vadd.f32 0.0, %v4766
  %4768 = vmatmul.f32.gmra.mxu0 %v3213
  %v4769 = vpop.f32.mrf.mxu0
  %v4770 = vadd.f32 0.0, %v4769
  %4771 = vmatmul.f32.gmra.mxu0 %v3216
  %v4772 = vpop.f32.mrf.mxu0
  %v4773 = vadd.f32 0.0, %v4772
  %4774 = vmatmul.f32.gmra.mxu0 %v3219
  %v4775 = vpop.f32.mrf.mxu0
  %v4776 = vadd.f32 0.0, %v4775
  %4777 = vmatmul.f32.gmra.mxu0 %v3222
  %v4778 = vpop.f32.mrf.mxu0
  %v4779 = vadd.f32 0.0, %v4778
  %4780 = vmatmul.f32.gmra.mxu0 %v3225
  %v4781 = vpop.f32.mrf.mxu0
  %v4782 = vadd.f32 0.0, %v4781
  %4783 = vmatmul.f32.gmra.mxu0 %v3228
  %v4784 = vpop.f32.mrf.mxu0
  %v4785 = vadd.f32 0.0, %v4784
  %4786 = vmatmul.f32.gmra.mxu0 %v3231
  %v4787 = vpop.f32.mrf.mxu0
  %v4788 = vadd.f32 0.0, %v4787
  %4789 = vmatmul.f32.gmra.mxu0 %v3234
  %v4790 = vpop.f32.mrf.mxu0
  %v4791 = vadd.f32 0.0, %v4790
  %4792 = vmatmul.f32.gmra.mxu0 %v3237
  %v4793 = vpop.f32.mrf.mxu0
  %v4794 = vadd.f32 0.0, %v4793
  %4795 = vmatmul.f32.gmra.mxu0 %v3240
  %v4796 = vpop.f32.mrf.mxu0
  %v4797 = vadd.f32 0.0, %v4796
  %4798 = vmatmul.f32.gmra.mxu0 %v3243
  %v4799 = vpop.f32.mrf.mxu0
  %v4800 = vadd.f32 0.0, %v4799
  %4801 = vmatmul.f32.gmra.mxu0 %v3246
  %v4802 = vpop.f32.mrf.mxu0
  %v4803 = vadd.f32 0.0, %v4802
  %4804 = vmatmul.f32.gmra.mxu0 %v3249
  %v4805 = vpop.f32.mrf.mxu0
  %v4806 = vadd.f32 0.0, %v4805
  %4807 = vmatmul.f32.gmra.mxu0 %v3252
  %v4808 = vpop.f32.mrf.mxu0
  %v4809 = vadd.f32 0.0, %v4808
  %4810 = vmatmul.f32.gmra.mxu0 %v3255
  %v4811 = vpop.f32.mrf.mxu0
  %v4812 = vadd.f32 0.0, %v4811
  %4813 = vmatmul.f32.gmra.mxu0 %v3258
  %v4814 = vpop.f32.mrf.mxu0
  %v4815 = vadd.f32 0.0, %v4814
  %4816 = vmatmul.f32.gmra.mxu0 %v3261
  %v4817 = vpop.f32.mrf.mxu0
  %v4818 = vadd.f32 0.0, %v4817
  %4819 = vmatmul.f32.gmra.mxu0 %v3264
  %v4820 = vpop.f32.mrf.mxu0
  %v4821 = vadd.f32 0.0, %v4820
  %4822 = vmatmul.f32.gmra.mxu0 %v3267
  %v4823 = vpop.f32.mrf.mxu0
  %v4824 = vadd.f32 0.0, %v4823
  %4825 = vmatmul.f32.gmra.mxu0 %v3270
  %v4826 = vpop.f32.mrf.mxu0
  %v4827 = vadd.f32 0.0, %v4826
  %4828 = vmatmul.f32.gmra.mxu0 %v3273
  %v4829 = vpop.f32.mrf.mxu0
  %v4830 = vadd.f32 0.0, %v4829
  %4831 = vmatmul.f32.gmra.mxu0 %v3276
  %v4832 = vpop.f32.mrf.mxu0
  %v4833 = vadd.f32 0.0, %v4832
  %4834 = vmatmul.f32.gmra.mxu0 %v3279
  %v4835 = vpop.f32.mrf.mxu0
  %v4836 = vadd.f32 0.0, %v4835
  %4837 = vmatmul.f32.gmra.mxu0 %v3282
  %v4838 = vpop.f32.mrf.mxu0
  %v4839 = vadd.f32 0.0, %v4838
  %4840 = vmatmul.f32.gmra.mxu0 %v3285
  %v4841 = vpop.f32.mrf.mxu0
  %v4842 = vadd.f32 0.0, %v4841
  %4843 = vmatmul.f32.gmra.mxu0 %v3288
  %v4844 = vpop.f32.mrf.mxu0
  %v4845 = vadd.f32 0.0, %v4844
  %4846 = vmatmul.f32.gmra.mxu0 %v3291
  %v4847 = vpop.f32.mrf.mxu0
  %v4848 = vadd.f32 0.0, %v4847
  %4849 = vmatmul.f32.gmra.mxu0 %v3294
  %v4850 = vpop.f32.mrf.mxu0
  %v4851 = vadd.f32 0.0, %v4850
  %4852 = vmatmul.f32.gmra.mxu0 %v3297
  %v4853 = vpop.f32.mrf.mxu0
  %v4854 = vadd.f32 0.0, %v4853
  %4855 = vmatmul.f32.gmra.mxu0 %v3300
  %v4856 = vpop.f32.mrf.mxu0
  %v4857 = vadd.f32 0.0, %v4856
  %4858 = vmatmul.f32.gmra.mxu0 %v3303
  %v4859 = vpop.f32.mrf.mxu0
  %v4860 = vadd.f32 0.0, %v4859
  %4861 = vmatmul.f32.gmra.mxu0 %v3306
  %v4862 = vpop.f32.mrf.mxu0
  %v4863 = vadd.f32 0.0, %v4862
  %4864 = vmatmul.f32.gmra.mxu0 %v3309
  %v4865 = vpop.f32.mrf.mxu0
  %v4866 = vadd.f32 0.0, %v4865
  %4867 = vmatmul.f32.gmra.mxu0 %v3312
  %v4868 = vpop.f32.mrf.mxu0
  %v4869 = vadd.f32 0.0, %v4868
  %4870 = vmatmul.f32.gmra.mxu0 %v3315
  %v4871 = vpop.f32.mrf.mxu0
  %v4872 = vadd.f32 0.0, %v4871
  %4873 = vmatmul.f32.gmra.mxu0 %v3318
  %v4874 = vpop.f32.mrf.mxu0
  %v4875 = vadd.f32 0.0, %v4874
  %4876 = vmatmul.f32.gmra.mxu0 %v3321
  %v4877 = vpop.f32.mrf.mxu0
  %v4878 = vadd.f32 0.0, %v4877
  %4879 = vmatmul.f32.gmra.mxu0 %v3324
  %v4880 = vpop.f32.mrf.mxu0
  %v4881 = vadd.f32 0.0, %v4880
  %4882 = vmatmul.f32.gmra.mxu0 %v3327
  %v4883 = vpop.f32.mrf.mxu0
  %v4884 = vadd.f32 0.0, %v4883
  %4885 = vmatmul.f32.gmra.mxu0 %v3330
  %v4886 = vpop.f32.mrf.mxu0
  %v4887 = vadd.f32 0.0, %v4886
  %4888 = vmatmul.f32.gmra.mxu0 %v3333
  %v4889 = vpop.f32.mrf.mxu0
  %v4890 = vadd.f32 0.0, %v4889
  %4891 = vmatmul.f32.gmra.mxu0 %v3336
  %v4892 = vpop.f32.mrf.mxu0
  %v4893 = vadd.f32 0.0, %v4892
  %4894 = vmatmul.f32.gmra.mxu0 %v3339
  %v4895 = vpop.f32.mrf.mxu0
  %v4896 = vadd.f32 0.0, %v4895
  %4897 = vmatmul.f32.gmra.mxu0 %v3342
  %v4898 = vpop.f32.mrf.mxu0
  %v4899 = vadd.f32 0.0, %v4898
  %4900 = vmatmul.f32.gmra.mxu0 %v3345
  %v4901 = vpop.f32.mrf.mxu0
  %v4902 = vadd.f32 0.0, %v4901
  %4903 = vmatmul.f32.gmra.mxu0 %v3348
  %v4904 = vpop.f32.mrf.mxu0
  %v4905 = vadd.f32 0.0, %v4904
  %4906 = vmatmul.f32.gmra.mxu0 %v3351
  %v4907 = vpop.f32.mrf.mxu0
  %v4908 = vadd.f32 0.0, %v4907
  %4909 = vmatmul.f32.gmra.mxu0 %v3354
  %v4910 = vpop.f32.mrf.mxu0
  %v4911 = vadd.f32 0.0, %v4910
  %4912 = vmatmul.f32.gmra.mxu0 %v3357
  %v4913 = vpop.f32.mrf.mxu0
  %v4914 = vadd.f32 0.0, %v4913
  %4915 = vmatmul.f32.gmra.mxu0 %v3360
  %v4916 = vpop.f32.mrf.mxu0
  %v4917 = vadd.f32 0.0, %v4916
  %4918 = vmatmul.f32.gmra.mxu0 %v3363
  %v4919 = vpop.f32.mrf.mxu0
  %v4920 = vadd.f32 0.0, %v4919
  %4921 = vmatmul.f32.gmra.mxu0 %v3366
  %v4922 = vpop.f32.mrf.mxu0
  %v4923 = vadd.f32 0.0, %v4922
  %4924 = vmatmul.f32.gmra.mxu0 %v3369
  %v4925 = vpop.f32.mrf.mxu0
  %v4926 = vadd.f32 0.0, %v4925
  %4927 = vmatmul.f32.gmra.mxu0 %v3372
  %v4928 = vpop.f32.mrf.mxu0
  %v4929 = vadd.f32 0.0, %v4928
  %4930 = vmatmul.f32.gmra.mxu0 %v3375
  %v4931 = vpop.f32.mrf.mxu0
  %v4932 = vadd.f32 0.0, %v4931
  %4933 = vmatmul.f32.gmra.mxu0 %v3378
  %v4934 = vpop.f32.mrf.mxu0
  %v4935 = vadd.f32 0.0, %v4934
  %4936 = vmatmul.f32.gmra.mxu0 %v3381
  %v4937 = vpop.f32.mrf.mxu0
  %v4938 = vadd.f32 0.0, %v4937
  %4939 = vmatmul.f32.gmra.mxu0 %v3384
  %v4940 = vpop.f32.mrf.mxu0
  %v4941 = vadd.f32 0.0, %v4940
  %4942 = vmatmul.f32.gmra.mxu0 %v3387
  %v4943 = vpop.f32.mrf.mxu0
  %v4944 = vadd.f32 0.0, %v4943
  %4945 = vmatmul.f32.gmra.mxu0 %v3390
  %v4946 = vpop.f32.mrf.mxu0
  %v4947 = vadd.f32 0.0, %v4946
  %4948 = vmatmul.f32.gmra.mxu0 %v3393
  %v4949 = vpop.f32.mrf.mxu0
  %v4950 = vadd.f32 0.0, %v4949
  %4951 = vmatmul.f32.gmra.mxu0 %v3396
  %v4952 = vpop.f32.mrf.mxu0
  %v4953 = vadd.f32 0.0, %v4952
  %4954 = vmatmul.f32.gmra.mxu0 %v3399
  %v4955 = vpop.f32.mrf.mxu0
  %v4956 = vadd.f32 0.0, %v4955
  %4957 = vmatmul.f32.gmra.mxu0 %v3402
  %v4958 = vpop.f32.mrf.mxu0
  %v4959 = vadd.f32 0.0, %v4958
  %4960 = vmatmul.f32.gmra.mxu0 %v3405
  %v4961 = vpop.f32.mrf.mxu0
  %v4962 = vadd.f32 0.0, %v4961
  %4963 = vmatmul.f32.gmra.mxu0 %v3408
  %v4964 = vpop.f32.mrf.mxu0
  %v4965 = vadd.f32 0.0, %v4964
  %4966 = vmatmul.f32.gmra.mxu0 %v3411
  %v4967 = vpop.f32.mrf.mxu0
  %v4968 = vadd.f32 0.0, %v4967
  %4969 = vmatmul.f32.gmra.mxu0 %v3414
  %v4970 = vpop.f32.mrf.mxu0
  %v4971 = vadd.f32 0.0, %v4970
  %4972 = vmatmul.f32.gmra.mxu0 %v3417
  %v4973 = vpop.f32.mrf.mxu0
  %v4974 = vadd.f32 0.0, %v4973
  %4975 = vmatmul.f32.gmra.mxu0 %v3420
  %v4976 = vpop.f32.mrf.mxu0
  %v4977 = vadd.f32 0.0, %v4976
  %4978 = vmatmul.f32.gmra.mxu0 %v3423
  %v4979 = vpop.f32.mrf.mxu0
  %v4980 = vadd.f32 0.0, %v4979
  %4981 = vmatmul.f32.gmra.mxu0 %v3426
  %v4982 = vpop.f32.mrf.mxu0
  %v4983 = vadd.f32 0.0, %v4982
  %4984 = vmatmul.f32.gmra.mxu0 %v3429
  %v4985 = vpop.f32.mrf.mxu0
  %v4986 = vadd.f32 0.0, %v4985
  %4987 = vmatmul.f32.gmra.mxu0 %v3432
  %v4988 = vpop.f32.mrf.mxu0
  %v4989 = vadd.f32 0.0, %v4988
  %4990 = vmatmul.f32.gmra.mxu0 %v3435
  %v4991 = vpop.f32.mrf.mxu0
  %v4992 = vadd.f32 0.0, %v4991
  %4993 = vmatmul.f32.gmra.mxu0 %v3438
  %v4994 = vpop.f32.mrf.mxu0
  %v4995 = vadd.f32 0.0, %v4994
  %4996 = vmatmul.f32.gmra.mxu0 %v3441
  %v4997 = vpop.f32.mrf.mxu0
  %v4998 = vadd.f32 0.0, %v4997
  %4999 = vmatmul.f32.gmra.mxu0 %v3444
  %v5000 = vpop.f32.mrf.mxu0
  %v5001 = vadd.f32 0.0, %v5000
  %5002 = vmatmul.f32.gmra.mxu0 %v3447
  %v5003 = vpop.f32.mrf.mxu0
  %v5004 = vadd.f32 0.0, %v5003
  %5005 = vmatmul.f32.gmra.mxu0 %v3450
  %v5006 = vpop.f32.mrf.mxu0
  %v5007 = vadd.f32 0.0, %v5006
  %5008 = vmatmul.f32.gmra.mxu0 %v3453
  %v5009 = vpop.f32.mrf.mxu0
  %v5010 = vadd.f32 0.0, %v5009
  %5011 = vmatmul.f32.gmra.mxu0 %v3456
  %v5012 = vpop.f32.mrf.mxu0
  %v5013 = vadd.f32 0.0, %v5012
  %5014 = vmatmul.f32.gmra.mxu0 %v3459
  %v5015 = vpop.f32.mrf.mxu0
  %v5016 = vadd.f32 0.0, %v5015
  %5017 = vmatmul.f32.gmra.mxu0 %v3462
  %v5018 = vpop.f32.mrf.mxu0
  %v5019 = vadd.f32 0.0, %v5018
  %5020 = vmatmul.f32.gmra.mxu0 %v3465
  %v5021 = vpop.f32.mrf.mxu0
  %v5022 = vadd.f32 0.0, %v5021
  %5023 = vmatmul.f32.gmra.mxu0 %v3468
  %v5024 = vpop.f32.mrf.mxu0
  %v5025 = vadd.f32 0.0, %v5024
  %5026 = vmatmul.f32.gmra.mxu0 %v3471
  %v5027 = vpop.f32.mrf.mxu0
  %v5028 = vadd.f32 0.0, %v5027
  %5029 = vmatmul.f32.gmra.mxu0 %v3474
  %v5030 = vpop.f32.mrf.mxu0
  %v5031 = vadd.f32 0.0, %v5030
  %5032 = vmatmul.f32.gmra.mxu0 %v3477
  %v5033 = vpop.f32.mrf.mxu0
  %v5034 = vadd.f32 0.0, %v5033
  %5035 = vmatmul.f32.gmra.mxu0 %v3480
  %v5036 = vpop.f32.mrf.mxu0
  %v5037 = vadd.f32 0.0, %v5036
  %5038 = vmatmul.f32.gmra.mxu0 %v3483
  %v5039 = vpop.f32.mrf.mxu0
  %v5040 = vadd.f32 0.0, %v5039
  %5041 = vmatmul.f32.gmra.mxu0 %v3486
  %v5042 = vpop.f32.mrf.mxu0
  %v5043 = vadd.f32 0.0, %v5042
  %5044 = vmatmul.f32.gmra.mxu0 %v3489
  %v5045 = vpop.f32.mrf.mxu0
  %v5046 = vadd.f32 0.0, %v5045
  %5047 = vmatmul.f32.gmra.mxu0 %v3492
  %v5048 = vpop.f32.mrf.mxu0
  %v5049 = vadd.f32 0.0, %v5048
  %5050 = vmatmul.f32.gmra.mxu0 %v3495
  %v5051 = vpop.f32.mrf.mxu0
  %v5052 = vadd.f32 0.0, %v5051
  %5053 = vmatmul.f32.gmra.mxu0 %v3498
  %v5054 = vpop.f32.mrf.mxu0
  %v5055 = vadd.f32 0.0, %v5054
  %5056 = vmatmul.f32.gmra.mxu0 %v3501
  %v5057 = vpop.f32.mrf.mxu0
  %v5058 = vadd.f32 0.0, %v5057
  %5059 = vmatmul.f32.gmra.mxu0 %v3504
  %v5060 = vpop.f32.mrf.mxu0
  %v5061 = vadd.f32 0.0, %v5060
  %5062 = vmatmul.f32.gmra.mxu0 %v3507
  %v5063 = vpop.f32.mrf.mxu0
  %v5064 = vadd.f32 0.0, %v5063
  %5065 = vmatmul.f32.gmra.mxu0 %v3510
  %v5066 = vpop.f32.mrf.mxu0
  %v5067 = vadd.f32 0.0, %v5066
  %5068 = vmatmul.f32.gmra.mxu0 %v3513
  %v5069 = vpop.f32.mrf.mxu0
  %v5070 = vadd.f32 0.0, %v5069
  %5071 = vmatmul.f32.gmra.mxu0 %v3516
  %v5072 = vpop.f32.mrf.mxu0
  %v5073 = vadd.f32 0.0, %v5072
  %5074 = vmatmul.f32.gmra.mxu0 %v3519
  %v5075 = vpop.f32.mrf.mxu0
  %v5076 = vadd.f32 0.0, %v5075
  %5077 = vmatmul.f32.gmra.mxu0 %v3522
  %v5078 = vpop.f32.mrf.mxu0
  %v5079 = vadd.f32 0.0, %v5078
  %5080 = vmatmul.f32.gmra.mxu0 %v3525
  %v5081 = vpop.f32.mrf.mxu0
  %v5082 = vadd.f32 0.0, %v5081
  %5083 = vmatmul.f32.gmra.mxu0 %v3528
  %v5084 = vpop.f32.mrf.mxu0
  %v5085 = vadd.f32 0.0, %v5084
  %5086 = vmatmul.f32.gmra.mxu0 %v3531
  %v5087 = vpop.f32.mrf.mxu0
  %v5088 = vadd.f32 0.0, %v5087
  %5089 = vmatmul.f32.gmra.mxu0 %v3534
  %v5090 = vpop.f32.mrf.mxu0
  %v5091 = vadd.f32 0.0, %v5090
  %5092 = vmatmul.f32.gmra.mxu0 %v3537
  %v5093 = vpop.f32.mrf.mxu0
  %v5094 = vadd.f32 0.0, %v5093
  %5095 = vmatmul.f32.gmra.mxu0 %v3540
  %v5096 = vpop.f32.mrf.mxu0
  %v5097 = vadd.f32 0.0, %v5096
  %5098 = vmatmul.f32.gmra.mxu0 %v3543
  %v5099 = vpop.f32.mrf.mxu0
  %v5100 = vadd.f32 0.0, %v5099
  %5101 = vmatmul.f32.gmra.mxu0 %v3546
  %v5102 = vpop.f32.mrf.mxu0
  %v5103 = vadd.f32 0.0, %v5102
  %5104 = vmatmul.f32.gmra.mxu0 %v3549
  %v5105 = vpop.f32.mrf.mxu0
  %v5106 = vadd.f32 0.0, %v5105
  %5107 = vmatmul.f32.gmra.mxu0 %v3552
  %v5108 = vpop.f32.mrf.mxu0
  %v5109 = vadd.f32 0.0, %v5108
  %5110 = vmatmul.f32.gmra.mxu0 %v3555
  %v5111 = vpop.f32.mrf.mxu0
  %v5112 = vadd.f32 0.0, %v5111
  %5113 = vmatmul.f32.gmra.mxu0 %v3558
  %v5114 = vpop.f32.mrf.mxu0
  %v5115 = vadd.f32 0.0, %v5114
  %5116 = vmatmul.f32.gmra.mxu0 %v3561
  %v5117 = vpop.f32.mrf.mxu0
  %v5118 = vadd.f32 0.0, %v5117
  %5119 = vmatmul.f32.gmra.mxu0 %v3564
  %v5120 = vpop.f32.mrf.mxu0
  %v5121 = vadd.f32 0.0, %v5120
  %5122 = vmatmul.f32.gmra.mxu0 %v3567
  %v5123 = vpop.f32.mrf.mxu0
  %v5124 = vadd.f32 0.0, %v5123
  %5125 = vmatmul.f32.gmra.mxu0 %v3570
  %v5126 = vpop.f32.mrf.mxu0
  %v5127 = vadd.f32 0.0, %v5126
  %5128 = vmatmul.f32.gmra.mxu0 %v3573
  %v5129 = vpop.f32.mrf.mxu0
  %v5130 = vadd.f32 0.0, %v5129
  %5131 = vmatmul.f32.gmra.mxu0 %v3576
  %v5132 = vpop.f32.mrf.mxu0
  %v5133 = vadd.f32 0.0, %v5132
  %5134 = vmatmul.f32.gmra.mxu0 %v3579
  %v5135 = vpop.f32.mrf.mxu0
  %v5136 = vadd.f32 0.0, %v5135
  %5137 = vmatmul.f32.gmra.mxu0 %v3582
  %v5138 = vpop.f32.mrf.mxu0
  %v5139 = vadd.f32 0.0, %v5138
  %5140 = vmatmul.f32.gmra.mxu0 %v3585
  %v5141 = vpop.f32.mrf.mxu0
  %v5142 = vadd.f32 0.0, %v5141
  %5143 = vmatmul.f32.gmra.mxu0 %v3588
  %v5144 = vpop.f32.mrf.mxu0
  %v5145 = vadd.f32 0.0, %v5144
  %5146 = vmatmul.f32.gmra.mxu0 %v3591
  %v5147 = vpop.f32.mrf.mxu0
  %v5148 = vadd.f32 0.0, %v5147
  %5149 = vmatmul.f32.gmra.mxu0 %v3594
  %v5150 = vpop.f32.mrf.mxu0
  %v5151 = vadd.f32 0.0, %v5150
  %5152 = vmatmul.f32.gmra.mxu0 %v3597
  %v5153 = vpop.f32.mrf.mxu0
  %v5154 = vadd.f32 0.0, %v5153
  %5155 = vdwg.mxu0
  %vm5156 = vcmask 15360
  %5157 = vst.msk [vmem:[%s2] sm:$0xff] %vm5156, %v3621
  %5158 = vst.msk [vmem:[%s2 + $0x8] sm:$0xff] %vm5156, %v3624
  %5159 = vst.msk [vmem:[%s2 + $0x10] sm:$0xff] %vm5156, %v3627
  %5160 = vst.msk [vmem:[%s2 + $0x18] sm:$0xff] %vm5156, %v3630
  %5161 = vst.msk [vmem:[%s2 + $0x20] sm:$0xff] %vm5156, %v3633
  %5162 = vst.msk [vmem:[%s2 + $0x28] sm:$0xff] %vm5156, %v3636
  %5163 = vst.msk [vmem:[%s2 + $0x30] sm:$0xff] %vm5156, %v3639
  %5164 = vst.msk [vmem:[%s2 + $0x38] sm:$0xff] %vm5156, %v3642
  %5165 = vst.msk [vmem:[%s2 + $0x40] sm:$0xff] %vm5156, %v3645
  %5166 = vst.msk [vmem:[%s2 + $0x48] sm:$0xff] %vm5156, %v3648
  %5167 = vst.msk [vmem:[%s2 + $0x50] sm:$0xff] %vm5156, %v3651
  %5168 = vst.msk [vmem:[%s2 + $0x58] sm:$0xff] %vm5156, %v3654
  %5169 = vst.msk [vmem:[%s2 + $0x60] sm:$0xff] %vm5156, %v3657
  %5170 = vst.msk [vmem:[%s2 + $0x68] sm:$0xff] %vm5156, %v3660
  %5171 = vst.msk [vmem:[%s2 + $0x70] sm:$0xff] %vm5156, %v3663
  %5172 = vst.msk [vmem:[%s2 + $0x78] sm:$0xff] %vm5156, %v3666
  %5173 = vst.msk [vmem:[%s2 + $0x80] sm:$0xff] %vm5156, %v3669
  %5174 = vst.msk [vmem:[%s2 + $0x88] sm:$0xff] %vm5156, %v3672
  %5175 = vst.msk [vmem:[%s2 + $0x90] sm:$0xff] %vm5156, %v3675
  %5176 = vst.msk [vmem:[%s2 + $0x98] sm:$0xff] %vm5156, %v3678
  %5177 = vst.msk [vmem:[%s2 + $0xa0] sm:$0xff] %vm5156, %v3681
  %5178 = vst.msk [vmem:[%s2 + $0xa8] sm:$0xff] %vm5156, %v3684
  %5179 = vst.msk [vmem:[%s2 + $0xb0] sm:$0xff] %vm5156, %v3687
  %5180 = vst.msk [vmem:[%s2 + $0xb8] sm:$0xff] %vm5156, %v3690
  %5181 = vst.msk [vmem:[%s2 + $0xc0] sm:$0xff] %vm5156, %v3693
  %5182 = vst.msk [vmem:[%s2 + $0xc8] sm:$0xff] %vm5156, %v3696
  %5183 = vst.msk [vmem:[%s2 + $0xd0] sm:$0xff] %vm5156, %v3699
  %5184 = vst.msk [vmem:[%s2 + $0xd8] sm:$0xff] %vm5156, %v3702
  %5185 = vst.msk [vmem:[%s2 + $0xe0] sm:$0xff] %vm5156, %v3705
  %5186 = vst.msk [vmem:[%s2 + $0xe8] sm:$0xff] %vm5156, %v3708
  %5187 = vst.msk [vmem:[%s2 + $0xf0] sm:$0xff] %vm5156, %v3711
  %5188 = vst.msk [vmem:[%s2 + $0xf8] sm:$0xff] %vm5156, %v3714
  %5189 = vst.msk [vmem:[%s2 + $0x100] sm:$0xff] %vm5156, %v3717
  %5190 = vst.msk [vmem:[%s2 + $0x108] sm:$0xff] %vm5156, %v3720
  %5191 = vst.msk [vmem:[%s2 + $0x110] sm:$0xff] %vm5156, %v3723
  %5192 = vst.msk [vmem:[%s2 + $0x118] sm:$0xff] %vm5156, %v3726
  %5193 = vst.msk [vmem:[%s2 + $0x120] sm:$0xff] %vm5156, %v3729
  %5194 = vst.msk [vmem:[%s2 + $0x128] sm:$0xff] %vm5156, %v3732
  %5195 = vst.msk [vmem:[%s2 + $0x130] sm:$0xff] %vm5156, %v3735
  %5196 = vst.msk [vmem:[%s2 + $0x138] sm:$0xff] %vm5156, %v3738
  %5197 = vst.msk [vmem:[%s2 + $0x140] sm:$0xff] %vm5156, %v3741
  %5198 = vst.msk [vmem:[%s2 + $0x148] sm:$0xff] %vm5156, %v3744
  %5199 = vst.msk [vmem:[%s2 + $0x150] sm:$0xff] %vm5156, %v3747
  %5200 = vst.msk [vmem:[%s2 + $0x158] sm:$0xff] %vm5156, %v3750
  %5201 = vst.msk [vmem:[%s2 + $0x160] sm:$0xff] %vm5156, %v3753
  %5202 = vst.msk [vmem:[%s2 + $0x168] sm:$0xff] %vm5156, %v3756
  %5203 = vst.msk [vmem:[%s2 + $0x170] sm:$0xff] %vm5156, %v3759
  %5204 = vst.msk [vmem:[%s2 + $0x178] sm:$0xff] %vm5156, %v3762
  %5205 = vst.msk [vmem:[%s2 + $0x180] sm:$0xff] %vm5156, %v3765
  %5206 = vst.msk [vmem:[%s2 + $0x188] sm:$0xff] %vm5156, %v3768
  %5207 = vst.msk [vmem:[%s2 + $0x190] sm:$0xff] %vm5156, %v3771
  %5208 = vst.msk [vmem:[%s2 + $0x198] sm:$0xff] %vm5156, %v3774
  %5209 = vst.msk [vmem:[%s2 + $0x1a0] sm:$0xff] %vm5156, %v3777
  %5210 = vst.msk [vmem:[%s2 + $0x1a8] sm:$0xff] %vm5156, %v3780
  %5211 = vst.msk [vmem:[%s2 + $0x1b0] sm:$0xff] %vm5156, %v3783
  %5212 = vst.msk [vmem:[%s2 + $0x1b8] sm:$0xff] %vm5156, %v3786
  %5213 = vst.msk [vmem:[%s2 + $0x1c0] sm:$0xff] %vm5156, %v3789
  %5214 = vst.msk [vmem:[%s2 + $0x1c8] sm:$0xff] %vm5156, %v3792
  %5215 = vst.msk [vmem:[%s2 + $0x1d0] sm:$0xff] %vm5156, %v3795
  %5216 = vst.msk [vmem:[%s2 + $0x1d8] sm:$0xff] %vm5156, %v3798
  %5217 = vst.msk [vmem:[%s2 + $0x1e0] sm:$0xff] %vm5156, %v3801
  %5218 = vst.msk [vmem:[%s2 + $0x1e8] sm:$0xff] %vm5156, %v3804
  %5219 = vst.msk [vmem:[%s2 + $0x1f0] sm:$0xff] %vm5156, %v3807
  %5220 = vst.msk [vmem:[%s2 + $0x1f8] sm:$0xff] %vm5156, %v3810
  %5221 = vst.msk [vmem:[%s2 + $0x200] sm:$0xff] %vm5156, %v3813
  %5222 = vst.msk [vmem:[%s2 + $0x208] sm:$0xff] %vm5156, %v3816
  %5223 = vst.msk [vmem:[%s2 + $0x210] sm:$0xff] %vm5156, %v3819
  %5224 = vst.msk [vmem:[%s2 + $0x218] sm:$0xff] %vm5156, %v3822
  %5225 = vst.msk [vmem:[%s2 + $0x220] sm:$0xff] %vm5156, %v3825
  %5226 = vst.msk [vmem:[%s2 + $0x228] sm:$0xff] %vm5156, %v3828
  %5227 = vst.msk [vmem:[%s2 + $0x230] sm:$0xff] %vm5156, %v3831
  %5228 = vst.msk [vmem:[%s2 + $0x238] sm:$0xff] %vm5156, %v3834
  %5229 = vst.msk [vmem:[%s2 + $0x240] sm:$0xff] %vm5156, %v3837
  %5230 = vst.msk [vmem:[%s2 + $0x248] sm:$0xff] %vm5156, %v3840
  %5231 = vst.msk [vmem:[%s2 + $0x250] sm:$0xff] %vm5156, %v3843
  %5232 = vst.msk [vmem:[%s2 + $0x258] sm:$0xff] %vm5156, %v3846
  %5233 = vst.msk [vmem:[%s2 + $0x260] sm:$0xff] %vm5156, %v3849
  %5234 = vst.msk [vmem:[%s2 + $0x268] sm:$0xff] %vm5156, %v3852
  %5235 = vst.msk [vmem:[%s2 + $0x270] sm:$0xff] %vm5156, %v3855
  %5236 = vst.msk [vmem:[%s2 + $0x278] sm:$0xff] %vm5156, %v3858
  %5237 = vst.msk [vmem:[%s2 + $0x280] sm:$0xff] %vm5156, %v3861
  %5238 = vst.msk [vmem:[%s2 + $0x288] sm:$0xff] %vm5156, %v3864
  %5239 = vst.msk [vmem:[%s2 + $0x290] sm:$0xff] %vm5156, %v3867
  %5240 = vst.msk [vmem:[%s2 + $0x298] sm:$0xff] %vm5156, %v3870
  %5241 = vst.msk [vmem:[%s2 + $0x2a0] sm:$0xff] %vm5156, %v3873
  %5242 = vst.msk [vmem:[%s2 + $0x2a8] sm:$0xff] %vm5156, %v3876
  %5243 = vst.msk [vmem:[%s2 + $0x2b0] sm:$0xff] %vm5156, %v3879
  %5244 = vst.msk [vmem:[%s2 + $0x2b8] sm:$0xff] %vm5156, %v3882
  %5245 = vst.msk [vmem:[%s2 + $0x2c0] sm:$0xff] %vm5156, %v3885
  %5246 = vst.msk [vmem:[%s2 + $0x2c8] sm:$0xff] %vm5156, %v3888
  %5247 = vst.msk [vmem:[%s2 + $0x2d0] sm:$0xff] %vm5156, %v3891
  %5248 = vst.msk [vmem:[%s2 + $0x2d8] sm:$0xff] %vm5156, %v3894
  %5249 = vst.msk [vmem:[%s2 + $0x2e0] sm:$0xff] %vm5156, %v3897
  %5250 = vst.msk [vmem:[%s2 + $0x2e8] sm:$0xff] %vm5156, %v3900
  %5251 = vst.msk [vmem:[%s2 + $0x2f0] sm:$0xff] %vm5156, %v3903
  %5252 = vst.msk [vmem:[%s2 + $0x2f8] sm:$0xff] %vm5156, %v3906
  %5253 = vst.msk [vmem:[%s2 + $0x300] sm:$0xff] %vm5156, %v3909
  %5254 = vst.msk [vmem:[%s2 + $0x308] sm:$0xff] %vm5156, %v3912
  %5255 = vst.msk [vmem:[%s2 + $0x310] sm:$0xff] %vm5156, %v3915
  %5256 = vst.msk [vmem:[%s2 + $0x318] sm:$0xff] %vm5156, %v3918
  %5257 = vst.msk [vmem:[%s2 + $0x320] sm:$0xff] %vm5156, %v3921
  %5258 = vst.msk [vmem:[%s2 + $0x328] sm:$0xff] %vm5156, %v3924
  %5259 = vst.msk [vmem:[%s2 + $0x330] sm:$0xff] %vm5156, %v3927
  %5260 = vst.msk [vmem:[%s2 + $0x338] sm:$0xff] %vm5156, %v3930
  %5261 = vst.msk [vmem:[%s2 + $0x340] sm:$0xff] %vm5156, %v3933
  %5262 = vst.msk [vmem:[%s2 + $0x348] sm:$0xff] %vm5156, %v3936
  %5263 = vst.msk [vmem:[%s2 + $0x350] sm:$0xff] %vm5156, %v3939
  %5264 = vst.msk [vmem:[%s2 + $0x358] sm:$0xff] %vm5156, %v3942
  %5265 = vst.msk [vmem:[%s2 + $0x360] sm:$0xff] %vm5156, %v3945
  %5266 = vst.msk [vmem:[%s2 + $0x368] sm:$0xff] %vm5156, %v3948
  %5267 = vst.msk [vmem:[%s2 + $0x370] sm:$0xff] %vm5156, %v3951
  %5268 = vst.msk [vmem:[%s2 + $0x378] sm:$0xff] %vm5156, %v3954
  %5269 = vst.msk [vmem:[%s2 + $0x380] sm:$0xff] %vm5156, %v3957
  %5270 = vst.msk [vmem:[%s2 + $0x388] sm:$0xff] %vm5156, %v3960
  %5271 = vst.msk [vmem:[%s2 + $0x390] sm:$0xff] %vm5156, %v3963
  %5272 = vst.msk [vmem:[%s2 + $0x398] sm:$0xff] %vm5156, %v3966
  %5273 = vst.msk [vmem:[%s2 + $0x3a0] sm:$0xff] %vm5156, %v3969
  %5274 = vst.msk [vmem:[%s2 + $0x3a8] sm:$0xff] %vm5156, %v3972
  %5275 = vst.msk [vmem:[%s2 + $0x3b0] sm:$0xff] %vm5156, %v3975
  %5276 = vst.msk [vmem:[%s2 + $0x3b8] sm:$0xff] %vm5156, %v3978
  %5277 = vst.msk [vmem:[%s2 + $0x3c0] sm:$0xff] %vm5156, %v3981
  %5278 = vst.msk [vmem:[%s2 + $0x3c8] sm:$0xff] %vm5156, %v3984
  %5279 = vst.msk [vmem:[%s2 + $0x3d0] sm:$0xff] %vm5156, %v3987
  %5280 = vst.msk [vmem:[%s2 + $0x3d8] sm:$0xff] %vm5156, %v3990
  %5281 = vst.msk [vmem:[%s2 + $0x3e0] sm:$0xff] %vm5156, %v3993
  %5282 = vst.msk [vmem:[%s2 + $0x3e8] sm:$0xff] %vm5156, %v3996
  %5283 = vst.msk [vmem:[%s2 + $0x3f0] sm:$0xff] %vm5156, %v3999
  %5284 = vst.msk [vmem:[%s2 + $0x3f8] sm:$0xff] %vm5156, %v4002
  %5285 = vst.msk [vmem:[%s2 + $0x400] sm:$0xff] %vm5156, %v4005
  %5286 = vst.msk [vmem:[%s2 + $0x408] sm:$0xff] %vm5156, %v4008
  %5287 = vst.msk [vmem:[%s2 + $0x410] sm:$0xff] %vm5156, %v4011
  %5288 = vst.msk [vmem:[%s2 + $0x418] sm:$0xff] %vm5156, %v4014
  %5289 = vst.msk [vmem:[%s2 + $0x420] sm:$0xff] %vm5156, %v4017
  %5290 = vst.msk [vmem:[%s2 + $0x428] sm:$0xff] %vm5156, %v4020
  %5291 = vst.msk [vmem:[%s2 + $0x430] sm:$0xff] %vm5156, %v4023
  %5292 = vst.msk [vmem:[%s2 + $0x438] sm:$0xff] %vm5156, %v4026
  %5293 = vst.msk [vmem:[%s2 + $0x440] sm:$0xff] %vm5156, %v4029
  %5294 = vst.msk [vmem:[%s2 + $0x448] sm:$0xff] %vm5156, %v4032
  %5295 = vst.msk [vmem:[%s2 + $0x450] sm:$0xff] %vm5156, %v4035
  %5296 = vst.msk [vmem:[%s2 + $0x458] sm:$0xff] %vm5156, %v4038
  %5297 = vst.msk [vmem:[%s2 + $0x460] sm:$0xff] %vm5156, %v4041
  %5298 = vst.msk [vmem:[%s2 + $0x468] sm:$0xff] %vm5156, %v4044
  %5299 = vst.msk [vmem:[%s2 + $0x470] sm:$0xff] %vm5156, %v4047
  %5300 = vst.msk [vmem:[%s2 + $0x478] sm:$0xff] %vm5156, %v4050
  %5301 = vst.msk [vmem:[%s2 + $0x480] sm:$0xff] %vm5156, %v4053
  %5302 = vst.msk [vmem:[%s2 + $0x488] sm:$0xff] %vm5156, %v4056
  %5303 = vst.msk [vmem:[%s2 + $0x490] sm:$0xff] %vm5156, %v4059
  %5304 = vst.msk [vmem:[%s2 + $0x498] sm:$0xff] %vm5156, %v4062
  %5305 = vst.msk [vmem:[%s2 + $0x4a0] sm:$0xff] %vm5156, %v4065
  %5306 = vst.msk [vmem:[%s2 + $0x4a8] sm:$0xff] %vm5156, %v4068
  %5307 = vst.msk [vmem:[%s2 + $0x4b0] sm:$0xff] %vm5156, %v4071
  %5308 = vst.msk [vmem:[%s2 + $0x4b8] sm:$0xff] %vm5156, %v4074
  %5309 = vst.msk [vmem:[%s2 + $0x4c0] sm:$0xff] %vm5156, %v4077
  %5310 = vst.msk [vmem:[%s2 + $0x4c8] sm:$0xff] %vm5156, %v4080
  %5311 = vst.msk [vmem:[%s2 + $0x4d0] sm:$0xff] %vm5156, %v4083
  %5312 = vst.msk [vmem:[%s2 + $0x4d8] sm:$0xff] %vm5156, %v4086
  %5313 = vst.msk [vmem:[%s2 + $0x4e0] sm:$0xff] %vm5156, %v4089
  %5314 = vst.msk [vmem:[%s2 + $0x4e8] sm:$0xff] %vm5156, %v4092
  %5315 = vst.msk [vmem:[%s2 + $0x4f0] sm:$0xff] %vm5156, %v4095
  %5316 = vst.msk [vmem:[%s2 + $0x4f8] sm:$0xff] %vm5156, %v4098
  %5317 = vst.msk [vmem:[%s2 + $0x500] sm:$0xff] %vm5156, %v4101
  %5318 = vst.msk [vmem:[%s2 + $0x508] sm:$0xff] %vm5156, %v4104
  %5319 = vst.msk [vmem:[%s2 + $0x510] sm:$0xff] %vm5156, %v4107
  %5320 = vst.msk [vmem:[%s2 + $0x518] sm:$0xff] %vm5156, %v4110
  %5321 = vst.msk [vmem:[%s2 + $0x520] sm:$0xff] %vm5156, %v4113
  %5322 = vst.msk [vmem:[%s2 + $0x528] sm:$0xff] %vm5156, %v4116
  %5323 = vst.msk [vmem:[%s2 + $0x530] sm:$0xff] %vm5156, %v4119
  %5324 = vst.msk [vmem:[%s2 + $0x538] sm:$0xff] %vm5156, %v4122
  %5325 = vst.msk [vmem:[%s2 + $0x540] sm:$0xff] %vm5156, %v4125
  %5326 = vst.msk [vmem:[%s2 + $0x548] sm:$0xff] %vm5156, %v4128
  %5327 = vst.msk [vmem:[%s2 + $0x550] sm:$0xff] %vm5156, %v4131
  %5328 = vst.msk [vmem:[%s2 + $0x558] sm:$0xff] %vm5156, %v4134
  %5329 = vst.msk [vmem:[%s2 + $0x560] sm:$0xff] %vm5156, %v4137
  %5330 = vst.msk [vmem:[%s2 + $0x568] sm:$0xff] %vm5156, %v4140
  %5331 = vst.msk [vmem:[%s2 + $0x570] sm:$0xff] %vm5156, %v4143
  %5332 = vst.msk [vmem:[%s2 + $0x578] sm:$0xff] %vm5156, %v4146
  %5333 = vst.msk [vmem:[%s2 + $0x580] sm:$0xff] %vm5156, %v4149
  %5334 = vst.msk [vmem:[%s2 + $0x588] sm:$0xff] %vm5156, %v4152
  %5335 = vst.msk [vmem:[%s2 + $0x590] sm:$0xff] %vm5156, %v4155
  %5336 = vst.msk [vmem:[%s2 + $0x598] sm:$0xff] %vm5156, %v4158
  %5337 = vst.msk [vmem:[%s2 + $0x5a0] sm:$0xff] %vm5156, %v4161
  %5338 = vst.msk [vmem:[%s2 + $0x5a8] sm:$0xff] %vm5156, %v4164
  %5339 = vst.msk [vmem:[%s2 + $0x5b0] sm:$0xff] %vm5156, %v4167
  %5340 = vst.msk [vmem:[%s2 + $0x5b8] sm:$0xff] %vm5156, %v4170
  %5341 = vst.msk [vmem:[%s2 + $0x5c0] sm:$0xff] %vm5156, %v4173
  %5342 = vst.msk [vmem:[%s2 + $0x5c8] sm:$0xff] %vm5156, %v4176
  %5343 = vst.msk [vmem:[%s2 + $0x5d0] sm:$0xff] %vm5156, %v4179
  %5344 = vst.msk [vmem:[%s2 + $0x5d8] sm:$0xff] %vm5156, %v4182
  %5345 = vst.msk [vmem:[%s2 + $0x5e0] sm:$0xff] %vm5156, %v4185
  %5346 = vst.msk [vmem:[%s2 + $0x5e8] sm:$0xff] %vm5156, %v4188
  %5347 = vst.msk [vmem:[%s2 + $0x5f0] sm:$0xff] %vm5156, %v4191
  %5348 = vst.msk [vmem:[%s2 + $0x5f8] sm:$0xff] %vm5156, %v4194
  %5349 = vst.msk [vmem:[%s2 + $0x600] sm:$0xff] %vm5156, %v4197
  %5350 = vst.msk [vmem:[%s2 + $0x608] sm:$0xff] %vm5156, %v4200
  %5351 = vst.msk [vmem:[%s2 + $0x610] sm:$0xff] %vm5156, %v4203
  %5352 = vst.msk [vmem:[%s2 + $0x618] sm:$0xff] %vm5156, %v4206
  %5353 = vst.msk [vmem:[%s2 + $0x620] sm:$0xff] %vm5156, %v4209
  %5354 = vst.msk [vmem:[%s2 + $0x628] sm:$0xff] %vm5156, %v4212
  %5355 = vst.msk [vmem:[%s2 + $0x630] sm:$0xff] %vm5156, %v4215
  %5356 = vst.msk [vmem:[%s2 + $0x638] sm:$0xff] %vm5156, %v4218
  %5357 = vst.msk [vmem:[%s2 + $0x640] sm:$0xff] %vm5156, %v4221
  %5358 = vst.msk [vmem:[%s2 + $0x648] sm:$0xff] %vm5156, %v4224
  %5359 = vst.msk [vmem:[%s2 + $0x650] sm:$0xff] %vm5156, %v4227
  %5360 = vst.msk [vmem:[%s2 + $0x658] sm:$0xff] %vm5156, %v4230
  %5361 = vst.msk [vmem:[%s2 + $0x660] sm:$0xff] %vm5156, %v4233
  %5362 = vst.msk [vmem:[%s2 + $0x668] sm:$0xff] %vm5156, %v4236
  %5363 = vst.msk [vmem:[%s2 + $0x670] sm:$0xff] %vm5156, %v4239
  %5364 = vst.msk [vmem:[%s2 + $0x678] sm:$0xff] %vm5156, %v4242
  %5365 = vst.msk [vmem:[%s2 + $0x680] sm:$0xff] %vm5156, %v4245
  %5366 = vst.msk [vmem:[%s2 + $0x688] sm:$0xff] %vm5156, %v4248
  %5367 = vst.msk [vmem:[%s2 + $0x690] sm:$0xff] %vm5156, %v4251
  %5368 = vst.msk [vmem:[%s2 + $0x698] sm:$0xff] %vm5156, %v4254
  %5369 = vst.msk [vmem:[%s2 + $0x6a0] sm:$0xff] %vm5156, %v4257
  %5370 = vst.msk [vmem:[%s2 + $0x6a8] sm:$0xff] %vm5156, %v4260
  %5371 = vst.msk [vmem:[%s2 + $0x6b0] sm:$0xff] %vm5156, %v4263
  %5372 = vst.msk [vmem:[%s2 + $0x6b8] sm:$0xff] %vm5156, %v4266
  %5373 = vst.msk [vmem:[%s2 + $0x6c0] sm:$0xff] %vm5156, %v4269
  %5374 = vst.msk [vmem:[%s2 + $0x6c8] sm:$0xff] %vm5156, %v4272
  %5375 = vst.msk [vmem:[%s2 + $0x6d0] sm:$0xff] %vm5156, %v4275
  %5376 = vst.msk [vmem:[%s2 + $0x6d8] sm:$0xff] %vm5156, %v4278
  %5377 = vst.msk [vmem:[%s2 + $0x6e0] sm:$0xff] %vm5156, %v4281
  %5378 = vst.msk [vmem:[%s2 + $0x6e8] sm:$0xff] %vm5156, %v4284
  %5379 = vst.msk [vmem:[%s2 + $0x6f0] sm:$0xff] %vm5156, %v4287
  %5380 = vst.msk [vmem:[%s2 + $0x6f8] sm:$0xff] %vm5156, %v4290
  %5381 = vst.msk [vmem:[%s2 + $0x700] sm:$0xff] %vm5156, %v4293
  %5382 = vst.msk [vmem:[%s2 + $0x708] sm:$0xff] %vm5156, %v4296
  %5383 = vst.msk [vmem:[%s2 + $0x710] sm:$0xff] %vm5156, %v4299
  %5384 = vst.msk [vmem:[%s2 + $0x718] sm:$0xff] %vm5156, %v4302
  %5385 = vst.msk [vmem:[%s2 + $0x720] sm:$0xff] %vm5156, %v4305
  %5386 = vst.msk [vmem:[%s2 + $0x728] sm:$0xff] %vm5156, %v4308
  %5387 = vst.msk [vmem:[%s2 + $0x730] sm:$0xff] %vm5156, %v4311
  %5388 = vst.msk [vmem:[%s2 + $0x738] sm:$0xff] %vm5156, %v4314
  %5389 = vst.msk [vmem:[%s2 + $0x740] sm:$0xff] %vm5156, %v4317
  %5390 = vst.msk [vmem:[%s2 + $0x748] sm:$0xff] %vm5156, %v4320
  %5391 = vst.msk [vmem:[%s2 + $0x750] sm:$0xff] %vm5156, %v4323
  %5392 = vst.msk [vmem:[%s2 + $0x758] sm:$0xff] %vm5156, %v4326
  %5393 = vst.msk [vmem:[%s2 + $0x760] sm:$0xff] %vm5156, %v4329
  %5394 = vst.msk [vmem:[%s2 + $0x768] sm:$0xff] %vm5156, %v4332
  %5395 = vst.msk [vmem:[%s2 + $0x770] sm:$0xff] %vm5156, %v4335
  %5396 = vst.msk [vmem:[%s2 + $0x778] sm:$0xff] %vm5156, %v4338
  %5397 = vst.msk [vmem:[%s2 + $0x780] sm:$0xff] %vm5156, %v4341
  %5398 = vst.msk [vmem:[%s2 + $0x788] sm:$0xff] %vm5156, %v4344
  %5399 = vst.msk [vmem:[%s2 + $0x790] sm:$0xff] %vm5156, %v4347
  %5400 = vst.msk [vmem:[%s2 + $0x798] sm:$0xff] %vm5156, %v4350
  %5401 = vst.msk [vmem:[%s2 + $0x7a0] sm:$0xff] %vm5156, %v4353
  %5402 = vst.msk [vmem:[%s2 + $0x7a8] sm:$0xff] %vm5156, %v4356
  %5403 = vst.msk [vmem:[%s2 + $0x7b0] sm:$0xff] %vm5156, %v4359
  %5404 = vst.msk [vmem:[%s2 + $0x7b8] sm:$0xff] %vm5156, %v4362
  %5405 = vst.msk [vmem:[%s2 + $0x7c0] sm:$0xff] %vm5156, %v4365
  %5406 = vst.msk [vmem:[%s2 + $0x7c8] sm:$0xff] %vm5156, %v4368
  %5407 = vst.msk [vmem:[%s2 + $0x7d0] sm:$0xff] %vm5156, %v4371
  %5408 = vst.msk [vmem:[%s2 + $0x7d8] sm:$0xff] %vm5156, %v4374
  %5409 = vst.msk [vmem:[%s2 + $0x7e0] sm:$0xff] %vm5156, %v4377
  %5410 = vst.msk [vmem:[%s2 + $0x7e8] sm:$0xff] %vm5156, %v4380
  %5411 = vst.msk [vmem:[%s2 + $0x7f0] sm:$0xff] %vm5156, %v4383
  %5412 = vst.msk [vmem:[%s2 + $0x7f8] sm:$0xff] %vm5156, %v4386
  %5413 = vst.msk [vmem:[%s2 + $0x800] sm:$0xff] %vm5156, %v4389
  %5414 = vst.msk [vmem:[%s2 + $0x808] sm:$0xff] %vm5156, %v4392
  %5415 = vst.msk [vmem:[%s2 + $0x810] sm:$0xff] %vm5156, %v4395
  %5416 = vst.msk [vmem:[%s2 + $0x818] sm:$0xff] %vm5156, %v4398
  %5417 = vst.msk [vmem:[%s2 + $0x820] sm:$0xff] %vm5156, %v4401
  %5418 = vst.msk [vmem:[%s2 + $0x828] sm:$0xff] %vm5156, %v4404
  %5419 = vst.msk [vmem:[%s2 + $0x830] sm:$0xff] %vm5156, %v4407
  %5420 = vst.msk [vmem:[%s2 + $0x838] sm:$0xff] %vm5156, %v4410
  %5421 = vst.msk [vmem:[%s2 + $0x840] sm:$0xff] %vm5156, %v4413
  %5422 = vst.msk [vmem:[%s2 + $0x848] sm:$0xff] %vm5156, %v4416
  %5423 = vst.msk [vmem:[%s2 + $0x850] sm:$0xff] %vm5156, %v4419
  %5424 = vst.msk [vmem:[%s2 + $0x858] sm:$0xff] %vm5156, %v4422
  %5425 = vst.msk [vmem:[%s2 + $0x860] sm:$0xff] %vm5156, %v4425
  %5426 = vst.msk [vmem:[%s2 + $0x868] sm:$0xff] %vm5156, %v4428
  %5427 = vst.msk [vmem:[%s2 + $0x870] sm:$0xff] %vm5156, %v4431
  %5428 = vst.msk [vmem:[%s2 + $0x878] sm:$0xff] %vm5156, %v4434
  %5429 = vst.msk [vmem:[%s2 + $0x880] sm:$0xff] %vm5156, %v4437
  %5430 = vst.msk [vmem:[%s2 + $0x888] sm:$0xff] %vm5156, %v4440
  %5431 = vst.msk [vmem:[%s2 + $0x890] sm:$0xff] %vm5156, %v4443
  %5432 = vst.msk [vmem:[%s2 + $0x898] sm:$0xff] %vm5156, %v4446
  %5433 = vst.msk [vmem:[%s2 + $0x8a0] sm:$0xff] %vm5156, %v4449
  %5434 = vst.msk [vmem:[%s2 + $0x8a8] sm:$0xff] %vm5156, %v4452
  %5435 = vst.msk [vmem:[%s2 + $0x8b0] sm:$0xff] %vm5156, %v4455
  %5436 = vst.msk [vmem:[%s2 + $0x8b8] sm:$0xff] %vm5156, %v4458
  %5437 = vst.msk [vmem:[%s2 + $0x8c0] sm:$0xff] %vm5156, %v4461
  %5438 = vst.msk [vmem:[%s2 + $0x8c8] sm:$0xff] %vm5156, %v4464
  %5439 = vst.msk [vmem:[%s2 + $0x8d0] sm:$0xff] %vm5156, %v4467
  %5440 = vst.msk [vmem:[%s2 + $0x8d8] sm:$0xff] %vm5156, %v4470
  %5441 = vst.msk [vmem:[%s2 + $0x8e0] sm:$0xff] %vm5156, %v4473
  %5442 = vst.msk [vmem:[%s2 + $0x8e8] sm:$0xff] %vm5156, %v4476
  %5443 = vst.msk [vmem:[%s2 + $0x8f0] sm:$0xff] %vm5156, %v4479
  %5444 = vst.msk [vmem:[%s2 + $0x8f8] sm:$0xff] %vm5156, %v4482
  %5445 = vst.msk [vmem:[%s2 + $0x900] sm:$0xff] %vm5156, %v4485
  %5446 = vst.msk [vmem:[%s2 + $0x908] sm:$0xff] %vm5156, %v4488
  %5447 = vst.msk [vmem:[%s2 + $0x910] sm:$0xff] %vm5156, %v4491
  %5448 = vst.msk [vmem:[%s2 + $0x918] sm:$0xff] %vm5156, %v4494
  %5449 = vst.msk [vmem:[%s2 + $0x920] sm:$0xff] %vm5156, %v4497
  %5450 = vst.msk [vmem:[%s2 + $0x928] sm:$0xff] %vm5156, %v4500
  %5451 = vst.msk [vmem:[%s2 + $0x930] sm:$0xff] %vm5156, %v4503
  %5452 = vst.msk [vmem:[%s2 + $0x938] sm:$0xff] %vm5156, %v4506
  %5453 = vst.msk [vmem:[%s2 + $0x940] sm:$0xff] %vm5156, %v4509
  %5454 = vst.msk [vmem:[%s2 + $0x948] sm:$0xff] %vm5156, %v4512
  %5455 = vst.msk [vmem:[%s2 + $0x950] sm:$0xff] %vm5156, %v4515
  %5456 = vst.msk [vmem:[%s2 + $0x958] sm:$0xff] %vm5156, %v4518
  %5457 = vst.msk [vmem:[%s2 + $0x960] sm:$0xff] %vm5156, %v4521
  %5458 = vst.msk [vmem:[%s2 + $0x968] sm:$0xff] %vm5156, %v4524
  %5459 = vst.msk [vmem:[%s2 + $0x970] sm:$0xff] %vm5156, %v4527
  %5460 = vst.msk [vmem:[%s2 + $0x978] sm:$0xff] %vm5156, %v4530
  %5461 = vst.msk [vmem:[%s2 + $0x980] sm:$0xff] %vm5156, %v4533
  %5462 = vst.msk [vmem:[%s2 + $0x988] sm:$0xff] %vm5156, %v4536
  %5463 = vst.msk [vmem:[%s2 + $0x990] sm:$0xff] %vm5156, %v4539
  %5464 = vst.msk [vmem:[%s2 + $0x998] sm:$0xff] %vm5156, %v4542
  %5465 = vst.msk [vmem:[%s2 + $0x9a0] sm:$0xff] %vm5156, %v4545
  %5466 = vst.msk [vmem:[%s2 + $0x9a8] sm:$0xff] %vm5156, %v4548
  %5467 = vst.msk [vmem:[%s2 + $0x9b0] sm:$0xff] %vm5156, %v4551
  %5468 = vst.msk [vmem:[%s2 + $0x9b8] sm:$0xff] %vm5156, %v4554
  %5469 = vst.msk [vmem:[%s2 + $0x9c0] sm:$0xff] %vm5156, %v4557
  %5470 = vst.msk [vmem:[%s2 + $0x9c8] sm:$0xff] %vm5156, %v4560
  %5471 = vst.msk [vmem:[%s2 + $0x9d0] sm:$0xff] %vm5156, %v4563
  %5472 = vst.msk [vmem:[%s2 + $0x9d8] sm:$0xff] %vm5156, %v4566
  %5473 = vst.msk [vmem:[%s2 + $0x9e0] sm:$0xff] %vm5156, %v4569
  %5474 = vst.msk [vmem:[%s2 + $0x9e8] sm:$0xff] %vm5156, %v4572
  %5475 = vst.msk [vmem:[%s2 + $0x9f0] sm:$0xff] %vm5156, %v4575
  %5476 = vst.msk [vmem:[%s2 + $0x9f8] sm:$0xff] %vm5156, %v4578
  %5477 = vst.msk [vmem:[%s2 + $0xa00] sm:$0xff] %vm5156, %v4581
  %5478 = vst.msk [vmem:[%s2 + $0xa08] sm:$0xff] %vm5156, %v4584
  %5479 = vst.msk [vmem:[%s2 + $0xa10] sm:$0xff] %vm5156, %v4587
  %5480 = vst.msk [vmem:[%s2 + $0xa18] sm:$0xff] %vm5156, %v4590
  %5481 = vst.msk [vmem:[%s2 + $0xa20] sm:$0xff] %vm5156, %v4593
  %5482 = vst.msk [vmem:[%s2 + $0xa28] sm:$0xff] %vm5156, %v4596
  %5483 = vst.msk [vmem:[%s2 + $0xa30] sm:$0xff] %vm5156, %v4599
  %5484 = vst.msk [vmem:[%s2 + $0xa38] sm:$0xff] %vm5156, %v4602
  %5485 = vst.msk [vmem:[%s2 + $0xa40] sm:$0xff] %vm5156, %v4605
  %5486 = vst.msk [vmem:[%s2 + $0xa48] sm:$0xff] %vm5156, %v4608
  %5487 = vst.msk [vmem:[%s2 + $0xa50] sm:$0xff] %vm5156, %v4611
  %5488 = vst.msk [vmem:[%s2 + $0xa58] sm:$0xff] %vm5156, %v4614
  %5489 = vst.msk [vmem:[%s2 + $0xa60] sm:$0xff] %vm5156, %v4617
  %5490 = vst.msk [vmem:[%s2 + $0xa68] sm:$0xff] %vm5156, %v4620
  %5491 = vst.msk [vmem:[%s2 + $0xa70] sm:$0xff] %vm5156, %v4623
  %5492 = vst.msk [vmem:[%s2 + $0xa78] sm:$0xff] %vm5156, %v4626
  %5493 = vst.msk [vmem:[%s2 + $0xa80] sm:$0xff] %vm5156, %v4629
  %5494 = vst.msk [vmem:[%s2 + $0xa88] sm:$0xff] %vm5156, %v4632
  %5495 = vst.msk [vmem:[%s2 + $0xa90] sm:$0xff] %vm5156, %v4635
  %5496 = vst.msk [vmem:[%s2 + $0xa98] sm:$0xff] %vm5156, %v4638
  %5497 = vst.msk [vmem:[%s2 + $0xaa0] sm:$0xff] %vm5156, %v4641
  %5498 = vst.msk [vmem:[%s2 + $0xaa8] sm:$0xff] %vm5156, %v4644
  %5499 = vst.msk [vmem:[%s2 + $0xab0] sm:$0xff] %vm5156, %v4647
  %5500 = vst.msk [vmem:[%s2 + $0xab8] sm:$0xff] %vm5156, %v4650
  %5501 = vst.msk [vmem:[%s2 + $0xac0] sm:$0xff] %vm5156, %v4653
  %5502 = vst.msk [vmem:[%s2 + $0xac8] sm:$0xff] %vm5156, %v4656
  %5503 = vst.msk [vmem:[%s2 + $0xad0] sm:$0xff] %vm5156, %v4659
  %5504 = vst.msk [vmem:[%s2 + $0xad8] sm:$0xff] %vm5156, %v4662
  %5505 = vst.msk [vmem:[%s2 + $0xae0] sm:$0xff] %vm5156, %v4665
  %5506 = vst.msk [vmem:[%s2 + $0xae8] sm:$0xff] %vm5156, %v4668
  %5507 = vst.msk [vmem:[%s2 + $0xaf0] sm:$0xff] %vm5156, %v4671
  %5508 = vst.msk [vmem:[%s2 + $0xaf8] sm:$0xff] %vm5156, %v4674
  %5509 = vst.msk [vmem:[%s2 + $0xb00] sm:$0xff] %vm5156, %v4677
  %5510 = vst.msk [vmem:[%s2 + $0xb08] sm:$0xff] %vm5156, %v4680
  %5511 = vst.msk [vmem:[%s2 + $0xb10] sm:$0xff] %vm5156, %v4683
  %5512 = vst.msk [vmem:[%s2 + $0xb18] sm:$0xff] %vm5156, %v4686
  %5513 = vst.msk [vmem:[%s2 + $0xb20] sm:$0xff] %vm5156, %v4689
  %5514 = vst.msk [vmem:[%s2 + $0xb28] sm:$0xff] %vm5156, %v4692
  %5515 = vst.msk [vmem:[%s2 + $0xb30] sm:$0xff] %vm5156, %v4695
  %5516 = vst.msk [vmem:[%s2 + $0xb38] sm:$0xff] %vm5156, %v4698
  %5517 = vst.msk [vmem:[%s2 + $0xb40] sm:$0xff] %vm5156, %v4701
  %5518 = vst.msk [vmem:[%s2 + $0xb48] sm:$0xff] %vm5156, %v4704
  %5519 = vst.msk [vmem:[%s2 + $0xb50] sm:$0xff] %vm5156, %v4707
  %5520 = vst.msk [vmem:[%s2 + $0xb58] sm:$0xff] %vm5156, %v4710
  %5521 = vst.msk [vmem:[%s2 + $0xb60] sm:$0xff] %vm5156, %v4713
  %5522 = vst.msk [vmem:[%s2 + $0xb68] sm:$0xff] %vm5156, %v4716
  %5523 = vst.msk [vmem:[%s2 + $0xb70] sm:$0xff] %vm5156, %v4719
  %5524 = vst.msk [vmem:[%s2 + $0xb78] sm:$0xff] %vm5156, %v4722
  %5525 = vst.msk [vmem:[%s2 + $0xb80] sm:$0xff] %vm5156, %v4725
  %5526 = vst.msk [vmem:[%s2 + $0xb88] sm:$0xff] %vm5156, %v4728
  %5527 = vst.msk [vmem:[%s2 + $0xb90] sm:$0xff] %vm5156, %v4731
  %5528 = vst.msk [vmem:[%s2 + $0xb98] sm:$0xff] %vm5156, %v4734
  %5529 = vst.msk [vmem:[%s2 + $0xba0] sm:$0xff] %vm5156, %v4737
  %5530 = vst.msk [vmem:[%s2 + $0xba8] sm:$0xff] %vm5156, %v4740
  %5531 = vst.msk [vmem:[%s2 + $0xbb0] sm:$0xff] %vm5156, %v4743
  %5532 = vst.msk [vmem:[%s2 + $0xbb8] sm:$0xff] %vm5156, %v4746
  %5533 = vst.msk [vmem:[%s2 + $0xbc0] sm:$0xff] %vm5156, %v4749
  %5534 = vst.msk [vmem:[%s2 + $0xbc8] sm:$0xff] %vm5156, %v4752
  %5535 = vst.msk [vmem:[%s2 + $0xbd0] sm:$0xff] %vm5156, %v4755
  %5536 = vst.msk [vmem:[%s2 + $0xbd8] sm:$0xff] %vm5156, %v4758
  %5537 = vst.msk [vmem:[%s2 + $0xbe0] sm:$0xff] %vm5156, %v4761
  %5538 = vst.msk [vmem:[%s2 + $0xbe8] sm:$0xff] %vm5156, %v4764
  %5539 = vst.msk [vmem:[%s2 + $0xbf0] sm:$0xff] %vm5156, %v4767
  %5540 = vst.msk [vmem:[%s2 + $0xbf8] sm:$0xff] %vm5156, %v4770
  %5541 = vst.msk [vmem:[%s2 + $0xc00] sm:$0xff] %vm5156, %v4773
  %5542 = vst.msk [vmem:[%s2 + $0xc08] sm:$0xff] %vm5156, %v4776
  %5543 = vst.msk [vmem:[%s2 + $0xc10] sm:$0xff] %vm5156, %v4779
  %5544 = vst.msk [vmem:[%s2 + $0xc18] sm:$0xff] %vm5156, %v4782
  %5545 = vst.msk [vmem:[%s2 + $0xc20] sm:$0xff] %vm5156, %v4785
  %5546 = vst.msk [vmem:[%s2 + $0xc28] sm:$0xff] %vm5156, %v4788
  %5547 = vst.msk [vmem:[%s2 + $0xc30] sm:$0xff] %vm5156, %v4791
  %5548 = vst.msk [vmem:[%s2 + $0xc38] sm:$0xff] %vm5156, %v4794
  %5549 = vst.msk [vmem:[%s2 + $0xc40] sm:$0xff] %vm5156, %v4797
  %5550 = vst.msk [vmem:[%s2 + $0xc48] sm:$0xff] %vm5156, %v4800
  %5551 = vst.msk [vmem:[%s2 + $0xc50] sm:$0xff] %vm5156, %v4803
  %5552 = vst.msk [vmem:[%s2 + $0xc58] sm:$0xff] %vm5156, %v4806
  %5553 = vst.msk [vmem:[%s2 + $0xc60] sm:$0xff] %vm5156, %v4809
  %5554 = vst.msk [vmem:[%s2 + $0xc68] sm:$0xff] %vm5156, %v4812
  %5555 = vst.msk [vmem:[%s2 + $0xc70] sm:$0xff] %vm5156, %v4815
  %5556 = vst.msk [vmem:[%s2 + $0xc78] sm:$0xff] %vm5156, %v4818
  %5557 = vst.msk [vmem:[%s2 + $0xc80] sm:$0xff] %vm5156, %v4821
  %5558 = vst.msk [vmem:[%s2 + $0xc88] sm:$0xff] %vm5156, %v4824
  %5559 = vst.msk [vmem:[%s2 + $0xc90] sm:$0xff] %vm5156, %v4827
  %5560 = vst.msk [vmem:[%s2 + $0xc98] sm:$0xff] %vm5156, %v4830
  %5561 = vst.msk [vmem:[%s2 + $0xca0] sm:$0xff] %vm5156, %v4833
  %5562 = vst.msk [vmem:[%s2 + $0xca8] sm:$0xff] %vm5156, %v4836
  %5563 = vst.msk [vmem:[%s2 + $0xcb0] sm:$0xff] %vm5156, %v4839
  %5564 = vst.msk [vmem:[%s2 + $0xcb8] sm:$0xff] %vm5156, %v4842
  %5565 = vst.msk [vmem:[%s2 + $0xcc0] sm:$0xff] %vm5156, %v4845
  %5566 = vst.msk [vmem:[%s2 + $0xcc8] sm:$0xff] %vm5156, %v4848
  %5567 = vst.msk [vmem:[%s2 + $0xcd0] sm:$0xff] %vm5156, %v4851
  %5568 = vst.msk [vmem:[%s2 + $0xcd8] sm:$0xff] %vm5156, %v4854
  %5569 = vst.msk [vmem:[%s2 + $0xce0] sm:$0xff] %vm5156, %v4857
  %5570 = vst.msk [vmem:[%s2 + $0xce8] sm:$0xff] %vm5156, %v4860
  %5571 = vst.msk [vmem:[%s2 + $0xcf0] sm:$0xff] %vm5156, %v4863
  %5572 = vst.msk [vmem:[%s2 + $0xcf8] sm:$0xff] %vm5156, %v4866
  %5573 = vst.msk [vmem:[%s2 + $0xd00] sm:$0xff] %vm5156, %v4869
  %5574 = vst.msk [vmem:[%s2 + $0xd08] sm:$0xff] %vm5156, %v4872
  %5575 = vst.msk [vmem:[%s2 + $0xd10] sm:$0xff] %vm5156, %v4875
  %5576 = vst.msk [vmem:[%s2 + $0xd18] sm:$0xff] %vm5156, %v4878
  %5577 = vst.msk [vmem:[%s2 + $0xd20] sm:$0xff] %vm5156, %v4881
  %5578 = vst.msk [vmem:[%s2 + $0xd28] sm:$0xff] %vm5156, %v4884
  %5579 = vst.msk [vmem:[%s2 + $0xd30] sm:$0xff] %vm5156, %v4887
  %5580 = vst.msk [vmem:[%s2 + $0xd38] sm:$0xff] %vm5156, %v4890
  %5581 = vst.msk [vmem:[%s2 + $0xd40] sm:$0xff] %vm5156, %v4893
  %5582 = vst.msk [vmem:[%s2 + $0xd48] sm:$0xff] %vm5156, %v4896
  %5583 = vst.msk [vmem:[%s2 + $0xd50] sm:$0xff] %vm5156, %v4899
  %5584 = vst.msk [vmem:[%s2 + $0xd58] sm:$0xff] %vm5156, %v4902
  %5585 = vst.msk [vmem:[%s2 + $0xd60] sm:$0xff] %vm5156, %v4905
  %5586 = vst.msk [vmem:[%s2 + $0xd68] sm:$0xff] %vm5156, %v4908
  %5587 = vst.msk [vmem:[%s2 + $0xd70] sm:$0xff] %vm5156, %v4911
  %5588 = vst.msk [vmem:[%s2 + $0xd78] sm:$0xff] %vm5156, %v4914
  %5589 = vst.msk [vmem:[%s2 + $0xd80] sm:$0xff] %vm5156, %v4917
  %5590 = vst.msk [vmem:[%s2 + $0xd88] sm:$0xff] %vm5156, %v4920
  %5591 = vst.msk [vmem:[%s2 + $0xd90] sm:$0xff] %vm5156, %v4923
  %5592 = vst.msk [vmem:[%s2 + $0xd98] sm:$0xff] %vm5156, %v4926
  %5593 = vst.msk [vmem:[%s2 + $0xda0] sm:$0xff] %vm5156, %v4929
  %5594 = vst.msk [vmem:[%s2 + $0xda8] sm:$0xff] %vm5156, %v4932
  %5595 = vst.msk [vmem:[%s2 + $0xdb0] sm:$0xff] %vm5156, %v4935
  %5596 = vst.msk [vmem:[%s2 + $0xdb8] sm:$0xff] %vm5156, %v4938
  %5597 = vst.msk [vmem:[%s2 + $0xdc0] sm:$0xff] %vm5156, %v4941
  %5598 = vst.msk [vmem:[%s2 + $0xdc8] sm:$0xff] %vm5156, %v4944
  %5599 = vst.msk [vmem:[%s2 + $0xdd0] sm:$0xff] %vm5156, %v4947
  %5600 = vst.msk [vmem:[%s2 + $0xdd8] sm:$0xff] %vm5156, %v4950
  %5601 = vst.msk [vmem:[%s2 + $0xde0] sm:$0xff] %vm5156, %v4953
  %5602 = vst.msk [vmem:[%s2 + $0xde8] sm:$0xff] %vm5156, %v4956
  %5603 = vst.msk [vmem:[%s2 + $0xdf0] sm:$0xff] %vm5156, %v4959
  %5604 = vst.msk [vmem:[%s2 + $0xdf8] sm:$0xff] %vm5156, %v4962
  %5605 = vst.msk [vmem:[%s2 + $0xe00] sm:$0xff] %vm5156, %v4965
  %5606 = vst.msk [vmem:[%s2 + $0xe08] sm:$0xff] %vm5156, %v4968
  %5607 = vst.msk [vmem:[%s2 + $0xe10] sm:$0xff] %vm5156, %v4971
  %5608 = vst.msk [vmem:[%s2 + $0xe18] sm:$0xff] %vm5156, %v4974
  %5609 = vst.msk [vmem:[%s2 + $0xe20] sm:$0xff] %vm5156, %v4977
  %5610 = vst.msk [vmem:[%s2 + $0xe28] sm:$0xff] %vm5156, %v4980
  %5611 = vst.msk [vmem:[%s2 + $0xe30] sm:$0xff] %vm5156, %v4983
  %5612 = vst.msk [vmem:[%s2 + $0xe38] sm:$0xff] %vm5156, %v4986
  %5613 = vst.msk [vmem:[%s2 + $0xe40] sm:$0xff] %vm5156, %v4989
  %5614 = vst.msk [vmem:[%s2 + $0xe48] sm:$0xff] %vm5156, %v4992
  %5615 = vst.msk [vmem:[%s2 + $0xe50] sm:$0xff] %vm5156, %v4995
  %5616 = vst.msk [vmem:[%s2 + $0xe58] sm:$0xff] %vm5156, %v4998
  %5617 = vst.msk [vmem:[%s2 + $0xe60] sm:$0xff] %vm5156, %v5001
  %5618 = vst.msk [vmem:[%s2 + $0xe68] sm:$0xff] %vm5156, %v5004
  %5619 = vst.msk [vmem:[%s2 + $0xe70] sm:$0xff] %vm5156, %v5007
  %5620 = vst.msk [vmem:[%s2 + $0xe78] sm:$0xff] %vm5156, %v5010
  %5621 = vst.msk [vmem:[%s2 + $0xe80] sm:$0xff] %vm5156, %v5013
  %5622 = vst.msk [vmem:[%s2 + $0xe88] sm:$0xff] %vm5156, %v5016
  %5623 = vst.msk [vmem:[%s2 + $0xe90] sm:$0xff] %vm5156, %v5019
  %5624 = vst.msk [vmem:[%s2 + $0xe98] sm:$0xff] %vm5156, %v5022
  %5625 = vst.msk [vmem:[%s2 + $0xea0] sm:$0xff] %vm5156, %v5025
  %5626 = vst.msk [vmem:[%s2 + $0xea8] sm:$0xff] %vm5156, %v5028
  %5627 = vst.msk [vmem:[%s2 + $0xeb0] sm:$0xff] %vm5156, %v5031
  %5628 = vst.msk [vmem:[%s2 + $0xeb8] sm:$0xff] %vm5156, %v5034
  %5629 = vst.msk [vmem:[%s2 + $0xec0] sm:$0xff] %vm5156, %v5037
  %5630 = vst.msk [vmem:[%s2 + $0xec8] sm:$0xff] %vm5156, %v5040
  %5631 = vst.msk [vmem:[%s2 + $0xed0] sm:$0xff] %vm5156, %v5043
  %5632 = vst.msk [vmem:[%s2 + $0xed8] sm:$0xff] %vm5156, %v5046
  %5633 = vst.msk [vmem:[%s2 + $0xee0] sm:$0xff] %vm5156, %v5049
  %5634 = vst.msk [vmem:[%s2 + $0xee8] sm:$0xff] %vm5156, %v5052
  %5635 = vst.msk [vmem:[%s2 + $0xef0] sm:$0xff] %vm5156, %v5055
  %5636 = vst.msk [vmem:[%s2 + $0xef8] sm:$0xff] %vm5156, %v5058
  %5637 = vst.msk [vmem:[%s2 + $0xf00] sm:$0xff] %vm5156, %v5061
  %5638 = vst.msk [vmem:[%s2 + $0xf08] sm:$0xff] %vm5156, %v5064
  %5639 = vst.msk [vmem:[%s2 + $0xf10] sm:$0xff] %vm5156, %v5067
  %5640 = vst.msk [vmem:[%s2 + $0xf18] sm:$0xff] %vm5156, %v5070
  %5641 = vst.msk [vmem:[%s2 + $0xf20] sm:$0xff] %vm5156, %v5073
  %5642 = vst.msk [vmem:[%s2 + $0xf28] sm:$0xff] %vm5156, %v5076
  %5643 = vst.msk [vmem:[%s2 + $0xf30] sm:$0xff] %vm5156, %v5079
  %5644 = vst.msk [vmem:[%s2 + $0xf38] sm:$0xff] %vm5156, %v5082
  %5645 = vst.msk [vmem:[%s2 + $0xf40] sm:$0xff] %vm5156, %v5085
  %5646 = vst.msk [vmem:[%s2 + $0xf48] sm:$0xff] %vm5156, %v5088
  %5647 = vst.msk [vmem:[%s2 + $0xf50] sm:$0xff] %vm5156, %v5091
  %5648 = vst.msk [vmem:[%s2 + $0xf58] sm:$0xff] %vm5156, %v5094
  %5649 = vst.msk [vmem:[%s2 + $0xf60] sm:$0xff] %vm5156, %v5097
  %5650 = vst.msk [vmem:[%s2 + $0xf68] sm:$0xff] %vm5156, %v5100
  %5651 = vst.msk [vmem:[%s2 + $0xf70] sm:$0xff] %vm5156, %v5103
  %5652 = vst.msk [vmem:[%s2 + $0xf78] sm:$0xff] %vm5156, %v5106
  %5653 = vst.msk [vmem:[%s2 + $0xf80] sm:$0xff] %vm5156, %v5109
  %5654 = vst.msk [vmem:[%s2 + $0xf88] sm:$0xff] %vm5156, %v5112
  %5655 = vst.msk [vmem:[%s2 + $0xf90] sm:$0xff] %vm5156, %v5115
  %5656 = vst.msk [vmem:[%s2 + $0xf98] sm:$0xff] %vm5156, %v5118
  %5657 = vst.msk [vmem:[%s2 + $0xfa0] sm:$0xff] %vm5156, %v5121
  %5658 = vst.msk [vmem:[%s2 + $0xfa8] sm:$0xff] %vm5156, %v5124
  %5659 = vst.msk [vmem:[%s2 + $0xfb0] sm:$0xff] %vm5156, %v5127
  %5660 = vst.msk [vmem:[%s2 + $0xfb8] sm:$0xff] %vm5156, %v5130
  %5661 = vst.msk [vmem:[%s2 + $0xfc0] sm:$0xff] %vm5156, %v5133
  %5662 = vst.msk [vmem:[%s2 + $0xfc8] sm:$0xff] %vm5156, %v5136
  %5663 = vst.msk [vmem:[%s2 + $0xfd0] sm:$0xff] %vm5156, %v5139
  %5664 = vst.msk [vmem:[%s2 + $0xfd8] sm:$0xff] %vm5156, %v5142
  %5665 = vst.msk [vmem:[%s2 + $0xfe0] sm:$0xff] %vm5156, %v5145
  %5666 = vst.msk [vmem:[%s2 + $0xfe8] sm:$0xff] %vm5156, %v5148
  %5667 = vst.msk [vmem:[%s2 + $0xff0] sm:$0xff] %vm5156, %v5151
  %5668 = vst.msk [vmem:[%s2 + $0xff8] sm:$0xff] %vm5156, %v5154
  // Predicated region
  $region10: #{vad_downmix_resample.1} parent=0 // pred_check
    _
  $region11: #{vad_downmix_resample.1} parent=0 // pred_check_branch
    %5670 = sbr.rel (0) target = $region13
  $region12: #{vad_downmix_resample.1} parent=0 // pred_region
    _
  $region13: #{vad_downmix_resample.1} parent=0 // pred_fallthru
    _
  // Predicated region
  $region14: #{vad_downmix_resample.1} parent=0 // pred_check
    _
  $region15: #{vad_downmix_resample.1} parent=0 // pred_check_branch
    %5672 = sbr.rel (0) target = $region17
  $region16: #{vad_downmix_resample.1} parent=0 // pred_region
    _
  $region17: #{vad_downmix_resample.1} parent=0 // pred_fallthru
    _

</llo_original>
